<compile_context>
chip_gen: v7x
topology: tpu7x:2x2x1
jax: 0.10.0
libtpu: 0.0.40
codegen_flags: <defaults>
</compile_context>

<pallas_src>
import jax
import jax.numpy as jnp
from jax import lax
from jax.experimental import pallas as pl
from jax.experimental.pallas import tpu as pltpu


def _round_up(v, m):
    return (v + m - 1) // m * m


def _vmem_limit_bytes():
    # ~75% of physical VMEM, capped: ~96 MiB on v5e/v6e, ~48 MiB on v7x.
    try:
        cap = pltpu.get_tpu_info().vmem_capacity_bytes
        return min(int(cap) * 3 // 4, 100 * 1024 * 1024)
    except Exception:
        return 64 * 1024 * 1024


# ---------------------------------------------------------------------------
# Kernel 1: fused 3-layer SAGEConv(mean)+ReLU + node-level edge-MLP projections
# grid = (layer, dst-node tile, nonzero src-block)   (src block = reduction axis)
# ---------------------------------------------------------------------------
def fused_sage_kernel(kidx_ref, knnz_ref, a_ref, xk_ref, xi_ref, invdeg_ref,
                      wlr_ref, bl_ref, w1p_ref, p_ref,
                      acc_ref, stage_ref, h0_ref, h1_ref, psum_ref):
    l = pl.program_id(0)
    i = pl.program_id(1)
    k = pl.program_id(2)
    nl = pl.num_programs(0)
    nk = pl.num_programs(2)
    tm, tk = a_ref.shape
    hidden = xk_ref.shape[1]
    f32 = jnp.float32

    @pl.when(k == 0)
    def _():
        acc_ref[...] = jnp.zeros_like(acc_ref)

    # Block-sparse neighbor-sum: only real (nonzero) adjacency blocks accumulate.
    koff = pl.multiple_of(kidx_ref[i, k] * tk, tk)

    @pl.when(k < knnz_ref[i])
    def _():
        @pl.when(l == 0)
        def _():
            acc_ref[...] += jnp.dot(a_ref[...], xk_ref[...],
                                    preferred_element_type=f32)

        @pl.when(l % 2 == 1)  # odd layer aggregates the previous (even) layer
        def _():
            acc_ref[...] += jnp.dot(a_ref[...], h0_ref[pl.ds(koff, tk), :],
                                    preferred_element_type=f32)

        @pl.when((l != 0) & (l % 2 == 0))  # even layer (>0) aggregates odd layer
        def _():
            acc_ref[...] += jnp.dot(a_ref[...], h1_ref[pl.ds(koff, tk), :],
                                    preferred_element_type=f32)

    # Finalize on the last reduction step only.
    @pl.when(k == nk - 1)
    def _():
        ioff = pl.multiple_of(i * tm, tm)

        # Stage [mean | root] side by side -> a single K=2H dot with [W_l ; W_r].
        stage_ref[:, :hidden] = (acc_ref[...] * invdeg_ref[...]).astype(jnp.bfloat16)

        @pl.when(l == 0)
        def _():
            stage_ref[:, hidden:] = xi_ref[...]

        @pl.when(l % 2 == 1)
        def _():
            stage_ref[:, hidden:] = h0_ref[pl.ds(ioff, tm), :]

        @pl.when((l != 0) & (l % 2 == 0))
        def _():
            stage_ref[:, hidden:] = h1_ref[pl.ds(ioff, tm), :]

        h = jnp.dot(stage_ref[...], wlr_ref[...], preferred_element_type=f32) + bl_ref[...]
        h = jnp.maximum(h, 0.0)
        h_bf = h.astype(jnp.bfloat16)

        # Ping-pong store of this layer's output (skipped for the last layer).
        @pl.when((l % 2 == 0) & (l != nl - 1))
        def _():
            h0_ref[pl.ds(ioff, tm), :] = h_bf

        @pl.when((l % 2 == 1) & (l != nl - 1))
        def _():
            h1_ref[pl.ds(ioff, tm), :] = h_bf

        # JumpingKnowledge 'cat' + first edge-MLP matmul folded to node level:
        # P[v] = sum_l h_l[v] @ [W1_src_l | W1_dst_l]   (f32 accumulation)
        pc = jnp.dot(h_bf, w1p_ref[...], preferred_element_type=f32)   # (tm, 2H)

        @pl.when(l == 0)
        def _():
            psum_ref[pl.ds(ioff, tm), :] = pc

        @pl.when(l != 0)
        def _():
            psum_ref[pl.ds(ioff, tm), :] = psum_ref[pl.ds(ioff, tm), :] + pc

        @pl.when(l == nl - 1)
        def _():
            p_ref[...] = psum_ref[pl.ds(ioff, tm), :]


def fused_sage_convs(kidx, knnz, cnt_bf, inv_deg, x_pad, wlr_stack, bl_stack,
                     w1p_stack, *, tm, tk, vmem_limit):
    n_pad = cnt_bf.shape[0]
    num_layers, _, hidden = wlr_stack.shape
    ni = n_pad // tm
    nk_eff = kidx.shape[1]
    last_l = num_layers - 1
    return pl.pallas_call(
        fused_sage_kernel,
        out_shape=jax.ShapeDtypeStruct((n_pad, 2 * hidden), jnp.float32),
        grid_spec=pltpu.PrefetchScalarGridSpec(
            num_scalar_prefetch=2,                          # kidx, knnz -> SMEM
            grid=(num_layers, ni, nk_eff),
            in_specs=[
                # adjacency counts: follow the per-tile nonzero block list
                pl.BlockSpec((tm, tk), lambda l, i, k, kb, kn: (i, kb[i, k])),
                # X as aggregation source: only needed for layer 0 (dedup for l>0)
                pl.BlockSpec((tk, hidden),
                             lambda l, i, k, kb, kn: (jnp.where(l == 0, kb[i, k], 0), 0)),
                # X as root term: only needed for layer 0 (dedup for l>0)
                pl.BlockSpec((tm, hidden),
                             lambda l, i, k, kb, kn: (jnp.where(l == 0, i, 0), 0)),
                pl.BlockSpec((tm, 1), lambda l, i, k, kb, kn: (i, 0)),          # 1/deg
                pl.BlockSpec((None, 2 * hidden, hidden),
                             lambda l, i, k, kb, kn: (l, 0, 0)),                # [W_l;W_r]
                pl.BlockSpec((None, 1, hidden), lambda l, i, k, kb, kn: (l, 0, 0)),   # b_l
                pl.BlockSpec((None, hidden, 2 * hidden),
                             lambda l, i, k, kb, kn: (l, 0, 0)),                # [W1s|W1d]
            ],
            # projection table written only at the last layer's finalize
            out_specs=pl.BlockSpec(
                (tm, 2 * hidden),
                lambda l, i, k, kb, kn: (jnp.where(l == last_l, i, 0), 0)),
            scratch_shapes=[
                pltpu.VMEM((tm, hidden), jnp.float32),          # f32 accumulator
                pltpu.VMEM((tm, 2 * hidden), jnp.bfloat16),     # [mean | root] staging
                pltpu.VMEM((n_pad, hidden), jnp.bfloat16),      # layer outputs (even l)
                pltpu.VMEM((n_pad, hidden), jnp.bfloat16),      # layer outputs (odd l)
                pltpu.VMEM((n_pad, 2 * hidden), jnp.float32),   # P accumulator
            ]),
        compiler_params=pltpu.CompilerParams(
            # sequential: layer l+1 reads ALL node tiles of layer l via VMEM scratch
            dimension_semantics=("arbitrary", "arbitrary", "arbitrary"),
            vmem_limit_bytes=vmem_limit),
    )(kidx, knnz, cnt_bf, x_pad, x_pad, inv_deg, wlr_stack, bl_stack, w1p_stack)


# ---------------------------------------------------------------------------
# Kernel 2: per-edge gather of node projections + ReLU + final (H->1) projection
# grid = (edge tile,)
# ---------------------------------------------------------------------------
def edge_mlp_kernel(src_ref, dst_ref, ptab_ref, b1_ref, w2_ref, b2_ref,
                    out_ref, rows_ref):
    te, hidden = rows_ref.shape
    e0 = pl.program_id(0) * te

    # Gather P_src[src] + P_dst[dst] per edge (two (1,128) rows; loop unrolled).
    def gather_row(j, carry):
        s = src_ref[e0 + j]
        d = dst_ref[e0 + j]
        rows_ref[pl.ds(j, 1), :] = (ptab_ref[pl.ds(s, 1), :hidden]
                                    + ptab_ref[pl.ds(d, 1), hidden:])
        return carry

    lax.fori_loop(0, te, gather_row, 0, unroll=8)

    h = jnp.maximum(rows_ref[...] + b1_ref[...], 0.0)                         # (te, H)
    pred = jnp.dot(w2_ref[...], h.T, preferred_element_type=jnp.float32)      # (1, te)
    out_ref[...] = pred + b2_ref[...]


def edge_mlp(src_idx, dst_idx, p_table, b1, w2_row, b2, *, te, vmem_limit):
    e_pad = src_idx.shape[0]
    n_pad, two_h = p_table.shape
    hidden = two_h // 2

    def build(single_buffer):
        if single_buffer:
            # constant-index table: single-buffer it (halves its VMEM footprint)
            ptab_spec = pl.BlockSpec((n_pad, two_h), lambda e, s, d: (0, 0),
                                     pipeline_mode=pl.Buffered(1))
        else:
            ptab_spec = pl.BlockSpec((n_pad, two_h), lambda e, s, d: (0, 0))
        return pl.pallas_call(
            edge_mlp_kernel,
            out_shape=jax.ShapeDtypeStruct((1, e_pad), jnp.float32),
            grid_spec=pltpu.PrefetchScalarGridSpec(
                num_scalar_prefetch=2,                       # src, dst -> SMEM
                grid=(e_pad // te,),
                in_specs=[
                    ptab_spec,                                               # P table
                    pl.BlockSpec((1, hidden), lambda e, s, d: (0, 0)),       # b1
                    pl.BlockSpec((1, hidden), lambda e, s, d: (0, 0)),       # W2 row
                    pl.BlockSpec((1, 1), lambda e, s, d: (0, 0)),            # b2
                ],
                out_specs=pl.BlockSpec((1, te), lambda e, s, d: (0, e)),     # lane-dense
                scratch_shapes=[pltpu.VMEM((te, hidden), jnp.float32)]),
            compiler_params=pltpu.CompilerParams(
                dimension_semantics=("parallel",),           # independent edge tiles
                vmem_limit_bytes=vmem_limit),
        )(src_idx, dst_idx, p_table, b1, w2_row, b2)

    try:
        return build(True)
    except Exception:
        # fallback if this JAX build rejects pipeline_mode=pl.Buffered(1)
        return build(False)


# ---------------------------------------------------------------------------
# Parameters / wrappers
# ---------------------------------------------------------------------------
def init_params(key, in_channels, hidden_channels, out_channels, num_layers):
    params = {"convs": []}
    c_in = in_channels
    for _ in range(num_layers):
        key, k1, k2, k3 = jax.random.split(key, 4)
        wl = jax.random.normal(k1, (c_in, hidden_channels), jnp.float32) * 0.1
        wr = jax.random.normal(k2, (c_in, hidden_channels), jnp.float32) * 0.1
        bl = jax.random.normal(k3, (1, hidden_channels), jnp.float32) * 0.1
        params["convs"].append((wl, wr, bl))
        c_in = hidden_channels
    node_dim = hidden_channels * num_layers
    key, k1, k2, k3, k4 = jax.random.split(key, 5)
    params["w1"] = jax.random.normal(k1, (2 * node_dim, hidden_channels), jnp.float32) * 0.1
    params["b1"] = jax.random.normal(k2, (1, hidden_channels), jnp.float32) * 0.1
    params["w2"] = jax.random.normal(k3, (hidden_channels, out_channels), jnp.float32) * 0.1
    params["b2"] = jax.random.normal(k4, (1, out_channels), jnp.float32) * 0.1
    return params


def forward_pallas(x, edge_index, params, *, tm=128, tk=256, te=256, max_k_blocks=None):
    n, c_in = x.shape
    e = edge_index.shape[1]
    num_layers = len(params["convs"])
    hidden = params["convs"][0][0].shape[1]
    assert hidden % 128 == 0 and te % 128 == 0
    assert max(tm, tk) % min(tm, tk) == 0
    assert c_in <= hidden   # TODO(synk): handle in_channels > hidden_channels (pad to max width)
    assert params["w2"].shape[1] == 1  # TODO(synk): out_channels > 1 edge head not specialized

    n_pad = _round_up(n, max(tm, tk))
    e_pad = _round_up(e, te)
    ni, nk = n_pad // tm, n_pad // tk
    vmem_limit = _vmem_limit_bytes()

    # Mean-aggregation operator: exact integer edge counts (scatter-add) + f32
    # inverse in-degree applied inside the kernel.
    # TODO(synk): dense (n_pad, n_pad) adjacency is O(N^2) HBM — fine for these sizes.
    src = edge_index[0].astype(jnp.int32)
    dst = edge_index[1].astype(jnp.int32)
    cnt = jnp.zeros((n_pad, n_pad), jnp.float32).at[dst, src].add(1.0)
    deg = jnp.sum(cnt, axis=1, keepdims=True)
    inv_deg = jnp.where(deg > 0, 1.0 / deg, 0.0)
    cnt_bf = cnt.astype(jnp.bfloat16)  # exact for small integer counts

    # Block-sparsity structure: per dst-tile list of nonzero src-block indices
    # (padded with the last valid index so the padded DMA dedups; dot is guarded).
    blk_nz = cnt.reshape(ni, tm, nk, tk).sum(axis=(1, 3)) > 0      # (ni, nk)
    nnz = blk_nz.sum(axis=1).astype(jnp.int32)                     # (ni,)
    order_key = jnp.where(blk_nz, 0, nk) + jnp.arange(nk)[None, :]
    perm = jnp.argsort(order_key, axis=1).astype(jnp.int32)        # nonzero blocks first
    if max_k_blocks is None:
        nk_eff = max(int(jnp.max(nnz)), 1)       # eager; pass max_k_blocks under jit
    else:
        nk_eff = max_k_blocks
    last_blk = jnp.take_along_axis(perm, jnp.maximum(nnz - 1, 0)[:, None], axis=1)
    pos = jnp.arange(nk_eff)[None, :]
    kidx = jnp.where(pos < nnz[:, None], perm[:, :nk_eff], last_blk).astype(jnp.int32)

    # Node features zero-padded to (n_pad, hidden); layer-0 weights padded to match.
    x_pad = jnp.zeros((n_pad, hidden), jnp.float32).at[:n, :c_in].set(x).astype(jnp.bfloat16)

    # Per-layer [W_l ; W_r] stacks (2H, H) and biases.
    wlr_stack = jnp.zeros((num_layers, 2 * hidden, hidden), jnp.float32)
    bl_stack = jnp.zeros((num_layers, 1, hidden), jnp.float32)
    for li, (wl, wr, bl) in enumerate(params["convs"]):
        wlr_stack = wlr_stack.at[li, :wl.shape[0], :].set(wl)
        wlr_stack = wlr_stack.at[li, hidden:hidden + wr.shape[0], :].set(wr)
        bl_stack = bl_stack.at[li].set(bl)
    wlr_stack = wlr_stack.astype(jnp.bfloat16)

    # Per-layer [W1_src_l | W1_dst_l] stacks (H, 2H) for the node-level projection.
    d_node = num_layers * hidden
    w1s = params["w1"][:d_node]
    w1d = params["w1"][d_node:]
    w1p_stack = jnp.stack(
        [jnp.concatenate([w1s[li * hidden:(li + 1) * hidden],
                          w1d[li * hidden:(li + 1) * hidden]], axis=1)
         for li in range(num_layers)], axis=0).astype(jnp.bfloat16)

    p_table = fused_sage_convs(kidx, nnz, cnt_bf, inv_deg, x_pad,
                               wlr_stack, bl_stack, w1p_stack,
                               tm=tm, tk=tk, vmem_limit=vmem_limit)   # (n_pad, 2H) f32
    # TODO(synk): emit p_table in bf16 (packed dynamic-row gather) for another 2x VMEM.

    w2_row = params["w2"].T.astype(jnp.float32)   # (1, hidden)
    b2 = params["b2"].astype(jnp.float32)         # (1, 1)
    src_pad = jnp.zeros((e_pad,), jnp.int32).at[:e].set(src)
    dst_pad = jnp.zeros((e_pad,), jnp.int32).at[:e].set(dst)

    pred = edge_mlp(src_pad, dst_pad, p_table, params["b1"], w2_row, b2,
                    te=te, vmem_limit=vmem_limit)
    return pred[0, :e]


def forward_ref(x, edge_index, params):
    """Pure-JAX reference with matmul operands cast to bf16 (same precision policy)."""
    n = x.shape[0]
    src, dst = edge_index[0], edge_index[1]
    cnt = jnp.zeros((n, n), jnp.float32).at[dst, src].add(1.0)
    deg = cnt.sum(axis=1, keepdims=True)
    inv_deg = jnp.where(deg > 0, 1.0 / deg, 0.0)

    bf = lambda a: a.astype(jnp.bfloat16)
    f32 = jnp.float32
    outs = []
    h = x
    for (wl, wr, bl) in params["convs"]:
        mean = jnp.dot(bf(cnt), bf(h), preferred_element_type=f32) * inv_deg
        h = (jnp.dot(bf(mean), bf(wl), preferred_element_type=f32)
             + jnp.dot(bf(h), bf(wr), preferred_element_type=f32) + bl)
        h = jnp.maximum(h, 0.0)
        outs.append(h)
    x_cat = jnp.concatenate(outs, axis=-1)
    d_node = x_cat.shape[1]
    hh = (jnp.dot(bf(x_cat[src]), bf(params["w1"][:d_node]), preferred_element_type=f32)
          + jnp.dot(bf(x_cat[dst]), bf(params["w1"][d_node:]), preferred_element_type=f32)
          + params["b1"])
    hh = jnp.maximum(hh, 0.0)
    return (jnp.dot(hh, params["w2"], preferred_element_type=f32) + params["b2"])[:, 0]


if __name__ == "__main__":
    # Small synthetic graph (N -> pad 512, E -> pad 768). dst nodes >= 256 only
    # receive edges from src < 256, so with tm=128/tk=256 some adjacency blocks
    # are all-zero and the scalar-prefetched block-skip path is exercised.
    N, E = 450, 600
    IN_CH, HIDDEN, OUT_CH, NUM_LAYERS = 16, 128, 1, 3

    key = jax.random.PRNGKey(0)
    kx, ks1, kd1, ks2, kd2, kw = jax.random.split(key, 6)
    x = jax.random.normal(kx, (N, IN_CH), jnp.float32)
    e_half = E // 2
    src_a = jax.random.randint(ks1, (e_half,), 0, N)
    dst_a = jax.random.randint(kd1, (e_half,), 0, 256)
    src_b = jax.random.randint(ks2, (E - e_half,), 0, 256)
    dst_b = jax.random.randint(kd2, (E - e_half,), 256, N)
    edge_index = jnp.stack([jnp.concatenate([src_a, src_b]),
                            jnp.concatenate([dst_a, dst_b])], axis=0)  # (2, E)

    params = init_params(kw, IN_CH, HIDDEN, OUT_CH, NUM_LAYERS)

    out = jax.block_until_ready(forward_pallas(x, edge_index, params))
    ref = jax.block_until_ready(forward_ref(x, edge_index, params))

    assert out.shape == (E,), out.shape
    max_err = float(jnp.max(jnp.abs(out - ref)))
    assert jnp.allclose(out, ref, atol=1e-2, rtol=1e-2), f"mismatch vs reference, max_err={max_err}"

    # TODO(synk): aggregator='lstm' / 'max' variants of SAGEConv not implemented (only 'mean').
    print("KERNEL_OK")
</pallas_src>

<mosaic_0001>
module attributes {stable_mosaic.version = 11 : i64} {
  func.func @fused_sage_kernel(%arg0: i32, %arg1: i32, %arg2: i32, %arg3: memref<4x2xi32, #tpu.memory_space<smem>>, %arg4: memref<4xi32, #tpu.memory_space<smem>>, %arg5: memref<128x256xbf16, #tpu.memory_space<vmem>>, %arg6: memref<256x128xbf16, #tpu.memory_space<vmem>>, %arg7: memref<128x128xbf16, #tpu.memory_space<vmem>>, %arg8: memref<128x1xf32, #tpu.memory_space<vmem>>, %arg9: memref<1x256x128xbf16, #tpu.memory_space<vmem>>, %arg10: memref<1x1x128xf32, #tpu.memory_space<vmem>>, %arg11: memref<1x128x256xbf16, #tpu.memory_space<vmem>>, %arg12: memref<128x256xf32, #tpu.memory_space<vmem>>, %arg13: memref<128x128xf32, #tpu.memory_space<vmem>>, %arg14: memref<128x256xbf16, #tpu.memory_space<vmem>>, %arg15: memref<512x128xbf16, #tpu.memory_space<vmem>>, %arg16: memref<512x128xbf16, #tpu.memory_space<vmem>>, %arg17: memref<512x256xf32, #tpu.memory_space<vmem>>) attributes {dimension_semantics = [#tpu.dimension_semantics<arbitrary>, #tpu.dimension_semantics<arbitrary>, #tpu.dimension_semantics<arbitrary>], iteration_bounds = array<i64: 3, 4, 2>, scalar_prefetch = 2 : i64, scratch_operands = 5 : i64, tpu.core_type = #tpu.core_type<tc>, window_params = [{transform_indices = @transform_0, window_bounds = array<i64: 128, 256>}, {transform_indices = @transform_1, window_bounds = array<i64: 256, 128>}, {transform_indices = @transform_2, window_bounds = array<i64: 128, 128>}, {transform_indices = @transform_3, window_bounds = array<i64: 128, 1>}, {transform_indices = @transform_4, window_bounds = array<i64: 1, 256, 128>}, {transform_indices = @transform_5, window_bounds = array<i64: 1, 1, 128>}, {transform_indices = @transform_6, window_bounds = array<i64: 1, 128, 256>}, {transform_indices = @transform_7, window_bounds = array<i64: 128, 256>}]} {
    %c0_i32 = arith.constant 0 : i32
    %0 = arith.cmpi eq, %arg2, %c0_i32 : i32
    %1 = arith.extui %0 : i1 to i32
    %c0_i32_0 = arith.constant 0 : i32
    %2 = arith.cmpi ne, %1, %c0_i32_0 : i32
    scf.if %2 {
      %cst = arith.constant 0.000000e+00 : f32
      %16 = vector.broadcast %cst : f32 to vector<128x128xf32>
      %c0 = arith.constant 0 : index
      %c0_3 = arith.constant 0 : index
      %17 = vector.load %arg13[%c0, %c0_3] : memref<128x128xf32, #tpu.memory_space<vmem>>, vector<128x128xf32>
      tpu.vector_store %arg13[%c0, %c0_3], %16 {strides = array<i32>} : memref<128x128xf32, #tpu.memory_space<vmem>>, vector<128x128xf32>,
    } else {
    }
    %3 = arith.index_cast %arg1 : i32 to index
    %4 = arith.index_cast %arg2 : i32 to index
    %5 = memref.load %arg3[%3, %4] : memref<4x2xi32, #tpu.memory_space<smem>>
    %c256_i32 = arith.constant 256 : i32
    %6 = arith.muli %5, %c256_i32 : i32
    %7 = tpu.assume_multiple %6, 256 : i32
    %8 = arith.index_cast %arg1 : i32 to index
    %9 = memref.load %arg4[%8] : memref<4xi32, #tpu.memory_space<smem>>
    %10 = arith.cmpi slt, %arg2, %9 : i32
    %11 = arith.extui %10 : i1 to i32
    %c0_i32_1 = arith.constant 0 : i32
    %12 = arith.cmpi ne, %11, %c0_i32_1 : i32
    scf.if %12 {
      %c0_i32_3 = arith.constant 0 : i32
      %16 = arith.cmpi eq, %arg0, %c0_i32_3 : i32
      %17 = arith.extui %16 : i1 to i32
      %c0_i32_4 = arith.constant 0 : i32
      %18 = arith.cmpi ne, %17, %c0_i32_4 : i32
      scf.if %18 {
        %c0 = arith.constant 0 : index
        %c0_21 = arith.constant 0 : index
        %47 = vector.load %arg13[%c0, %c0_21] : memref<128x128xf32, #tpu.memory_space<vmem>>, vector<128x128xf32>
        %c0_22 = arith.constant 0 : index
        %c0_23 = arith.constant 0 : index
        %48 = vector.load %arg5[%c0_22, %c0_23] : memref<128x256xbf16, #tpu.memory_space<vmem>>, vector<128x256xbf16>
        %c0_24 = arith.constant 0 : index
        %c0_25 = arith.constant 0 : index
        %49 = vector.load %arg6[%c0_24, %c0_25] : memref<256x128xbf16, #tpu.memory_space<vmem>>, vector<256x128xbf16>
        %cst = arith.constant dense<0.000000e+00> : vector<128x128xf32>
        %50 = tpu.matmul %48, %49, %cst {dimension_numbers = #tpu.dot_dimension_numbers<[1], [0], [0], [1], [0, 0, 1, 1], [], []>} : vector<128x256xbf16>, vector<256x128xbf16>, vector<128x128xf32> -> vector<128x128xf32>
        %51 = arith.addf %47, %50 : vector<128x128xf32>
        %c0_26 = arith.constant 0 : index
        %c0_27 = arith.constant 0 : index
        %52 = vector.load %arg13[%c0_26, %c0_27] : memref<128x128xf32, #tpu.memory_space<vmem>>, vector<128x128xf32>
        tpu.vector_store %arg13[%c0_26, %c0_27], %51 {strides = array<i32>} : memref<128x128xf32, #tpu.memory_space<vmem>>, vector<128x128xf32>,
      } else {
      }
      %c2_i32 = arith.constant 2 : i32
      %c0_i32_5 = arith.constant 0 : i32
      %19 = arith.cmpi eq, %c2_i32, %c0_i32_5 : i32
      %c1_i32_6 = arith.constant 1 : i32
      %20 = arith.select %19, %c1_i32_6, %c2_i32 : i32
      %21 = arith.remsi %arg0, %20 : i32
      %c0_i32_7 = arith.constant 0 : i32
      %22 = arith.cmpi ne, %21, %c0_i32_7 : i32
      %c0_i32_8 = arith.constant 0 : i32
      %23 = arith.cmpi slt, %21, %c0_i32_8 : i32
      %c0_i32_9 = arith.constant 0 : i32
      %24 = arith.cmpi slt, %20, %c0_i32_9 : i32
      %25 = arith.xori %23, %24 : i1
      %26 = arith.andi %25, %22 : i1
      %27 = arith.addi %21, %20 : i32
      %28 = arith.select %26, %27, %21 : i32
      %c1_i32_10 = arith.constant 1 : i32
      %29 = arith.cmpi eq, %28, %c1_i32_10 : i32
      %30 = arith.extui %29 : i1 to i32
      %c0_i32_11 = arith.constant 0 : i32
      %31 = arith.cmpi ne, %30, %c0_i32_11 : i32
      scf.if %31 {
        %c0 = arith.constant 0 : index
        %c0_21 = arith.constant 0 : index
        %47 = vector.load %arg13[%c0, %c0_21] : memref<128x128xf32, #tpu.memory_space<vmem>>, vector<128x128xf32>
        %c0_22 = arith.constant 0 : index
        %c0_23 = arith.constant 0 : index
        %48 = vector.load %arg5[%c0_22, %c0_23] : memref<128x256xbf16, #tpu.memory_space<vmem>>, vector<128x256xbf16>
        %49 = arith.index_cast %7 : i32 to index
        %c0_24 = arith.constant 0 : index
        %50 = vector.load %arg15[%49, %c0_24] : memref<512x128xbf16, #tpu.memory_space<vmem>>, vector<256x128xbf16>
        %cst = arith.constant dense<0.000000e+00> : vector<128x128xf32>
        %51 = tpu.matmul %48, %50, %cst {dimension_numbers = #tpu.dot_dimension_numbers<[1], [0], [0], [1], [0, 0, 1, 1], [], []>} : vector<128x256xbf16>, vector<256x128xbf16>, vector<128x128xf32> -> vector<128x128xf32>
        %52 = arith.addf %47, %51 : vector<128x128xf32>
        %c0_25 = arith.constant 0 : index
        %c0_26 = arith.constant 0 : index
        %53 = vector.load %arg13[%c0_25, %c0_26] : memref<128x128xf32, #tpu.memory_space<vmem>>, vector<128x128xf32>
        tpu.vector_store %arg13[%c0_25, %c0_26], %52 {strides = array<i32>} : memref<128x128xf32, #tpu.memory_space<vmem>>, vector<128x128xf32>,
      } else {
      }
      %c0_i32_12 = arith.constant 0 : i32
      %32 = arith.cmpi ne, %arg0, %c0_i32_12 : i32
      %c2_i32_13 = arith.constant 2 : i32
      %c0_i32_14 = arith.constant 0 : i32
      %33 = arith.cmpi eq, %c2_i32_13, %c0_i32_14 : i32
      %c1_i32_15 = arith.constant 1 : i32
      %34 = arith.select %33, %c1_i32_15, %c2_i32_13 : i32
      %35 = arith.remsi %arg0, %34 : i32
      %c0_i32_16 = arith.constant 0 : i32
      %36 = arith.cmpi ne, %35, %c0_i32_16 : i32
      %c0_i32_17 = arith.constant 0 : i32
      %37 = arith.cmpi slt, %35, %c0_i32_17 : i32
      %c0_i32_18 = arith.constant 0 : i32
      %38 = arith.cmpi slt, %34, %c0_i32_18 : i32
      %39 = arith.xori %37, %38 : i1
      %40 = arith.andi %39, %36 : i1
      %41 = arith.addi %35, %34 : i32
      %42 = arith.select %40, %41, %35 : i32
      %c0_i32_19 = arith.constant 0 : i32
      %43 = arith.cmpi eq, %42, %c0_i32_19 : i32
      %44 = arith.andi %32, %43 : i1
      %45 = arith.extui %44 : i1 to i32
      %c0_i32_20 = arith.constant 0 : i32
      %46 = arith.cmpi ne, %45, %c0_i32_20 : i32
      scf.if %46 {
        %c0 = arith.constant 0 : index
        %c0_21 = arith.constant 0 : index
        %47 = vector.load %arg13[%c0, %c0_21] : memref<128x128xf32, #tpu.memory_space<vmem>>, vector<128x128xf32>
        %c0_22 = arith.constant 0 : index
        %c0_23 = arith.constant 0 : index
        %48 = vector.load %arg5[%c0_22, %c0_23] : memref<128x256xbf16, #tpu.memory_space<vmem>>, vector<128x256xbf16>
        %49 = arith.index_cast %7 : i32 to index
        %c0_24 = arith.constant 0 : index
        %50 = vector.load %arg16[%49, %c0_24] : memref<512x128xbf16, #tpu.memory_space<vmem>>, vector<256x128xbf16>
        %cst = arith.constant dense<0.000000e+00> : vector<128x128xf32>
        %51 = tpu.matmul %48, %50, %cst {dimension_numbers = #tpu.dot_dimension_numbers<[1], [0], [0], [1], [0, 0, 1, 1], [], []>} : vector<128x256xbf16>, vector<256x128xbf16>, vector<128x128xf32> -> vector<128x128xf32>
        %52 = arith.addf %47, %51 : vector<128x128xf32>
        %c0_25 = arith.constant 0 : index
        %c0_26 = arith.constant 0 : index
        %53 = vector.load %arg13[%c0_25, %c0_26] : memref<128x128xf32, #tpu.memory_space<vmem>>, vector<128x128xf32>
        tpu.vector_store %arg13[%c0_25, %c0_26], %52 {strides = array<i32>} : memref<128x128xf32, #tpu.memory_space<vmem>>, vector<128x128xf32>,
      } else {
      }
    } else {
    }
    %c1_i32 = arith.constant 1 : i32
    %13 = arith.cmpi eq, %arg2, %c1_i32 : i32
    %14 = arith.extui %13 : i1 to i32
    %c0_i32_2 = arith.constant 0 : i32
    %15 = arith.cmpi ne, %14, %c0_i32_2 : i32
    scf.if %15 {
      %c128_i32 = arith.constant 128 : i32
      %16 = arith.muli %arg1, %c128_i32 : i32
      %17 = tpu.assume_multiple %16, 128 : i32
      %c0 = arith.constant 0 : index
      %c0_3 = arith.constant 0 : index
      %18 = vector.load %arg13[%c0, %c0_3] : memref<128x128xf32, #tpu.memory_space<vmem>>, vector<128x128xf32>
      %c0_4 = arith.constant 0 : index
      %c0_5 = arith.constant 0 : index
      %19 = vector.load %arg8[%c0_4, %c0_5] : memref<128x1xf32, #tpu.memory_space<vmem>>, vector<128x1xf32>
      %20 = vector.broadcast %19 : vector<128x1xf32> to vector<128x128xf32>
      %21 = arith.mulf %18, %20 : vector<128x128xf32>
      %22 = arith.truncf %21 : vector<128x128xf32> to vector<128x128xbf16>
      %c0_6 = arith.constant 0 : index
      %c0_7 = arith.constant 0 : index
      %23 = vector.load %arg14[%c0_6, %c0_7] : memref<128x256xbf16, #tpu.memory_space<vmem>>, vector<128x128xbf16>
      tpu.vector_store %arg14[%c0_6, %c0_7], %22 {strides = array<i32>} : memref<128x256xbf16, #tpu.memory_space<vmem>>, vector<128x128xbf16>,
      %c0_i32_8 = arith.constant 0 : i32
      %24 = arith.cmpi eq, %arg0, %c0_i32_8 : i32
      %25 = arith.extui %24 : i1 to i32
      %c0_i32_9 = arith.constant 0 : i32
      %26 = arith.cmpi ne, %25, %c0_i32_9 : i32
      scf.if %26 {
        %c0_63 = arith.constant 0 : index
        %c0_64 = arith.constant 0 : index
        %108 = vector.load %arg7[%c0_63, %c0_64] : memref<128x128xbf16, #tpu.memory_space<vmem>>, vector<128x128xbf16>
        %c0_65 = arith.constant 0 : index
        %c128 = arith.constant 128 : index
        %109 = vector.load %arg14[%c0_65, %c128] : memref<128x256xbf16, #tpu.memory_space<vmem>>, vector<128x128xbf16>
        tpu.vector_store %arg14[%c0_65, %c128], %108 {strides = array<i32>} : memref<128x256xbf16, #tpu.memory_space<vmem>>, vector<128x128xbf16>,
      } else {
      }
      %c2_i32 = arith.constant 2 : i32
      %c0_i32_10 = arith.constant 0 : i32
      %27 = arith.cmpi eq, %c2_i32, %c0_i32_10 : i32
      %c1_i32_11 = arith.constant 1 : i32
      %28 = arith.select %27, %c1_i32_11, %c2_i32 : i32
      %29 = arith.remsi %arg0, %28 : i32
      %c0_i32_12 = arith.constant 0 : i32
      %30 = arith.cmpi ne, %29, %c0_i32_12 : i32
      %c0_i32_13 = arith.constant 0 : i32
      %31 = arith.cmpi slt, %29, %c0_i32_13 : i32
      %c0_i32_14 = arith.constant 0 : i32
      %32 = arith.cmpi slt, %28, %c0_i32_14 : i32
      %33 = arith.xori %31, %32 : i1
      %34 = arith.andi %33, %30 : i1
      %35 = arith.addi %29, %28 : i32
      %36 = arith.select %34, %35, %29 : i32
      %c1_i32_15 = arith.constant 1 : i32
      %37 = arith.cmpi eq, %36, %c1_i32_15 : i32
      %38 = arith.extui %37 : i1 to i32
      %c0_i32_16 = arith.constant 0 : i32
      %39 = arith.cmpi ne, %38, %c0_i32_16 : i32
      scf.if %39 {
        %108 = arith.index_cast %17 : i32 to index
        %c0_63 = arith.constant 0 : index
        %109 = vector.load %arg15[%108, %c0_63] : memref<512x128xbf16, #tpu.memory_space<vmem>>, vector<128x128xbf16>
        %c0_64 = arith.constant 0 : index
        %c128 = arith.constant 128 : index
        %110 = vector.load %arg14[%c0_64, %c128] : memref<128x256xbf16, #tpu.memory_space<vmem>>, vector<128x128xbf16>
        tpu.vector_store %arg14[%c0_64, %c128], %109 {strides = array<i32>} : memref<128x256xbf16, #tpu.memory_space<vmem>>, vector<128x128xbf16>,
      } else {
      }
      %c0_i32_17 = arith.constant 0 : i32
      %40 = arith.cmpi ne, %arg0, %c0_i32_17 : i32
      %c2_i32_18 = arith.constant 2 : i32
      %c0_i32_19 = arith.constant 0 : i32
      %41 = arith.cmpi eq, %c2_i32_18, %c0_i32_19 : i32
      %c1_i32_20 = arith.constant 1 : i32
      %42 = arith.select %41, %c1_i32_20, %c2_i32_18 : i32
      %43 = arith.remsi %arg0, %42 : i32
      %c0_i32_21 = arith.constant 0 : i32
      %44 = arith.cmpi ne, %43, %c0_i32_21 : i32
      %c0_i32_22 = arith.constant 0 : i32
      %45 = arith.cmpi slt, %43, %c0_i32_22 : i32
      %c0_i32_23 = arith.constant 0 : i32
      %46 = arith.cmpi slt, %42, %c0_i32_23 : i32
      %47 = arith.xori %45, %46 : i1
      %48 = arith.andi %47, %44 : i1
      %49 = arith.addi %43, %42 : i32
      %50 = arith.select %48, %49, %43 : i32
      %c0_i32_24 = arith.constant 0 : i32
      %51 = arith.cmpi eq, %50, %c0_i32_24 : i32
      %52 = arith.andi %40, %51 : i1
      %53 = arith.extui %52 : i1 to i32
      %c0_i32_25 = arith.constant 0 : i32
      %54 = arith.cmpi ne, %53, %c0_i32_25 : i32
      scf.if %54 {
        %108 = arith.index_cast %17 : i32 to index
        %c0_63 = arith.constant 0 : index
        %109 = vector.load %arg16[%108, %c0_63] : memref<512x128xbf16, #tpu.memory_space<vmem>>, vector<128x128xbf16>
        %c0_64 = arith.constant 0 : index
        %c128 = arith.constant 128 : index
        %110 = vector.load %arg14[%c0_64, %c128] : memref<128x256xbf16, #tpu.memory_space<vmem>>, vector<128x128xbf16>
        tpu.vector_store %arg14[%c0_64, %c128], %109 {strides = array<i32>} : memref<128x256xbf16, #tpu.memory_space<vmem>>, vector<128x128xbf16>,
      } else {
      }
      %c0_26 = arith.constant 0 : index
      %c0_27 = arith.constant 0 : index
      %55 = vector.load %arg14[%c0_26, %c0_27] : memref<128x256xbf16, #tpu.memory_space<vmem>>, vector<128x256xbf16>
      %c0_28 = arith.constant 0 : index
      %c0_29 = arith.constant 0 : index
      %c0_30 = arith.constant 0 : index
      %56 = vector.load %arg9[%c0_28, %c0_29, %c0_30] : memref<1x256x128xbf16, #tpu.memory_space<vmem>>, vector<1x256x128xbf16>
      %57 = vector.shape_cast %56 : vector<1x256x128xbf16> to vector<256x128xbf16>
      %cst = arith.constant dense<0.000000e+00> : vector<128x128xf32>
      %58 = tpu.matmul %55, %57, %cst {dimension_numbers = #tpu.dot_dimension_numbers<[1], [0], [0], [1], [0, 0, 1, 1], [], []>} : vector<128x256xbf16>, vector<256x128xbf16>, vector<128x128xf32> -> vector<128x128xf32>
      %c0_31 = arith.constant 0 : index
      %c0_32 = arith.constant 0 : index
      %c0_33 = arith.constant 0 : index
      %59 = vector.load %arg10[%c0_31, %c0_32, %c0_33] : memref<1x1x128xf32, #tpu.memory_space<vmem>>, vector<1x1x128xf32>
      %60 = vector.shape_cast %59 : vector<1x1x128xf32> to vector<1x128xf32>
      %61 = vector.broadcast %60 : vector<1x128xf32> to vector<128x128xf32>
      %62 = arith.addf %58, %61 : vector<128x128xf32>
      %cst_34 = arith.constant 0.000000e+00 : f32
      %63 = vector.broadcast %cst_34 : f32 to vector<128x128xf32>
      %64 = arith.maximumf %62, %63 : vector<128x128xf32>
      %65 = arith.truncf %64 : vector<128x128xf32> to vector<128x128xbf16>
      %c2_i32_35 = arith.constant 2 : i32
      %c0_i32_36 = arith.constant 0 : i32
      %66 = arith.cmpi eq, %c2_i32_35, %c0_i32_36 : i32
      %c1_i32_37 = arith.constant 1 : i32
      %67 = arith.select %66, %c1_i32_37, %c2_i32_35 : i32
      %68 = arith.remsi %arg0, %67 : i32
      %c0_i32_38 = arith.constant 0 : i32
      %69 = arith.cmpi ne, %68, %c0_i32_38 : i32
      %c0_i32_39 = arith.constant 0 : i32
      %70 = arith.cmpi slt, %68, %c0_i32_39 : i32
      %c0_i32_40 = arith.constant 0 : i32
      %71 = arith.cmpi slt, %67, %c0_i32_40 : i32
      %72 = arith.xori %70, %71 : i1
      %73 = arith.andi %72, %69 : i1
      %74 = arith.addi %68, %67 : i32
      %75 = arith.select %73, %74, %68 : i32
      %c0_i32_41 = arith.constant 0 : i32
      %76 = arith.cmpi eq, %75, %c0_i32_41 : i32
      %c2_i32_42 = arith.constant 2 : i32
      %77 = arith.cmpi ne, %arg0, %c2_i32_42 : i32
      %78 = arith.andi %76, %77 : i1
      %79 = arith.extui %78 : i1 to i32
      %c0_i32_43 = arith.constant 0 : i32
      %80 = arith.cmpi ne, %79, %c0_i32_43 : i32
      scf.if %80 {
        %108 = arith.index_cast %17 : i32 to index
        %c0_63 = arith.constant 0 : index
        %109 = vector.load %arg15[%108, %c0_63] : memref<512x128xbf16, #tpu.memory_space<vmem>>, vector<128x128xbf16>
        tpu.vector_store %arg15[%108, %c0_63], %65 {strides = array<i32>} : memref<512x128xbf16, #tpu.memory_space<vmem>>, vector<128x128xbf16>,
      } else {
      }
      %c2_i32_44 = arith.constant 2 : i32
      %c0_i32_45 = arith.constant 0 : i32
      %81 = arith.cmpi eq, %c2_i32_44, %c0_i32_45 : i32
      %c1_i32_46 = arith.constant 1 : i32
      %82 = arith.select %81, %c1_i32_46, %c2_i32_44 : i32
      %83 = arith.remsi %arg0, %82 : i32
      %c0_i32_47 = arith.constant 0 : i32
      %84 = arith.cmpi ne, %83, %c0_i32_47 : i32
      %c0_i32_48 = arith.constant 0 : i32
      %85 = arith.cmpi slt, %83, %c0_i32_48 : i32
      %c0_i32_49 = arith.constant 0 : i32
      %86 = arith.cmpi slt, %82, %c0_i32_49 : i32
      %87 = arith.xori %85, %86 : i1
      %88 = arith.andi %87, %84 : i1
      %89 = arith.addi %83, %82 : i32
      %90 = arith.select %88, %89, %83 : i32
      %c1_i32_50 = arith.constant 1 : i32
      %91 = arith.cmpi eq, %90, %c1_i32_50 : i32
      %c2_i32_51 = arith.constant 2 : i32
      %92 = arith.cmpi ne, %arg0, %c2_i32_51 : i32
      %93 = arith.andi %91, %92 : i1
      %94 = arith.extui %93 : i1 to i32
      %c0_i32_52 = arith.constant 0 : i32
      %95 = arith.cmpi ne, %94, %c0_i32_52 : i32
      scf.if %95 {
        %108 = arith.index_cast %17 : i32 to index
        %c0_63 = arith.constant 0 : index
        %109 = vector.load %arg16[%108, %c0_63] : memref<512x128xbf16, #tpu.memory_space<vmem>>, vector<128x128xbf16>
        tpu.vector_store %arg16[%108, %c0_63], %65 {strides = array<i32>} : memref<512x128xbf16, #tpu.memory_space<vmem>>, vector<128x128xbf16>,
      } else {
      }
      %c0_53 = arith.constant 0 : index
      %c0_54 = arith.constant 0 : index
      %c0_55 = arith.constant 0 : index
      %96 = vector.load %arg11[%c0_53, %c0_54, %c0_55] : memref<1x128x256xbf16, #tpu.memory_space<vmem>>, vector<1x128x256xbf16>
      %97 = vector.shape_cast %96 : vector<1x128x256xbf16> to vector<128x256xbf16>
      %cst_56 = arith.constant dense<0.000000e+00> : vector<128x256xf32>
      %98 = tpu.matmul %65, %97, %cst_56 {dimension_numbers = #tpu.dot_dimension_numbers<[1], [0], [0], [1], [0, 0, 1, 1], [], []>} : vector<128x128xbf16>, vector<128x256xbf16>, vector<128x256xf32> -> vector<128x256xf32>
      %c0_i32_57 = arith.constant 0 : i32
      %99 = arith.cmpi eq, %arg0, %c0_i32_57 : i32
      %100 = arith.extui %99 : i1 to i32
      %c0_i32_58 = arith.constant 0 : i32
      %101 = arith.cmpi ne, %100, %c0_i32_58 : i32
      scf.if %101 {
        %108 = arith.index_cast %17 : i32 to index
        %c0_63 = arith.constant 0 : index
        %109 = vector.load %arg17[%108, %c0_63] : memref<512x256xf32, #tpu.memory_space<vmem>>, vector<128x256xf32>
        tpu.vector_store %arg17[%108, %c0_63], %98 {strides = array<i32>} : memref<512x256xf32, #tpu.memory_space<vmem>>, vector<128x256xf32>,
      } else {
      }
      %c0_i32_59 = arith.constant 0 : i32
      %102 = arith.cmpi ne, %arg0, %c0_i32_59 : i32
      %103 = arith.extui %102 : i1 to i32
      %c0_i32_60 = arith.constant 0 : i32
      %104 = arith.cmpi ne, %103, %c0_i32_60 : i32
      scf.if %104 {
        %108 = arith.index_cast %17 : i32 to index
        %c0_63 = arith.constant 0 : index
        %109 = vector.load %arg17[%108, %c0_63] : memref<512x256xf32, #tpu.memory_space<vmem>>, vector<128x256xf32>
        %110 = arith.addf %109, %98 : vector<128x256xf32>
        %111 = arith.index_cast %17 : i32 to index
        %c0_64 = arith.constant 0 : index
        %112 = vector.load %arg17[%111, %c0_64] : memref<512x256xf32, #tpu.memory_space<vmem>>, vector<128x256xf32>
        tpu.vector_store %arg17[%111, %c0_64], %110 {strides = array<i32>} : memref<512x256xf32, #tpu.memory_space<vmem>>, vector<128x256xf32>,
      } else {
      }
      %c2_i32_61 = arith.constant 2 : i32
      %105 = arith.cmpi eq, %arg0, %c2_i32_61 : i32
      %106 = arith.extui %105 : i1 to i32
      %c0_i32_62 = arith.constant 0 : i32
      %107 = arith.cmpi ne, %106, %c0_i32_62 : i32
      scf.if %107 {
        %108 = arith.index_cast %17 : i32 to index
        %c0_63 = arith.constant 0 : index
        %109 = vector.load %arg17[%108, %c0_63] : memref<512x256xf32, #tpu.memory_space<vmem>>, vector<128x256xf32>
        %c0_64 = arith.constant 0 : index
        %c0_65 = arith.constant 0 : index
        %110 = vector.load %arg12[%c0_64, %c0_65] : memref<128x256xf32, #tpu.memory_space<vmem>>, vector<128x256xf32>
        tpu.vector_store %arg12[%c0_64, %c0_65], %109 {strides = array<i32>} : memref<128x256xf32, #tpu.memory_space<vmem>>, vector<128x256xf32>,
      } else {
      }
    } else {
    }
    return
  }
  func.func @transform_0(%arg0: i32, %arg1: i32, %arg2: i32, %arg3: memref<4x2xi32, #tpu.memory_space<smem>>, %arg4: memref<4xi32, #tpu.memory_space<smem>>) -> (i32, i32) {
    %0 = arith.index_cast %arg1 : i32 to index
    %1 = arith.index_cast %arg2 : i32 to index
    %2 = memref.load %arg3[%0, %1] : memref<4x2xi32, #tpu.memory_space<smem>>
    %c0_i32 = arith.constant 0 : i32
    return %arg1, %2 : i32, i32
  }
  func.func @transform_1(%arg0: i32, %arg1: i32, %arg2: i32, %arg3: memref<4x2xi32, #tpu.memory_space<smem>>, %arg4: memref<4xi32, #tpu.memory_space<smem>>) -> (i32, i32) {
    %c0_i32 = arith.constant 0 : i32
    %0 = arith.cmpi eq, %arg0, %c0_i32 : i32
    %1 = arith.index_cast %arg1 : i32 to index
    %2 = arith.index_cast %arg2 : i32 to index
    %3 = memref.load %arg3[%1, %2] : memref<4x2xi32, #tpu.memory_space<smem>>
    %c0_i32_0 = arith.constant 0 : i32
    %4 = arith.select %0, %3, %c0_i32_0 : i32
    %c0_i32_1 = arith.constant 0 : i32
    %c0_i32_2 = arith.constant 0 : i32
    return %4, %c0_i32_1 : i32, i32
  }
  func.func @transform_2(%arg0: i32, %arg1: i32, %arg2: i32, %arg3: memref<4x2xi32, #tpu.memory_space<smem>>, %arg4: memref<4xi32, #tpu.memory_space<smem>>) -> (i32, i32) {
    %c0_i32 = arith.constant 0 : i32
    %0 = arith.cmpi eq, %arg0, %c0_i32 : i32
    %c0_i32_0 = arith.constant 0 : i32
    %1 = arith.select %0, %arg1, %c0_i32_0 : i32
    %c0_i32_1 = arith.constant 0 : i32
    %c0_i32_2 = arith.constant 0 : i32
    return %1, %c0_i32_1 : i32, i32
  }
  func.func @transform_3(%arg0: i32, %arg1: i32, %arg2: i32, %arg3: memref<4x2xi32, #tpu.memory_space<smem>>, %arg4: memref<4xi32, #tpu.memory_space<smem>>) -> (i32, i32) {
    %c0_i32 = arith.constant 0 : i32
    %c0_i32_0 = arith.constant 0 : i32
    return %arg1, %c0_i32 : i32, i32
  }
  func.func @transform_4(%arg0: i32, %arg1: i32, %arg2: i32, %arg3: memref<4x2xi32, #tpu.memory_space<smem>>, %arg4: memref<4xi32, #tpu.memory_space<smem>>) -> (i32, i32, i32) {
    %c0_i32 = arith.constant 0 : i32
    %c0_i32_0 = arith.constant 0 : i32
    %c0_i32_1 = arith.constant 0 : i32
    return %arg0, %c0_i32, %c0_i32_0 : i32, i32, i32
  }
  func.func @transform_5(%arg0: i32, %arg1: i32, %arg2: i32, %arg3: memref<4x2xi32, #tpu.memory_space<smem>>, %arg4: memref<4xi32, #tpu.memory_space<smem>>) -> (i32, i32, i32) {
    %c0_i32 = arith.constant 0 : i32
    %c0_i32_0 = arith.constant 0 : i32
    %c0_i32_1 = arith.constant 0 : i32
    return %arg0, %c0_i32, %c0_i32_0 : i32, i32, i32
  }
  func.func @transform_6(%arg0: i32, %arg1: i32, %arg2: i32, %arg3: memref<4x2xi32, #tpu.memory_space<smem>>, %arg4: memref<4xi32, #tpu.memory_space<smem>>) -> (i32, i32, i32) {
    %c0_i32 = arith.constant 0 : i32
    %c0_i32_0 = arith.constant 0 : i32
    %c0_i32_1 = arith.constant 0 : i32
    return %arg0, %c0_i32, %c0_i32_0 : i32, i32, i32
  }
  func.func @transform_7(%arg0: i32, %arg1: i32, %arg2: i32, %arg3: memref<4x2xi32, #tpu.memory_space<smem>>, %arg4: memref<4xi32, #tpu.memory_space<smem>>) -> (i32, i32) {
    %c2_i32 = arith.constant 2 : i32
    %0 = arith.cmpi eq, %arg0, %c2_i32 : i32
    %c0_i32 = arith.constant 0 : i32
    %1 = arith.select %0, %arg1, %c0_i32 : i32
    %c0_i32_0 = arith.constant 0 : i32
    %c0_i32_1 = arith.constant 0 : i32
    return %1, %c0_i32_0 : i32, i32
  }
}

</mosaic_0001>

<llo_original>
// kernel: tpu_custom_call.1
$region0: #{tpu_custom_call.1}
  #allocation0 [shape = 'u32[]', space=smem, size = 0x4, offset = 0x4, fixed_abs, tag = 'smem constant byte address 0x4 - core index']
  #allocation1 [shape = 'u32[144,128]{1,0:T(1,128)}', space=vmem, size = 0x12000, scoped, tag = 'internal scratch']
  #allocation2 [shape = 'f32[128,128]{1,0:T(8,128)}', space=vmem, size = 0x10000, scoped, tag = 'scratch operand']
  #allocation3 [shape = 'bf16[128,256]{1,0:T(16,128)(2,1)}', space=vmem, size = 0x10000, scoped, tag = 'scratch operand']
  #allocation4 [shape = 'bf16[512,128]{1,0:T(16,128)(2,1)}', space=vmem, size = 0x20000, scoped, tag = 'scratch operand']
  #allocation5 [shape = 'bf16[512,128]{1,0:T(16,128)(2,1)}', space=vmem, size = 0x20000, scoped, tag = 'scratch operand']
  #allocation6 [shape = 'f32[512,256]{1,0:T(8,128)}', space=vmem, size = 0x80000, scoped, tag = 'scratch operand']
  #allocation7 [shape = 's32[1]{0}', space=sflag, size = 0x4, scoped, tag = 'scoped memory for tpu_custom_call.1']
  #allocation8 [shape = 'u8[2048]{0}', space=smem, size = 0x800, scoped, tag = 'prefetched SMEM operand 0']
  #allocation9 [shape = 'u8[512]{0}', space=smem, size = 0x200, scoped, tag = 'prefetched SMEM operand 1']
  %s0 = inlined_call_operand.hbm [shape: s32[4,2], index: 0, kind: input, shape index: {}]
  %s1 = inlined_call_operand.hbm [shape: s32[4], index: 1, kind: input, shape index: {}]
  %s2 = inlined_call_operand.hbm [shape: bf16[512,512], index: 2, kind: input, shape index: {}]
  %s3 = inlined_call_operand.hbm [shape: bf16[512,128], index: 3, kind: input, shape index: {}]
  %s4 = inlined_call_operand.hbm [shape: bf16[512,128], index: 4, kind: input, shape index: {}]
  %s5 = inlined_call_operand.hbm [shape: f32[512,1], index: 5, kind: input, shape index: {}]
  %s6 = inlined_call_operand.hbm [shape: bf16[3,256,128], index: 6, kind: input, shape index: {}]
  %s7 = inlined_call_operand.hbm [shape: f32[3,1,128], index: 7, kind: input, shape index: {}]
  %s8 = inlined_call_operand.hbm [shape: bf16[3,128,256], index: 8, kind: input, shape index: {}]
  %s9 = inlined_call_operand.hbm [shape: f32[512,256], index: 9, kind: output, shape index: {}]
  %s10 = sld [smem:[#allocation0]]
  $region145: #{tpu_custom_call.1} parent=0
    _
  %s12 = ssub.s32 1, %s10
  %s13 = scalar_select 0, %s12, %s10
  %15 = dma.hbm_to_smem %s0, 64, [#allocation8], [#allocation7]
  %17 = dma.hbm_to_smem %s1, 16, [#allocation9], [#allocation7]
  %18 = dma.done [#allocation7], 80
  %19 = sfence
  $region1: #{tpu_custom_call.1} parent=0
    #allocation10 [shape = 'u8[131072]{0}', space=vmem, size = 0x20000, scoped, tag = 'input window, operand 2']
    #allocation11 [shape = 's32[2]{0}', space=sflag, size = 0x8, scoped, tag = 'scoped memory for tpu_custom_call.1']
    #allocation12 [shape = 's32[2]{0}', space=sflag, size = 0x8, scoped, tag = 'scoped memory for tpu_custom_call.1']
    #allocation13 [shape = 'u8[131072]{0}', space=vmem, size = 0x20000, scoped, tag = 'input window, operand 3']
    #allocation14 [shape = 's32[2]{0}', space=sflag, size = 0x8, scoped, tag = 'scoped memory for tpu_custom_call.1']
    #allocation15 [shape = 'u8[65536]{0}', space=vmem, size = 0x10000, scoped, tag = 'input window, operand 4']
    #allocation16 [shape = 'u8[131072]{0}', space=vmem, size = 0x20000, scoped, tag = 'input window, operand 5']
    #allocation17 [shape = 's32[2]{0}', space=sflag, size = 0x8, scoped, tag = 'scoped memory for tpu_custom_call.1']
    #allocation18 [shape = 'u8[131072]{0}', space=vmem, size = 0x20000, scoped, tag = 'input window, operand 6']
    #allocation19 [shape = 'u8[1024]{0}', space=vmem, size = 0x400, scoped, tag = 'input window, operand 7']
    #allocation20 [shape = 's32[2]{0}', space=sflag, size = 0x8, scoped, tag = 'scoped memory for tpu_custom_call.1']
    #allocation21 [shape = 'u8[131072]{0}', space=vmem, size = 0x20000, scoped, tag = 'input window, operand 8']
    #allocation22 [shape = 'u8[262144]{0}', space=vmem, size = 0x40000, scoped, tag = 'output window, operand 0']
    %20 = vsyncpa [#allocation11], 0
    %s21 = scalar_lea.sflag [#allocation11], 1
    %22 = vsyncpa %s21, 0
    %23 = vsyncpa [#allocation14], 0
    %s24 = scalar_lea.sflag [#allocation14], 1
    %25 = vsyncpa %s24, 0
    %26 = vsyncpa [#allocation17], 0
    %s27 = scalar_lea.sflag [#allocation17], 1
    %28 = vsyncpa %s27, 0
    %29 = vsyncpa [#allocation20], 0
    %s30 = scalar_lea.sflag [#allocation20], 1
    %31 = vsyncpa %s30, 0
    %32 = vsyncpa [#allocation12], 0
    %s33 = scalar_lea.sflag [#allocation12], 1
    %34 = vsyncpa %s33, 0
    loop: start=0, step=1, limit=26
    $region2: #{tpu_custom_call.1} parent=1 // loop_pre_header
      _
    $region3: #{tpu_custom_call.1} parent=1 // loop_header
      %s36 = sphi 0, %s40
      %p37 = scmp.ge.s32.totalorder %s36, 26
      %s43 = sphi 0, %s62
      %s44 = sphi 0, %s58
      %s45 = sphi 0, %s54
      %s46 = sphi 0, %s43
      %s47 = sphi 0, %s44
      %s48 = sphi 0, %s45
      %s49 = sphi 0, %s46
      %s50 = sphi 0, %s47
      %s51 = sphi 0, %s48
      %s83 = sphi 0, %s85
      %s86 = sphi 0, %s83
      %s87 = sphi 0, %s86
      %s103 = sphi 0, %s87
      %s129 = sphi 0, %s131
      %s132 = sphi 0, %s129
      %s133 = sphi 0, %s132
      %s149 = sphi 0, %s133
      %s159 = sphi 0, %s161
      %s162 = sphi 0, %s159
      %s163 = sphi 0, %s162
      %s179 = sphi 0, %s163
      %s185 = sphi 0, %s187
      %s188 = sphi 0, %s185
      %s189 = sphi 0, %s188
      %s205 = sphi 0, %s189
      %s211 = sphi 0, %s213
      %s214 = sphi 0, %s211
      %s215 = sphi 0, %s214
      %s231 = sphi 0, %s215
      %s237 = sphi 0, %s239
      %s240 = sphi 0, %s237
      %s241 = sphi 0, %s240
      %s257 = sphi 0, %s241
      %s263 = sphi 0, %s265
      %s266 = sphi 0, %s263
      %s267 = sphi 0, %s266
      %s283 = sphi 0, %s267
      %s293 = sphi 0, %s295
      %s296 = sphi 0, %s293
      %s297 = sphi 0, %s296
      %s313 = sphi 0, %s297
    $region4: #{tpu_custom_call.1} parent=1 // loop_header_branch
      %39 = sbr.rel (%p37) target = $region8
    $region5: #{tpu_custom_call.1} parent=1 // loop_body
      %s41 = ssub.s32 %s36, 1
      %s42 = ssub.s32 %s36, 2
      %s52 = sadd.s32 1, %s45
      %p53 = scmp.ge.s32.totalorder %s52, 2
      %s54 = scalar_select %p53, 0, %s52
      %s55 = sadd.s32 1, %s44
      %s56 = scalar_select %p53, %s55, %s44
      %p57 = scmp.ge.s32.totalorder %s56, 4
      %s58 = scalar_select %p57, 0, %s56
      %s59 = sadd.s32 1, %s43
      %s60 = scalar_select %p57, %s59, %s43
      %p61 = scmp.ge.s32.totalorder %s60, 3
      %s62 = scalar_select %p61, 0, %s60
      %s63 = sshra.s32 %s45, 7
      %s64 = sand.u32 %s45, 127
      %s65 = sadd.s32 %s63, %s44
      %s66 = smul.u32 %s65, 128
      %s67 = sshra.s32 %s45, 7
      %s68 = sand.u32 %s45, 127
      %s69 = sadd.s32 %s66, %s68
      %s70 = sld [smem:[#allocation8 + %s69]]
      %s71 = sshra.s32 %s54, 7
      %s72 = sand.u32 %s54, 127
      %s73 = sadd.s32 %s71, %s58
      %s74 = smul.u32 %s73, 128
      %s75 = sshra.s32 %s54, 7
      %s76 = sand.u32 %s54, 127
      %s77 = sadd.s32 %s74, %s76
      %s78 = sld [smem:[#allocation8 + %s77]]
      %s79 = ssub.s32 %s44, %s58
      %s80 = ssub.s32 %s70, %s78
      %s81 = sor.u32 %s79, %s80
      %p82 = scmp.eq.s32.totalorder %s81, 0
      %s84 = sadd.s32 %s83, 1
      %s85 = scalar_select %p82, %s83, %s84
      %p88 = pneg %p82
      %p89 = scmp.eq.s32.totalorder %s36, 23
      %p90 = por %p88, %p89
      %p91 = scmp.ne.s32.totalorder %s83, %s86
      %p92 = scmp.eq.s32.totalorder %s36, 0
      %p93 = por %p91, %p92
      %p94 = scmp.ne.s32.totalorder %s83, %s86
      %p95 = scmp.eq.s32.totalorder %s41, 23
      %p96 = por %p94, %p95
      %p97 = scmp.ne.s32.totalorder %s86, %s87
      %p98 = scmp.eq.s32.totalorder %s41, 0
      %p99 = por %p97, %p98
      %p100 = scmp.ne.s32.totalorder %s86, %s87
      %p101 = scmp.eq.s32.totalorder %s42, 23
      %p102 = por %p100, %p101
      %p104 = scmp.ne.s32.totalorder %s87, %s103
      %p105 = scmp.eq.s32.totalorder %s42, 0
      %p106 = por %p104, %p105
      %p107 = scmp.eq.s32.totalorder %s43, 0
      %s108 = sshra.s32 %s45, 7
      %s109 = sand.u32 %s45, 127
      %s110 = sadd.s32 %s108, %s44
      %s111 = smul.u32 %s110, 128
      %s112 = sshra.s32 %s45, 7
      %s113 = sand.u32 %s45, 127
      %s114 = sadd.s32 %s111, %s113
      %s115 = sld [smem:[#allocation8 + %s114]]
      %s116 = scalar_select %p107, %s115, 0
      %p117 = scmp.eq.s32.totalorder %s62, 0
      %s118 = sshra.s32 %s54, 7
      %s119 = sand.u32 %s54, 127
      %s120 = sadd.s32 %s118, %s58
      %s121 = smul.u32 %s120, 128
      %s122 = sshra.s32 %s54, 7
      %s123 = sand.u32 %s54, 127
      %s124 = sadd.s32 %s121, %s123
      %s125 = sld [smem:[#allocation8 + %s124]]
      %s126 = scalar_select %p117, %s125, 0
      %s127 = ssub.s32 %s116, %s126
      %p128 = scmp.eq.s32.totalorder %s127, 0
      %s130 = sadd.s32 %s129, 1
      %s131 = scalar_select %p128, %s129, %s130
      %p134 = pneg %p128
      %p135 = scmp.eq.s32.totalorder %s36, 23
      %p136 = por %p134, %p135
      %p137 = scmp.ne.s32.totalorder %s129, %s132
      %p138 = scmp.eq.s32.totalorder %s36, 0
      %p139 = por %p137, %p138
      %p140 = scmp.ne.s32.totalorder %s129, %s132
      %p141 = scmp.eq.s32.totalorder %s41, 23
      %p142 = por %p140, %p141
      %p143 = scmp.ne.s32.totalorder %s132, %s133
      %p144 = scmp.eq.s32.totalorder %s41, 0
      %p145 = por %p143, %p144
      %p146 = scmp.ne.s32.totalorder %s132, %s133
      %p147 = scmp.eq.s32.totalorder %s42, 23
      %p148 = por %p146, %p147
      %p150 = scmp.ne.s32.totalorder %s133, %s149
      %p151 = scmp.eq.s32.totalorder %s42, 0
      %p152 = por %p150, %p151
      %p153 = scmp.eq.s32.totalorder %s43, 0
      %s154 = scalar_select %p153, %s44, 0
      %p155 = scmp.eq.s32.totalorder %s62, 0
      %s156 = scalar_select %p155, %s58, 0
      %s157 = ssub.s32 %s154, %s156
      %p158 = scmp.eq.s32.totalorder %s157, 0
      %s160 = sadd.s32 %s159, 1
      %s161 = scalar_select %p158, %s159, %s160
      %p164 = pneg %p158
      %p165 = scmp.eq.s32.totalorder %s36, 23
      %p166 = por %p164, %p165
      %p167 = scmp.ne.s32.totalorder %s159, %s162
      %p168 = scmp.eq.s32.totalorder %s36, 0
      %p169 = por %p167, %p168
      %p170 = scmp.ne.s32.totalorder %s159, %s162
      %p171 = scmp.eq.s32.totalorder %s41, 23
      %p172 = por %p170, %p171
      %p173 = scmp.ne.s32.totalorder %s162, %s163
      %p174 = scmp.eq.s32.totalorder %s41, 0
      %p175 = por %p173, %p174
      %p176 = scmp.ne.s32.totalorder %s162, %s163
      %p177 = scmp.eq.s32.totalorder %s42, 23
      %p178 = por %p176, %p177
      %p180 = scmp.ne.s32.totalorder %s163, %s179
      %p181 = scmp.eq.s32.totalorder %s42, 0
      %p182 = por %p180, %p181
      %s183 = ssub.s32 %s44, %s58
      %p184 = scmp.eq.s32.totalorder %s183, 0
      %s186 = sadd.s32 %s185, 1
      %s187 = scalar_select %p184, %s185, %s186
      %p190 = pneg %p184
      %p191 = scmp.eq.s32.totalorder %s36, 23
      %p192 = por %p190, %p191
      %p193 = scmp.ne.s32.totalorder %s185, %s188
      %p194 = scmp.eq.s32.totalorder %s36, 0
      %p195 = por %p193, %p194
      %p196 = scmp.ne.s32.totalorder %s185, %s188
      %p197 = scmp.eq.s32.totalorder %s41, 23
      %p198 = por %p196, %p197
      %p199 = scmp.ne.s32.totalorder %s188, %s189
      %p200 = scmp.eq.s32.totalorder %s41, 0
      %p201 = por %p199, %p200
      %p202 = scmp.ne.s32.totalorder %s188, %s189
      %p203 = scmp.eq.s32.totalorder %s42, 23
      %p204 = por %p202, %p203
      %p206 = scmp.ne.s32.totalorder %s189, %s205
      %p207 = scmp.eq.s32.totalorder %s42, 0
      %p208 = por %p206, %p207
      %s209 = ssub.s32 %s43, %s62
      %p210 = scmp.eq.s32.totalorder %s209, 0
      %s212 = sadd.s32 %s211, 1
      %s213 = scalar_select %p210, %s211, %s212
      %p216 = pneg %p210
      %p217 = scmp.eq.s32.totalorder %s36, 23
      %p218 = por %p216, %p217
      %p219 = scmp.ne.s32.totalorder %s211, %s214
      %p220 = scmp.eq.s32.totalorder %s36, 0
      %p221 = por %p219, %p220
      %p222 = scmp.ne.s32.totalorder %s211, %s214
      %p223 = scmp.eq.s32.totalorder %s41, 23
      %p224 = por %p222, %p223
      %p225 = scmp.ne.s32.totalorder %s214, %s215
      %p226 = scmp.eq.s32.totalorder %s41, 0
      %p227 = por %p225, %p226
      %p228 = scmp.ne.s32.totalorder %s214, %s215
      %p229 = scmp.eq.s32.totalorder %s42, 23
      %p230 = por %p228, %p229
      %p232 = scmp.ne.s32.totalorder %s215, %s231
      %p233 = scmp.eq.s32.totalorder %s42, 0
      %p234 = por %p232, %p233
      %s235 = ssub.s32 %s43, %s62
      %p236 = scmp.eq.s32.totalorder %s235, 0
      %s238 = sadd.s32 %s237, 1
      %s239 = scalar_select %p236, %s237, %s238
      %p242 = pneg %p236
      %p243 = scmp.eq.s32.totalorder %s36, 23
      %p244 = por %p242, %p243
      %p245 = scmp.ne.s32.totalorder %s237, %s240
      %p246 = scmp.eq.s32.totalorder %s36, 0
      %p247 = por %p245, %p246
      %p248 = scmp.ne.s32.totalorder %s237, %s240
      %p249 = scmp.eq.s32.totalorder %s41, 23
      %p250 = por %p248, %p249
      %p251 = scmp.ne.s32.totalorder %s240, %s241
      %p252 = scmp.eq.s32.totalorder %s41, 0
      %p253 = por %p251, %p252
      %p254 = scmp.ne.s32.totalorder %s240, %s241
      %p255 = scmp.eq.s32.totalorder %s42, 23
      %p256 = por %p254, %p255
      %p258 = scmp.ne.s32.totalorder %s241, %s257
      %p259 = scmp.eq.s32.totalorder %s42, 0
      %p260 = por %p258, %p259
      %s261 = ssub.s32 %s43, %s62
      %p262 = scmp.eq.s32.totalorder %s261, 0
      %s264 = sadd.s32 %s263, 1
      %s265 = scalar_select %p262, %s263, %s264
      %p268 = pneg %p262
      %p269 = scmp.eq.s32.totalorder %s36, 23
      %p270 = por %p268, %p269
      %p271 = scmp.ne.s32.totalorder %s263, %s266
      %p272 = scmp.eq.s32.totalorder %s36, 0
      %p273 = por %p271, %p272
      %p274 = scmp.ne.s32.totalorder %s263, %s266
      %p275 = scmp.eq.s32.totalorder %s41, 23
      %p276 = por %p274, %p275
      %p277 = scmp.ne.s32.totalorder %s266, %s267
      %p278 = scmp.eq.s32.totalorder %s41, 0
      %p279 = por %p277, %p278
      %p280 = scmp.ne.s32.totalorder %s266, %s267
      %p281 = scmp.eq.s32.totalorder %s42, 23
      %p282 = por %p280, %p281
      %p284 = scmp.ne.s32.totalorder %s267, %s283
      %p285 = scmp.eq.s32.totalorder %s42, 0
      %p286 = por %p284, %p285
      %p287 = scmp.eq.s32.totalorder %s43, 2
      %s288 = scalar_select %p287, %s44, 0
      %p289 = scmp.eq.s32.totalorder %s62, 2
      %s290 = scalar_select %p289, %s58, 0
      %s291 = ssub.s32 %s288, %s290
      %p292 = scmp.eq.s32.totalorder %s291, 0
      %s294 = sadd.s32 %s293, 1
      %s295 = scalar_select %p292, %s293, %s294
      %p298 = pneg %p292
      %p299 = scmp.eq.s32.totalorder %s36, 23
      %p300 = por %p298, %p299
      %p301 = scmp.ne.s32.totalorder %s293, %s296
      %p302 = scmp.eq.s32.totalorder %s36, 0
      %p303 = por %p301, %p302
      %p304 = scmp.ne.s32.totalorder %s293, %s296
      %p305 = scmp.eq.s32.totalorder %s41, 23
      %p306 = por %p304, %p305
      %p307 = scmp.ne.s32.totalorder %s296, %s297
      %p308 = scmp.eq.s32.totalorder %s41, 0
      %p309 = por %p307, %p308
      %p310 = scmp.ne.s32.totalorder %s296, %s297
      %p311 = scmp.eq.s32.totalorder %s42, 23
      %p312 = por %p310, %p311
      %p314 = scmp.ne.s32.totalorder %s297, %s313
      %p315 = scmp.eq.s32.totalorder %s42, 0
      %p316 = por %p314, %p315
      %p317 = scmp.le.s32.totalorder 1, %s36
      %p318 = scmp.lt.s32.totalorder %s36, 25
      %p319 = pnand %p317, %p318
      %p320 = pneg %p319
      // Predicated region
      $region9: #{tpu_custom_call.1} parent=5 // pred_check
        _
      $region10: #{tpu_custom_call.1} parent=5 // pred_check_branch
        %322 = sbr.rel (%p319) target = $region12
      $region11: #{tpu_custom_call.1} parent=5 // pred_region
        %s323 = ssub.s32 %s36, 1
      $region12: #{tpu_custom_call.1} parent=5 // pred_fallthru
        _
      %p324 = scmp.lt.s32.totalorder %s36, 24
      // Predicated region
      $region13: #{tpu_custom_call.1} parent=5 // pred_check
        %p325 = pneg %p324
      $region14: #{tpu_custom_call.1} parent=5 // pred_check_branch
        %327 = sbr.rel (%p325) target = $region16
      $region15: #{tpu_custom_call.1} parent=5 // pred_region
        // Predicated region
        $region17: #{tpu_custom_call.1} parent=15 // pred_check
          %p328 = pneg %p93
        $region18: #{tpu_custom_call.1} parent=15 // pred_check_branch
          %330 = sbr.rel (%p328) target = $region20
        $region19: #{tpu_custom_call.1} parent=15 // pred_region
          %s331 = sand.u32 %s83, 1
          %s332 = scalar_lea.sflag [#allocation11], %s331
          %s333 = sand.u32 %s83, 1
          %s334 = smul.addr %s333, 128
          %s335 = scalar_lea.vmem [#allocation10], %s334
          %s336 = sshra.s32 %s45, 7
          %s337 = sand.u32 %s45, 127
          %s338 = sadd.s32 %s336, %s44
          %s339 = smul.u32 %s338, 128
          %s340 = sshra.s32 %s45, 7
          %s341 = sand.u32 %s45, 127
          %s342 = sadd.s32 %s339, %s341
          %s343 = sld [smem:[#allocation8 + %s342]]
          %s344 = smul.u32 16, %s44
          %s345 = smul.u32 2, %s343
          %s347 = ssub.s32 2048, 2048
          %348 = vsyncadd %s332, %s347
          %s349 = smul.addr %s344, 4
          %s350 = sadd.s32 %s345, %s349
          %s351 = smul.addr %s350, 64
          %s352 = scalar_lea.hbm %s2, %s351
          %s353 = sshll.u32 %s335, 4
          %s354 = int_to_ptr.vmem [resolvable:$true] %s353
          %359 = dma.hbm_to_vmem [thread:$0]  %s352, 2048, %s354, %s332, 256, 128, 8
        $region20: #{tpu_custom_call.1} parent=15 // pred_fallthru
          _
        // Predicated region
        $region21: #{tpu_custom_call.1} parent=15 // pred_check
          %p360 = pneg %p139
        $region22: #{tpu_custom_call.1} parent=15 // pred_check_branch
          %362 = sbr.rel (%p360) target = $region24
        $region23: #{tpu_custom_call.1} parent=15 // pred_region
          %s363 = sand.u32 %s36, 1
          %s364 = scalar_lea.sflag [#allocation14], %s363
          %s365 = sand.u32 %s129, 1
          %s366 = smul.addr %s365, 128
          %s367 = scalar_lea.vmem [#allocation13], %s366
          %p368 = scmp.eq.s32.totalorder %s43, 0
          %s369 = sshra.s32 %s45, 7
          %s370 = sand.u32 %s45, 127
          %s371 = sadd.s32 %s369, %s44
          %s372 = smul.u32 %s371, 128
          %s373 = sshra.s32 %s45, 7
          %s374 = sand.u32 %s45, 127
          %s375 = sadd.s32 %s372, %s374
          %s376 = sld [smem:[#allocation8 + %s375]]
          %s377 = scalar_select %p368, %s376, 0
          %s378 = smul.u32 32, %s377
          %s380 = ssub.s32 2048, 2048
          %381 = vsyncadd %s364, %s380
          %s382 = smul.addr %s378, 64
          %s383 = scalar_lea.hbm %s3, %s382
          %s384 = sshll.u32 %s367, 4
          %s385 = int_to_ptr.vmem [resolvable:$true] %s384
          %390 = dma.hbm_to_vmem [thread:$0]  %s383, 2048, %s385, %s364, 64, 64, 4
        $region24: #{tpu_custom_call.1} parent=15 // pred_fallthru
          _
        // Predicated region
        $region25: #{tpu_custom_call.1} parent=15 // pred_check
          %p391 = pneg %p169
        $region26: #{tpu_custom_call.1} parent=15 // pred_check_branch
          %393 = sbr.rel (%p391) target = $region28
        $region27: #{tpu_custom_call.1} parent=15 // pred_region
          %s394 = sand.u32 %s36, 1
          %s395 = scalar_lea.sflag [#allocation14], %s394
          %s396 = sand.u32 %s159, 1
          %s397 = smul.addr %s396, 64
          %s398 = scalar_lea.vmem [#allocation15], %s397
          %p399 = scmp.eq.s32.totalorder %s43, 0
          %s400 = scalar_select %p399, %s44, 0
          %s401 = smul.u32 16, %s400
          %s403 = ssub.s32 1024, 1024
          %404 = vsyncadd %s395, %s403
          %s405 = smul.addr %s401, 64
          %s406 = scalar_lea.hbm %s4, %s405
          %s407 = sshll.u32 %s398, 4
          %s408 = int_to_ptr.vmem [resolvable:$true] %s407
          %413 = dma.hbm_to_vmem [thread:$0]  %s406, 1024, %s408, %s395, 64, 64, 4
        $region28: #{tpu_custom_call.1} parent=15 // pred_fallthru
          _
        // Predicated region
        $region29: #{tpu_custom_call.1} parent=15 // pred_check
          %p414 = pneg %p195
        $region30: #{tpu_custom_call.1} parent=15 // pred_check_branch
          %416 = sbr.rel (%p414) target = $region32
        $region31: #{tpu_custom_call.1} parent=15 // pred_region
          %s417 = sand.u32 %s36, 1
          %s418 = scalar_lea.sflag [#allocation17], %s417
          %s419 = sand.u32 %s185, 1
          %s420 = smul.addr %s419, 128
          %s421 = scalar_lea.vmem [#allocation16], %s420
          %s422 = smul.u32 16, %s44
          %s424 = ssub.s32 2048, 2048
          %425 = vsyncadd %s418, %s424
          %s426 = smul.addr %s422, 128
          %s427 = scalar_lea.hbm %s5, %s426
          %s428 = sshll.u32 %s421, 4
          %s429 = int_to_ptr.vmem [resolvable:$true] %s428
          %434 = dma.hbm_to_vmem [thread:$0]  %s427, 2048, %s429, %s418, 128, 128, 8
        $region32: #{tpu_custom_call.1} parent=15 // pred_fallthru
          _
        // Predicated region
        $region33: #{tpu_custom_call.1} parent=15 // pred_check
          %p435 = pneg %p221
        $region34: #{tpu_custom_call.1} parent=15 // pred_check_branch
          %437 = sbr.rel (%p435) target = $region36
        $region35: #{tpu_custom_call.1} parent=15 // pred_region
          %s438 = sand.u32 %s36, 1
          %s439 = scalar_lea.sflag [#allocation17], %s438
          %s440 = sand.u32 %s211, 1
          %s441 = smul.addr %s440, 128
          %s442 = scalar_lea.vmem [#allocation18], %s441
          %s444 = ssub.s32 2048, 2048
          %445 = vsyncadd %s439, %s444
          %s446 = smul.addr %s43, 32
          %s447 = smul.addr %s446, 64
          %s448 = scalar_lea.hbm %s6, %s447
          %s449 = sshll.u32 %s442, 4
          %s450 = int_to_ptr.vmem [resolvable:$true] %s449
          %455 = dma.hbm_to_vmem [thread:$0]  %s448, 2048, %s450, %s439, 64, 64, 4
        $region36: #{tpu_custom_call.1} parent=15 // pred_fallthru
          _
        // Predicated region
        $region37: #{tpu_custom_call.1} parent=15 // pred_check
          %p456 = pneg %p247
        $region38: #{tpu_custom_call.1} parent=15 // pred_check_branch
          %458 = sbr.rel (%p456) target = $region40
        $region39: #{tpu_custom_call.1} parent=15 // pred_region
          %s459 = sand.u32 %s36, 1
          %s460 = scalar_lea.sflag [#allocation20], %s459
          %s461 = sand.u32 %s237, 1
          %s462 = scalar_lea.vmem [#allocation19], %s461
          %s464 = ssub.s32 16, 16
          %465 = vsyncadd %s460, %s464
          %s466 = smul.addr %s43, 16
          %s467 = scalar_lea.hbm %s7, %s466
          %s469 = sshll.u32 %s462, 4
          %s470 = int_to_ptr.vmem [resolvable:$true] %s469
          %472 = dma.hbm_to_vmem [thread:$0]  %s467, 16, %s470, %s460
        $region40: #{tpu_custom_call.1} parent=15 // pred_fallthru
          _
        // Predicated region
        $region41: #{tpu_custom_call.1} parent=15 // pred_check
          %p473 = pneg %p273
        $region42: #{tpu_custom_call.1} parent=15 // pred_check_branch
          %475 = sbr.rel (%p473) target = $region44
        $region43: #{tpu_custom_call.1} parent=15 // pred_region
          %s476 = sand.u32 %s36, 1
          %s477 = scalar_lea.sflag [#allocation20], %s476
          %s478 = sand.u32 %s263, 1
          %s479 = smul.addr %s478, 128
          %s480 = scalar_lea.vmem [#allocation21], %s479
          %s482 = ssub.s32 2048, 2048
          %483 = vsyncadd %s477, %s482
          %s484 = smul.addr %s43, 32
          %s485 = smul.addr %s484, 64
          %s486 = scalar_lea.hbm %s8, %s485
          %s487 = sshll.u32 %s480, 4
          %s488 = int_to_ptr.vmem [resolvable:$true] %s487
          %493 = dma.hbm_to_vmem [thread:$0]  %s486, 2048, %s488, %s477, 128, 128, 8
        $region44: #{tpu_custom_call.1} parent=15 // pred_fallthru
          _
      $region16: #{tpu_custom_call.1} parent=5 // pred_fallthru
        _
      %p494 = scmp.le.s32.totalorder 1, %s36
      %p495 = scmp.lt.s32.totalorder %s36, 25
      %p496 = pnand %p494, %p495
      %p497 = pneg %p496
      // Predicated region
      $region45: #{tpu_custom_call.1} parent=5 // pred_check
        _
      $region46: #{tpu_custom_call.1} parent=5 // pred_check_branch
        %499 = sbr.rel (%p496) target = $region48
      $region47: #{tpu_custom_call.1} parent=5 // pred_region
        %s500 = ssub.s32 %s36, 1
        %s501 = sand.u32 %s86, 1
        %s502 = scalar_lea.sflag [#allocation11], %s501
        %s503 = sand.u32 %s86, 1
        %s504 = smul.addr %s503, 128
        %s505 = scalar_lea.vmem [#allocation10], %s504
        // Predicated region
        $region49: #{tpu_custom_call.1} parent=47 // pred_check
          %p506 = pneg %p99
        $region50: #{tpu_custom_call.1} parent=47 // pred_check_branch
          %508 = sbr.rel (%p506) target = $region52
        $region51: #{tpu_custom_call.1} parent=47 // pred_region
          %509 = dma.done %s502, 2048
        $region52: #{tpu_custom_call.1} parent=47 // pred_fallthru
          _
        %s510 = sand.u32 %s41, 1
        %s511 = scalar_lea.sflag [#allocation14], %s510
        %s512 = sand.u32 %s132, 1
        %s513 = smul.addr %s512, 128
        %s514 = scalar_lea.vmem [#allocation13], %s513
        // Predicated region
        $region53: #{tpu_custom_call.1} parent=47 // pred_check
          %p515 = pneg %p145
        $region54: #{tpu_custom_call.1} parent=47 // pred_check_branch
          %517 = sbr.rel (%p515) target = $region56
        $region55: #{tpu_custom_call.1} parent=47 // pred_region
          %518 = dma.done %s511, 2048
        $region56: #{tpu_custom_call.1} parent=47 // pred_fallthru
          _
        %s519 = sand.u32 %s41, 1
        %s520 = scalar_lea.sflag [#allocation14], %s519
        %s521 = sand.u32 %s162, 1
        %s522 = smul.addr %s521, 64
        %s523 = scalar_lea.vmem [#allocation15], %s522
        // Predicated region
        $region57: #{tpu_custom_call.1} parent=47 // pred_check
          %p524 = pneg %p175
        $region58: #{tpu_custom_call.1} parent=47 // pred_check_branch
          %526 = sbr.rel (%p524) target = $region60
        $region59: #{tpu_custom_call.1} parent=47 // pred_region
          %527 = dma.done %s520, 1024
        $region60: #{tpu_custom_call.1} parent=47 // pred_fallthru
          _
        %s528 = sand.u32 %s41, 1
        %s529 = scalar_lea.sflag [#allocation17], %s528
        %s530 = sand.u32 %s188, 1
        %s531 = smul.addr %s530, 128
        %s532 = scalar_lea.vmem [#allocation16], %s531
        // Predicated region
        $region61: #{tpu_custom_call.1} parent=47 // pred_check
          %p533 = pneg %p201
        $region62: #{tpu_custom_call.1} parent=47 // pred_check_branch
          %535 = sbr.rel (%p533) target = $region64
        $region63: #{tpu_custom_call.1} parent=47 // pred_region
          %536 = dma.done %s529, 2048
        $region64: #{tpu_custom_call.1} parent=47 // pred_fallthru
          _
        %s537 = sand.u32 %s41, 1
        %s538 = scalar_lea.sflag [#allocation17], %s537
        %s539 = sand.u32 %s214, 1
        %s540 = smul.addr %s539, 128
        %s541 = scalar_lea.vmem [#allocation18], %s540
        // Predicated region
        $region65: #{tpu_custom_call.1} parent=47 // pred_check
          %p542 = pneg %p227
        $region66: #{tpu_custom_call.1} parent=47 // pred_check_branch
          %544 = sbr.rel (%p542) target = $region68
        $region67: #{tpu_custom_call.1} parent=47 // pred_region
          %545 = dma.done %s538, 2048
        $region68: #{tpu_custom_call.1} parent=47 // pred_fallthru
          _
        %s546 = sand.u32 %s41, 1
        %s547 = scalar_lea.sflag [#allocation20], %s546
        %s548 = sand.u32 %s240, 1
        %s549 = scalar_lea.vmem [#allocation19], %s548
        // Predicated region
        $region69: #{tpu_custom_call.1} parent=47 // pred_check
          %p550 = pneg %p253
        $region70: #{tpu_custom_call.1} parent=47 // pred_check_branch
          %552 = sbr.rel (%p550) target = $region72
        $region71: #{tpu_custom_call.1} parent=47 // pred_region
          %553 = dma.done %s547, 16
        $region72: #{tpu_custom_call.1} parent=47 // pred_fallthru
          _
        %s554 = sand.u32 %s41, 1
        %s555 = scalar_lea.sflag [#allocation20], %s554
        %s556 = sand.u32 %s266, 1
        %s557 = smul.addr %s556, 128
        %s558 = scalar_lea.vmem [#allocation21], %s557
        // Predicated region
        $region73: #{tpu_custom_call.1} parent=47 // pred_check
          %p559 = pneg %p279
        $region74: #{tpu_custom_call.1} parent=47 // pred_check_branch
          %561 = sbr.rel (%p559) target = $region76
        $region75: #{tpu_custom_call.1} parent=47 // pred_region
          %562 = dma.done %s555, 2048
        $region76: #{tpu_custom_call.1} parent=47 // pred_fallthru
          _
        %s563 = sand.u32 %s86, 1
        %s564 = scalar_lea.sflag [#allocation11], %s563
        %s565 = sand.u32 %s86, 1
        %s566 = smul.addr %s565, 128
        %s567 = scalar_lea.vmem [#allocation10], %s566
        %p568 = pneg %p99
        %p569 = pneg %p96
        %s570 = sand.u32 %s41, 1
        %s571 = scalar_lea.sflag [#allocation14], %s570
        %s572 = sand.u32 %s132, 1
        %s573 = smul.addr %s572, 128
        %s574 = scalar_lea.vmem [#allocation13], %s573
        %p575 = pneg %p145
        %p576 = pneg %p142
        %s577 = sand.u32 %s41, 1
        %s578 = scalar_lea.sflag [#allocation14], %s577
        %s579 = sand.u32 %s162, 1
        %s580 = smul.addr %s579, 64
        %s581 = scalar_lea.vmem [#allocation15], %s580
        %p582 = pneg %p175
        %p583 = pneg %p172
        %s584 = sand.u32 %s41, 1
        %s585 = scalar_lea.sflag [#allocation17], %s584
        %s586 = sand.u32 %s188, 1
        %s587 = smul.addr %s586, 128
        %s588 = scalar_lea.vmem [#allocation16], %s587
        %p589 = pneg %p201
        %p590 = pneg %p198
        %s591 = sand.u32 %s41, 1
        %s592 = scalar_lea.sflag [#allocation17], %s591
        %s593 = sand.u32 %s214, 1
        %s594 = smul.addr %s593, 128
        %s595 = scalar_lea.vmem [#allocation18], %s594
        %p596 = pneg %p227
        %p597 = pneg %p224
        %s598 = sand.u32 %s41, 1
        %s599 = scalar_lea.sflag [#allocation20], %s598
        %s600 = sand.u32 %s240, 1
        %s601 = scalar_lea.vmem [#allocation19], %s600
        %p602 = pneg %p253
        %p603 = pneg %p250
        %s604 = sand.u32 %s41, 1
        %s605 = scalar_lea.sflag [#allocation20], %s604
        %s606 = sand.u32 %s266, 1
        %s607 = smul.addr %s606, 128
        %s608 = scalar_lea.vmem [#allocation21], %s607
        %p609 = pneg %p279
        %p610 = pneg %p276
        %p611 = pneg %p309
        %p612 = pneg %p306
        %s613 = sand.u32 %s296, 1
        %s614 = scalar_lea.sflag [#allocation12], %s613
        %s615 = sand.u32 %s296, 1
        %s616 = smul.addr %s615, 256
        %s617 = scalar_lea.vmem [#allocation22], %s616
        %s618 = sshra.s32 %s48, 7
        %s619 = sand.u32 %s48, 127
        %s620 = sadd.s32 %s618, %s47
        %s621 = smul.u32 %s620, 128
        %s622 = sshra.s32 %s48, 7
        %s623 = sand.u32 %s48, 127
        %s624 = sadd.s32 %s621, %s623
        %s625 = sld [smem:[#allocation8 + %s624]]
        %s626 = smul.u32 16, %s47
        %s627 = smul.u32 2, %s625
        %p628 = scmp.eq.s32.totalorder %s46, 0
        %s629 = sshra.s32 %s48, 7
        %s630 = sand.u32 %s48, 127
        %s631 = sadd.s32 %s629, %s47
        %s632 = smul.u32 %s631, 128
        %s633 = sshra.s32 %s48, 7
        %s634 = sand.u32 %s48, 127
        %s635 = sadd.s32 %s632, %s634
        %s636 = sld [smem:[#allocation8 + %s635]]
        %s637 = scalar_select %p628, %s636, 0
        %s638 = smul.u32 32, %s637
        %p639 = scmp.eq.s32.totalorder %s46, 0
        %s640 = scalar_select %p639, %s47, 0
        %s641 = smul.u32 16, %s640
        %s642 = smul.u32 16, %s47
        %p643 = scmp.eq.s32.totalorder %s46, 2
        %s644 = scalar_select %p643, %s47, 0
        %s645 = smul.u32 16, %s644
        %p647 = scmp.eq.s32.totalorder %s48, 0
        // Predicated region
        $region77: #{tpu_custom_call.1} parent=47 // pred_check
          %p648 = pneg %p647
        $region78: #{tpu_custom_call.1} parent=47 // pred_check_branch
          %650 = sbr.rel (%p648) target = $region80
        $region79: #{tpu_custom_call.1} parent=47 // pred_region
          %651 = vst [vmem:[#allocation2] sm:$0xff] 0.0
          %652 = vst [vmem:[#allocation2 + $0x8] sm:$0xff] 0.0
          %653 = vst [vmem:[#allocation2 + $0x10] sm:$0xff] 0.0
          %654 = vst [vmem:[#allocation2 + $0x18] sm:$0xff] 0.0
          %655 = vst [vmem:[#allocation2 + $0x20] sm:$0xff] 0.0
          %656 = vst [vmem:[#allocation2 + $0x28] sm:$0xff] 0.0
          %657 = vst [vmem:[#allocation2 + $0x30] sm:$0xff] 0.0
          %658 = vst [vmem:[#allocation2 + $0x38] sm:$0xff] 0.0
          %659 = vst [vmem:[#allocation2 + $0x40] sm:$0xff] 0.0
          %660 = vst [vmem:[#allocation2 + $0x48] sm:$0xff] 0.0
          %661 = vst [vmem:[#allocation2 + $0x50] sm:$0xff] 0.0
          %662 = vst [vmem:[#allocation2 + $0x58] sm:$0xff] 0.0
          %663 = vst [vmem:[#allocation2 + $0x60] sm:$0xff] 0.0
          %664 = vst [vmem:[#allocation2 + $0x68] sm:$0xff] 0.0
          %665 = vst [vmem:[#allocation2 + $0x70] sm:$0xff] 0.0
          %666 = vst [vmem:[#allocation2 + $0x78] sm:$0xff] 0.0
        $region80: #{tpu_custom_call.1} parent=47 // pred_fallthru
          _
        %s667 = sshra.s32 %s48, 7
        %s668 = sand.u32 %s48, 127
        %s669 = sadd.s32 %s667, %s47
        %s670 = smul.u32 %s669, 128
        %s671 = sshra.s32 %s48, 7
        %s672 = sand.u32 %s48, 127
        %s673 = sadd.s32 %s670, %s672
        %s674 = sld [smem:[#allocation8 + %s673]]
        %s675 = smul.u32 %s674, 256
        %s676 = sld [smem:[#allocation9 + %s47]]
        %p677 = scmp.lt.s32.totalorder %s48, %s676
        // Predicated region
        $region81: #{tpu_custom_call.1} parent=47 // pred_check
          %p678 = pneg %p677
        $region82: #{tpu_custom_call.1} parent=47 // pred_check_branch
          %680 = sbr.rel (%p678) target = $region84
        $region83: #{tpu_custom_call.1} parent=47 // pred_region
          %p681 = scmp.eq.s32.totalorder %s46, 0
          // Predicated region
          $region85: #{tpu_custom_call.1} parent=83 // pred_check
            %p682 = pneg %p681
          $region86: #{tpu_custom_call.1} parent=83 // pred_check_branch
            %684 = sbr.rel (%p682) target = $region88
          $region87: #{tpu_custom_call.1} parent=83 // pred_region
            %v685 = vld [vmem:[#allocation2] sm:$0xff]
            %v686 = vld [vmem:[#allocation2 + $0x8] sm:$0xff]
            %v687 = vld [vmem:[#allocation2 + $0x10] sm:$0xff]
            %v688 = vld [vmem:[#allocation2 + $0x18] sm:$0xff]
            %v689 = vld [vmem:[#allocation2 + $0x20] sm:$0xff]
            %v690 = vld [vmem:[#allocation2 + $0x28] sm:$0xff]
            %v691 = vld [vmem:[#allocation2 + $0x30] sm:$0xff]
            %v692 = vld [vmem:[#allocation2 + $0x38] sm:$0xff]
            %v693 = vld [vmem:[#allocation2 + $0x40] sm:$0xff]
            %v694 = vld [vmem:[#allocation2 + $0x48] sm:$0xff]
            %v695 = vld [vmem:[#allocation2 + $0x50] sm:$0xff]
            %v696 = vld [vmem:[#allocation2 + $0x58] sm:$0xff]
            %v697 = vld [vmem:[#allocation2 + $0x60] sm:$0xff]
            %v698 = vld [vmem:[#allocation2 + $0x68] sm:$0xff]
            %v699 = vld [vmem:[#allocation2 + $0x70] sm:$0xff]
            %v700 = vld [vmem:[#allocation2 + $0x78] sm:$0xff]
            %v701 = vld [vmem:[%s505] sm:$0xff]
            %v702 = vld [vmem:[%s505 + $0x8] sm:$0xff]
            %v703 = vld [vmem:[%s505 + $0x10] sm:$0xff]
            %v704 = vld [vmem:[%s505 + $0x18] sm:$0xff]
            %v705 = vld [vmem:[%s505 + $0x20] sm:$0xff]
            %v706 = vld [vmem:[%s505 + $0x28] sm:$0xff]
            %v707 = vld [vmem:[%s505 + $0x30] sm:$0xff]
            %v708 = vld [vmem:[%s505 + $0x38] sm:$0xff]
            %v709 = vld [vmem:[%s505 + $0x40] sm:$0xff]
            %v710 = vld [vmem:[%s505 + $0x48] sm:$0xff]
            %v711 = vld [vmem:[%s505 + $0x50] sm:$0xff]
            %v712 = vld [vmem:[%s505 + $0x58] sm:$0xff]
            %v713 = vld [vmem:[%s505 + $0x60] sm:$0xff]
            %v714 = vld [vmem:[%s505 + $0x68] sm:$0xff]
            %v715 = vld [vmem:[%s505 + $0x70] sm:$0xff]
            %v716 = vld [vmem:[%s505 + $0x78] sm:$0xff]
            %v717 = vld [vmem:[%s514] sm:$0xf]
            %v718 = vld [vmem:[%s514 + $0x4] sm:$0xf]
            %v719 = vld [vmem:[%s514 + $0x8] sm:$0xf]
            %v720 = vld [vmem:[%s514 + $0xc] sm:$0xf]
            %v721 = vld [vmem:[%s514 + $0x10] sm:$0xf]
            %v722 = vld [vmem:[%s514 + $0x14] sm:$0xf]
            %v723 = vld [vmem:[%s514 + $0x18] sm:$0xf]
            %v724 = vld [vmem:[%s514 + $0x1c] sm:$0xf]
            %v725 = vld [vmem:[%s514 + $0x20] sm:$0xf]
            %v726 = vld [vmem:[%s514 + $0x24] sm:$0xf]
            %v727 = vld [vmem:[%s514 + $0x28] sm:$0xf]
            %v728 = vld [vmem:[%s514 + $0x2c] sm:$0xf]
            %v729 = vld [vmem:[%s514 + $0x30] sm:$0xf]
            %v730 = vld [vmem:[%s514 + $0x34] sm:$0xf]
            %v731 = vld [vmem:[%s514 + $0x38] sm:$0xf]
            %v732 = vld [vmem:[%s514 + $0x3c] sm:$0xf]
            %v733 = vld [vmem:[%s514 + $0x40] sm:$0xf]
            %v734 = vld [vmem:[%s514 + $0x44] sm:$0xf]
            %v735 = vld [vmem:[%s514 + $0x48] sm:$0xf]
            %v736 = vld [vmem:[%s514 + $0x4c] sm:$0xf]
            %v737 = vld [vmem:[%s514 + $0x50] sm:$0xf]
            %v738 = vld [vmem:[%s514 + $0x54] sm:$0xf]
            %v739 = vld [vmem:[%s514 + $0x58] sm:$0xf]
            %v740 = vld [vmem:[%s514 + $0x5c] sm:$0xf]
            %v741 = vld [vmem:[%s514 + $0x60] sm:$0xf]
            %v742 = vld [vmem:[%s514 + $0x64] sm:$0xf]
            %v743 = vld [vmem:[%s514 + $0x68] sm:$0xf]
            %v744 = vld [vmem:[%s514 + $0x6c] sm:$0xf]
            %v745 = vld [vmem:[%s514 + $0x70] sm:$0xf]
            %v746 = vld [vmem:[%s514 + $0x74] sm:$0xf]
            %v747 = vld [vmem:[%s514 + $0x78] sm:$0xf]
            %v748 = vld [vmem:[%s514 + $0x7c] sm:$0xf]
            %v765 = vunpack.c.l.b16 %v701
            %v766 = vunpack.c.h.b16 %v701
            %v767 = vunpack.c.l.b16 %v702
            %v768 = vunpack.c.h.b16 %v702
            %v769 = vunpack.c.l.b16 %v703
            %v770 = vunpack.c.h.b16 %v703
            %v771 = vunpack.c.l.b16 %v704
            %v772 = vunpack.c.h.b16 %v704
            %v773 = vunpack.c.l.b16 %v705
            %v774 = vunpack.c.h.b16 %v705
            %v775 = vunpack.c.l.b16 %v706
            %v776 = vunpack.c.h.b16 %v706
            %v777 = vunpack.c.l.b16 %v707
            %v778 = vunpack.c.h.b16 %v707
            %v779 = vunpack.c.l.b16 %v708
            %v780 = vunpack.c.h.b16 %v708
            %v781 = vunpack.c.l.b16 %v709
            %v782 = vunpack.c.h.b16 %v709
            %v783 = vunpack.c.l.b16 %v710
            %v784 = vunpack.c.h.b16 %v710
            %v785 = vunpack.c.l.b16 %v711
            %v786 = vunpack.c.h.b16 %v711
            %v787 = vunpack.c.l.b16 %v712
            %v788 = vunpack.c.h.b16 %v712
            %v789 = vunpack.c.l.b16 %v713
            %v790 = vunpack.c.h.b16 %v713
            %v791 = vunpack.c.l.b16 %v714
            %v792 = vunpack.c.h.b16 %v714
            %v793 = vunpack.c.l.b16 %v715
            %v794 = vunpack.c.h.b16 %v715
            %v795 = vunpack.c.l.b16 %v716
            %v796 = vunpack.c.h.b16 %v716
            %v797 = vpack.c.b16 %v767, %v765
            %v798 = vpack.c.b16 %v768, %v766
            %v799 = vpack.c.b16 %v771, %v769
            %v800 = vpack.c.b16 %v772, %v770
            %v801 = vpack.c.b16 %v775, %v773
            %v802 = vpack.c.b16 %v776, %v774
            %v803 = vpack.c.b16 %v779, %v777
            %v804 = vpack.c.b16 %v780, %v778
            %v805 = vpack.c.b16 %v783, %v781
            %v806 = vpack.c.b16 %v784, %v782
            %v807 = vpack.c.b16 %v787, %v785
            %v808 = vpack.c.b16 %v788, %v786
            %v809 = vpack.c.b16 %v791, %v789
            %v810 = vpack.c.b16 %v792, %v790
            %v811 = vpack.c.b16 %v795, %v793
            %v812 = vpack.c.b16 %v796, %v794
            %v861 = vunpack.c.l.b16 %v717
            %v862 = vunpack.c.l.b16 %v718
            %v863 = vunpack.c.l.b16 %v719
            %v864 = vunpack.c.l.b16 %v720
            %v865 = vunpack.c.l.b16 %v721
            %v866 = vunpack.c.l.b16 %v722
            %v867 = vunpack.c.l.b16 %v723
            %v868 = vunpack.c.l.b16 %v724
            %v869 = vunpack.c.l.b16 %v725
            %v870 = vunpack.c.l.b16 %v726
            %v871 = vunpack.c.l.b16 %v727
            %v872 = vunpack.c.l.b16 %v728
            %v873 = vunpack.c.l.b16 %v729
            %v874 = vunpack.c.l.b16 %v730
            %v875 = vunpack.c.l.b16 %v731
            %v876 = vunpack.c.l.b16 %v732
            %v877 = vunpack.c.l.b16 %v733
            %v878 = vunpack.c.l.b16 %v734
            %v879 = vunpack.c.l.b16 %v735
            %v880 = vunpack.c.l.b16 %v736
            %v881 = vunpack.c.l.b16 %v737
            %v882 = vunpack.c.l.b16 %v738
            %v883 = vunpack.c.l.b16 %v739
            %v884 = vunpack.c.l.b16 %v740
            %v885 = vunpack.c.l.b16 %v741
            %v886 = vunpack.c.l.b16 %v742
            %v887 = vunpack.c.l.b16 %v743
            %v888 = vunpack.c.l.b16 %v744
            %v889 = vunpack.c.l.b16 %v745
            %v890 = vunpack.c.l.b16 %v746
            %v891 = vunpack.c.l.b16 %v747
            %v892 = vunpack.c.l.b16 %v748
            %v893 = vpack.c.b16 %v862, %v861
            %v894 = vpack.c.b16 %v864, %v863
            %v895 = vpack.c.b16 %v866, %v865
            %v896 = vpack.c.b16 %v868, %v867
            %v897 = vpack.c.b16 %v870, %v869
            %v898 = vpack.c.b16 %v872, %v871
            %v899 = vpack.c.b16 %v874, %v873
            %v900 = vpack.c.b16 %v876, %v875
            %v901 = vpack.c.b16 %v878, %v877
            %v902 = vpack.c.b16 %v880, %v879
            %v903 = vpack.c.b16 %v882, %v881
            %v904 = vpack.c.b16 %v884, %v883
            %v905 = vpack.c.b16 %v886, %v885
            %v906 = vpack.c.b16 %v888, %v887
            %v907 = vpack.c.b16 %v890, %v889
            %v908 = vpack.c.b16 %v892, %v891
            %925 = vmatprep.subr.bf16.mxu0 0
            %926 = vmatpush1.bf16.msra.mxu0 %v893
            %927 = vmatprep.subr.bf16.mxu0 0
            %928 = vmatpush1.bf16.msra.mxu0 %v894
            %929 = vmatprep.subr.bf16.mxu0 0
            %930 = vmatpush1.bf16.msra.mxu0 %v895
            %931 = vmatprep.subr.bf16.mxu0 0
            %932 = vmatpush1.bf16.msra.mxu0 %v896
            %933 = vmatprep.subr.bf16.mxu0 0
            %934 = vmatpush1.bf16.msra.mxu0 %v897
            %935 = vmatprep.subr.bf16.mxu0 0
            %936 = vmatpush1.bf16.msra.mxu0 %v898
            %937 = vmatprep.subr.bf16.mxu0 0
            %938 = vmatpush1.bf16.msra.mxu0 %v899
            %939 = vmatprep.subr.bf16.mxu0 0
            %940 = vmatpush1.bf16.msra.mxu0 %v900
            %941 = vmatprep.subr.bf16.mxu0 0
            %942 = vmatpush1.bf16.msra.mxu0 %v901
            %943 = vmatprep.subr.bf16.mxu0 0
            %944 = vmatpush1.bf16.msra.mxu0 %v902
            %945 = vmatprep.subr.bf16.mxu0 0
            %946 = vmatpush1.bf16.msra.mxu0 %v903
            %947 = vmatprep.subr.bf16.mxu0 0
            %948 = vmatpush1.bf16.msra.mxu0 %v904
            %949 = vmatprep.subr.bf16.mxu0 0
            %950 = vmatpush1.bf16.msra.mxu0 %v905
            %951 = vmatprep.subr.bf16.mxu0 0
            %952 = vmatpush1.bf16.msra.mxu0 %v906
            %953 = vmatprep.subr.bf16.mxu0 0
            %954 = vmatpush1.bf16.msra.mxu0 %v907
            %955 = vmatprep.subr.bf16.mxu0 0
            %956 = vmatpush1.bf16.msra.mxu0 %v908
            %957 = vmatprep.mubr.bf16.mxu0 %v798
            %958 = vmatmul.mubr.bf16.gmra.mrb[0].mxu0 %v797
            %v959 = vpop.f32.mrb[0].mxu0
            %v960 = vadd.f32 0.0, %v959
            %v961 = vpop.f32.mrb[0].mxu0
            %v962 = vpop.f32.mrb[0].mxu0
            %v963 = vadd.f32 0.0, %v962
            %v964 = vpop.f32.mrb[0].mxu0
            %965 = vmatprep.mubr.bf16.mxu0 %v800
            %966 = vmatmul.mubr.bf16.gmra.mrb[0].mxu0 %v799
            %v967 = vpop.f32.mrb[0].mxu0
            %v968 = vadd.f32 0.0, %v967
            %v969 = vpop.f32.mrb[0].mxu0
            %v970 = vpop.f32.mrb[0].mxu0
            %v971 = vadd.f32 0.0, %v970
            %v972 = vpop.f32.mrb[0].mxu0
            %973 = vmatprep.mubr.bf16.mxu0 %v802
            %974 = vmatmul.mubr.bf16.gmra.mrb[0].mxu0 %v801
            %v975 = vpop.f32.mrb[0].mxu0
            %v976 = vadd.f32 0.0, %v975
            %v977 = vpop.f32.mrb[0].mxu0
            %v978 = vpop.f32.mrb[0].mxu0
            %v979 = vadd.f32 0.0, %v978
            %v980 = vpop.f32.mrb[0].mxu0
            %981 = vmatprep.mubr.bf16.mxu0 %v804
            %982 = vmatmul.mubr.bf16.gmra.mrb[0].mxu0 %v803
            %v983 = vpop.f32.mrb[0].mxu0
            %v984 = vadd.f32 0.0, %v983
            %v985 = vpop.f32.mrb[0].mxu0
            %v986 = vpop.f32.mrb[0].mxu0
            %v987 = vadd.f32 0.0, %v986
            %v988 = vpop.f32.mrb[0].mxu0
            %989 = vmatprep.mubr.bf16.mxu0 %v806
            %990 = vmatmul.mubr.bf16.gmra.mrb[0].mxu0 %v805
            %v991 = vpop.f32.mrb[0].mxu0
            %v992 = vadd.f32 0.0, %v991
            %v993 = vpop.f32.mrb[0].mxu0
            %v994 = vpop.f32.mrb[0].mxu0
            %v995 = vadd.f32 0.0, %v994
            %v996 = vpop.f32.mrb[0].mxu0
            %997 = vmatprep.mubr.bf16.mxu0 %v808
            %998 = vmatmul.mubr.bf16.gmra.mrb[0].mxu0 %v807
            %v999 = vpop.f32.mrb[0].mxu0
            %v1000 = vadd.f32 0.0, %v999
            %v1001 = vpop.f32.mrb[0].mxu0
            %v1002 = vpop.f32.mrb[0].mxu0
            %v1003 = vadd.f32 0.0, %v1002
            %v1004 = vpop.f32.mrb[0].mxu0
            %1005 = vmatprep.mubr.bf16.mxu0 %v810
            %1006 = vmatmul.mubr.bf16.gmra.mrb[0].mxu0 %v809
            %v1007 = vpop.f32.mrb[0].mxu0
            %v1008 = vadd.f32 0.0, %v1007
            %v1009 = vpop.f32.mrb[0].mxu0
            %v1010 = vpop.f32.mrb[0].mxu0
            %v1011 = vadd.f32 0.0, %v1010
            %v1012 = vpop.f32.mrb[0].mxu0
            %1013 = vmatprep.mubr.bf16.mxu0 %v812
            %1014 = vmatmul.mubr.bf16.gmra.mrb[0].mxu0 %v811
            %v1015 = vpop.f32.mrb[0].mxu0
            %v1016 = vadd.f32 0.0, %v1015
            %v1017 = vpop.f32.mrb[0].mxu0
            %v1018 = vpop.f32.mrb[0].mxu0
            %v1019 = vadd.f32 0.0, %v1018
            %v1020 = vpop.f32.mrb[0].mxu0
            %1021 = vdwg.mxu0
            %v1022 = vadd.f32 %v685, %v960
            %v1023 = vadd.f32 %v686, %v963
            %v1024 = vadd.f32 %v687, %v968
            %v1025 = vadd.f32 %v688, %v971
            %v1026 = vadd.f32 %v689, %v976
            %v1027 = vadd.f32 %v690, %v979
            %v1028 = vadd.f32 %v691, %v984
            %v1029 = vadd.f32 %v692, %v987
            %v1030 = vadd.f32 %v693, %v992
            %v1031 = vadd.f32 %v694, %v995
            %v1032 = vadd.f32 %v695, %v1000
            %v1033 = vadd.f32 %v696, %v1003
            %v1034 = vadd.f32 %v697, %v1008
            %v1035 = vadd.f32 %v698, %v1011
            %v1036 = vadd.f32 %v699, %v1016
            %v1037 = vadd.f32 %v700, %v1019
            %1038 = vst [vmem:[#allocation2] sm:$0xff] %v1022
            %1039 = vst [vmem:[#allocation2 + $0x8] sm:$0xff] %v1023
            %1040 = vst [vmem:[#allocation2 + $0x10] sm:$0xff] %v1024
            %1041 = vst [vmem:[#allocation2 + $0x18] sm:$0xff] %v1025
            %1042 = vst [vmem:[#allocation2 + $0x20] sm:$0xff] %v1026
            %1043 = vst [vmem:[#allocation2 + $0x28] sm:$0xff] %v1027
            %1044 = vst [vmem:[#allocation2 + $0x30] sm:$0xff] %v1028
            %1045 = vst [vmem:[#allocation2 + $0x38] sm:$0xff] %v1029
            %1046 = vst [vmem:[#allocation2 + $0x40] sm:$0xff] %v1030
            %1047 = vst [vmem:[#allocation2 + $0x48] sm:$0xff] %v1031
            %1048 = vst [vmem:[#allocation2 + $0x50] sm:$0xff] %v1032
            %1049 = vst [vmem:[#allocation2 + $0x58] sm:$0xff] %v1033
            %1050 = vst [vmem:[#allocation2 + $0x60] sm:$0xff] %v1034
            %1051 = vst [vmem:[#allocation2 + $0x68] sm:$0xff] %v1035
            %1052 = vst [vmem:[#allocation2 + $0x70] sm:$0xff] %v1036
            %1053 = vst [vmem:[#allocation2 + $0x78] sm:$0xff] %v1037
          $region88: #{tpu_custom_call.1} parent=83 // pred_fallthru
            _
          %p1054 = scmp.lt.s32.totalorder %s46, 0
          %s1055 = ssub.s32 0, %s46
          %s1056 = scalar_select %p1054, %s1055, %s46
          %s1057 = sand.u32 %s1056, 1
          %s1058 = ssub.s32 0, %s1057
          %s1059 = scalar_select %p1054, %s1058, %s1057
          %p1060 = scmp.ne.s32.totalorder %s1059, 0
          %p1061 = scmp.lt.s32.totalorder %s1059, 0
          %p1062 = pnand %p1061, %p1060
          %p1063 = pneg %p1062
          %s1064 = sadd.s32 %s1059, 2
          %s1065 = scalar_select %p1063, %s1064, %s1059
          %p1066 = scmp.eq.s32.totalorder %s1065, 1
          // Predicated region
          $region89: #{tpu_custom_call.1} parent=83 // pred_check
            %p1067 = pneg %p1066
          $region90: #{tpu_custom_call.1} parent=83 // pred_check_branch
            %1069 = sbr.rel (%p1067) target = $region92
          $region91: #{tpu_custom_call.1} parent=83 // pred_region
            %v1070 = vld [vmem:[#allocation2] sm:$0xff]
            %v1071 = vld [vmem:[#allocation2 + $0x8] sm:$0xff]
            %v1072 = vld [vmem:[#allocation2 + $0x10] sm:$0xff]
            %v1073 = vld [vmem:[#allocation2 + $0x18] sm:$0xff]
            %v1074 = vld [vmem:[#allocation2 + $0x20] sm:$0xff]
            %v1075 = vld [vmem:[#allocation2 + $0x28] sm:$0xff]
            %v1076 = vld [vmem:[#allocation2 + $0x30] sm:$0xff]
            %v1077 = vld [vmem:[#allocation2 + $0x38] sm:$0xff]
            %v1078 = vld [vmem:[#allocation2 + $0x40] sm:$0xff]
            %v1079 = vld [vmem:[#allocation2 + $0x48] sm:$0xff]
            %v1080 = vld [vmem:[#allocation2 + $0x50] sm:$0xff]
            %v1081 = vld [vmem:[#allocation2 + $0x58] sm:$0xff]
            %v1082 = vld [vmem:[#allocation2 + $0x60] sm:$0xff]
            %v1083 = vld [vmem:[#allocation2 + $0x68] sm:$0xff]
            %v1084 = vld [vmem:[#allocation2 + $0x70] sm:$0xff]
            %v1085 = vld [vmem:[#allocation2 + $0x78] sm:$0xff]
            %v1086 = vld [vmem:[%s505] sm:$0xff]
            %v1087 = vld [vmem:[%s505 + $0x8] sm:$0xff]
            %v1088 = vld [vmem:[%s505 + $0x10] sm:$0xff]
            %v1089 = vld [vmem:[%s505 + $0x18] sm:$0xff]
            %v1090 = vld [vmem:[%s505 + $0x20] sm:$0xff]
            %v1091 = vld [vmem:[%s505 + $0x28] sm:$0xff]
            %v1092 = vld [vmem:[%s505 + $0x30] sm:$0xff]
            %v1093 = vld [vmem:[%s505 + $0x38] sm:$0xff]
            %v1094 = vld [vmem:[%s505 + $0x40] sm:$0xff]
            %v1095 = vld [vmem:[%s505 + $0x48] sm:$0xff]
            %v1096 = vld [vmem:[%s505 + $0x50] sm:$0xff]
            %v1097 = vld [vmem:[%s505 + $0x58] sm:$0xff]
            %v1098 = vld [vmem:[%s505 + $0x60] sm:$0xff]
            %v1099 = vld [vmem:[%s505 + $0x68] sm:$0xff]
            %v1100 = vld [vmem:[%s505 + $0x70] sm:$0xff]
            %v1101 = vld [vmem:[%s505 + $0x78] sm:$0xff]
            %s1102 = sshra.s32 %s675, 4
            %s1103 = sand.u32 %s675, 15
            %s1104 = smul.addr %s1102, 8
            %s1105 = scalar_lea.vmem [#allocation4], %s1104
            %v1106 = vld [vmem:[%s1105] sm:$0xff]
            %v1107 = vld [vmem:[%s1105 + $0x8] sm:$0xff]
            %v1108 = vld [vmem:[%s1105 + $0x10] sm:$0xff]
            %v1109 = vld [vmem:[%s1105 + $0x18] sm:$0xff]
            %v1110 = vld [vmem:[%s1105 + $0x20] sm:$0xff]
            %v1111 = vld [vmem:[%s1105 + $0x28] sm:$0xff]
            %v1112 = vld [vmem:[%s1105 + $0x30] sm:$0xff]
            %v1113 = vld [vmem:[%s1105 + $0x38] sm:$0xff]
            %v1114 = vld [vmem:[%s1105 + $0x40] sm:$0xff]
            %v1115 = vld [vmem:[%s1105 + $0x48] sm:$0xff]
            %v1116 = vld [vmem:[%s1105 + $0x50] sm:$0xff]
            %v1117 = vld [vmem:[%s1105 + $0x58] sm:$0xff]
            %v1118 = vld [vmem:[%s1105 + $0x60] sm:$0xff]
            %v1119 = vld [vmem:[%s1105 + $0x68] sm:$0xff]
            %v1120 = vld [vmem:[%s1105 + $0x70] sm:$0xff]
            %v1121 = vld [vmem:[%s1105 + $0x78] sm:$0xff]
            %v1138 = vunpack.c.l.b16 %v1086
            %v1139 = vunpack.c.h.b16 %v1086
            %v1140 = vunpack.c.l.b16 %v1087
            %v1141 = vunpack.c.h.b16 %v1087
            %v1142 = vunpack.c.l.b16 %v1088
            %v1143 = vunpack.c.h.b16 %v1088
            %v1144 = vunpack.c.l.b16 %v1089
            %v1145 = vunpack.c.h.b16 %v1089
            %v1146 = vunpack.c.l.b16 %v1090
            %v1147 = vunpack.c.h.b16 %v1090
            %v1148 = vunpack.c.l.b16 %v1091
            %v1149 = vunpack.c.h.b16 %v1091
            %v1150 = vunpack.c.l.b16 %v1092
            %v1151 = vunpack.c.h.b16 %v1092
            %v1152 = vunpack.c.l.b16 %v1093
            %v1153 = vunpack.c.h.b16 %v1093
            %v1154 = vunpack.c.l.b16 %v1094
            %v1155 = vunpack.c.h.b16 %v1094
            %v1156 = vunpack.c.l.b16 %v1095
            %v1157 = vunpack.c.h.b16 %v1095
            %v1158 = vunpack.c.l.b16 %v1096
            %v1159 = vunpack.c.h.b16 %v1096
            %v1160 = vunpack.c.l.b16 %v1097
            %v1161 = vunpack.c.h.b16 %v1097
            %v1162 = vunpack.c.l.b16 %v1098
            %v1163 = vunpack.c.h.b16 %v1098
            %v1164 = vunpack.c.l.b16 %v1099
            %v1165 = vunpack.c.h.b16 %v1099
            %v1166 = vunpack.c.l.b16 %v1100
            %v1167 = vunpack.c.h.b16 %v1100
            %v1168 = vunpack.c.l.b16 %v1101
            %v1169 = vunpack.c.h.b16 %v1101
            %v1170 = vpack.c.b16 %v1140, %v1138
            %v1171 = vpack.c.b16 %v1141, %v1139
            %v1172 = vpack.c.b16 %v1144, %v1142
            %v1173 = vpack.c.b16 %v1145, %v1143
            %v1174 = vpack.c.b16 %v1148, %v1146
            %v1175 = vpack.c.b16 %v1149, %v1147
            %v1176 = vpack.c.b16 %v1152, %v1150
            %v1177 = vpack.c.b16 %v1153, %v1151
            %v1178 = vpack.c.b16 %v1156, %v1154
            %v1179 = vpack.c.b16 %v1157, %v1155
            %v1180 = vpack.c.b16 %v1160, %v1158
            %v1181 = vpack.c.b16 %v1161, %v1159
            %v1182 = vpack.c.b16 %v1164, %v1162
            %v1183 = vpack.c.b16 %v1165, %v1163
            %v1184 = vpack.c.b16 %v1168, %v1166
            %v1185 = vpack.c.b16 %v1169, %v1167
            %1202 = vmatprep.subr.bf16.mxu0 0
            %1203 = vmatpush1.bf16.msra.mxu0 %v1106
            %1204 = vmatprep.subr.bf16.mxu0 0
            %1205 = vmatpush1.bf16.msra.mxu0 %v1107
            %1206 = vmatprep.subr.bf16.mxu0 0
            %1207 = vmatpush1.bf16.msra.mxu0 %v1108
            %1208 = vmatprep.subr.bf16.mxu0 0
            %1209 = vmatpush1.bf16.msra.mxu0 %v1109
            %1210 = vmatprep.subr.bf16.mxu0 0
            %1211 = vmatpush1.bf16.msra.mxu0 %v1110
            %1212 = vmatprep.subr.bf16.mxu0 0
            %1213 = vmatpush1.bf16.msra.mxu0 %v1111
            %1214 = vmatprep.subr.bf16.mxu0 0
            %1215 = vmatpush1.bf16.msra.mxu0 %v1112
            %1216 = vmatprep.subr.bf16.mxu0 0
            %1217 = vmatpush1.bf16.msra.mxu0 %v1113
            %1218 = vmatprep.subr.bf16.mxu0 0
            %1219 = vmatpush1.bf16.msra.mxu0 %v1114
            %1220 = vmatprep.subr.bf16.mxu0 0
            %1221 = vmatpush1.bf16.msra.mxu0 %v1115
            %1222 = vmatprep.subr.bf16.mxu0 0
            %1223 = vmatpush1.bf16.msra.mxu0 %v1116
            %1224 = vmatprep.subr.bf16.mxu0 0
            %1225 = vmatpush1.bf16.msra.mxu0 %v1117
            %1226 = vmatprep.subr.bf16.mxu0 0
            %1227 = vmatpush1.bf16.msra.mxu0 %v1118
            %1228 = vmatprep.subr.bf16.mxu0 0
            %1229 = vmatpush1.bf16.msra.mxu0 %v1119
            %1230 = vmatprep.subr.bf16.mxu0 0
            %1231 = vmatpush1.bf16.msra.mxu0 %v1120
            %1232 = vmatprep.subr.bf16.mxu0 0
            %1233 = vmatpush1.bf16.msra.mxu0 %v1121
            %1234 = vmatprep.mubr.bf16.mxu0 %v1171
            %1235 = vmatmul.mubr.bf16.gmra.mrb[0].mxu0 %v1170
            %v1236 = vpop.f32.mrb[0].mxu0
            %v1237 = vadd.f32 0.0, %v1236
            %v1238 = vpop.f32.mrb[0].mxu0
            %v1239 = vpop.f32.mrb[0].mxu0
            %v1240 = vadd.f32 0.0, %v1239
            %v1241 = vpop.f32.mrb[0].mxu0
            %1242 = vmatprep.mubr.bf16.mxu0 %v1173
            %1243 = vmatmul.mubr.bf16.gmra.mrb[0].mxu0 %v1172
            %v1244 = vpop.f32.mrb[0].mxu0
            %v1245 = vadd.f32 0.0, %v1244
            %v1246 = vpop.f32.mrb[0].mxu0
            %v1247 = vpop.f32.mrb[0].mxu0
            %v1248 = vadd.f32 0.0, %v1247
            %v1249 = vpop.f32.mrb[0].mxu0
            %1250 = vmatprep.mubr.bf16.mxu0 %v1175
            %1251 = vmatmul.mubr.bf16.gmra.mrb[0].mxu0 %v1174
            %v1252 = vpop.f32.mrb[0].mxu0
            %v1253 = vadd.f32 0.0, %v1252
            %v1254 = vpop.f32.mrb[0].mxu0
            %v1255 = vpop.f32.mrb[0].mxu0
            %v1256 = vadd.f32 0.0, %v1255
            %v1257 = vpop.f32.mrb[0].mxu0
            %1258 = vmatprep.mubr.bf16.mxu0 %v1177
            %1259 = vmatmul.mubr.bf16.gmra.mrb[0].mxu0 %v1176
            %v1260 = vpop.f32.mrb[0].mxu0
            %v1261 = vadd.f32 0.0, %v1260
            %v1262 = vpop.f32.mrb[0].mxu0
            %v1263 = vpop.f32.mrb[0].mxu0
            %v1264 = vadd.f32 0.0, %v1263
            %v1265 = vpop.f32.mrb[0].mxu0
            %1266 = vmatprep.mubr.bf16.mxu0 %v1179
            %1267 = vmatmul.mubr.bf16.gmra.mrb[0].mxu0 %v1178
            %v1268 = vpop.f32.mrb[0].mxu0
            %v1269 = vadd.f32 0.0, %v1268
            %v1270 = vpop.f32.mrb[0].mxu0
            %v1271 = vpop.f32.mrb[0].mxu0
            %v1272 = vadd.f32 0.0, %v1271
            %v1273 = vpop.f32.mrb[0].mxu0
            %1274 = vmatprep.mubr.bf16.mxu0 %v1181
            %1275 = vmatmul.mubr.bf16.gmra.mrb[0].mxu0 %v1180
            %v1276 = vpop.f32.mrb[0].mxu0
            %v1277 = vadd.f32 0.0, %v1276
            %v1278 = vpop.f32.mrb[0].mxu0
            %v1279 = vpop.f32.mrb[0].mxu0
            %v1280 = vadd.f32 0.0, %v1279
            %v1281 = vpop.f32.mrb[0].mxu0
            %1282 = vmatprep.mubr.bf16.mxu0 %v1183
            %1283 = vmatmul.mubr.bf16.gmra.mrb[0].mxu0 %v1182
            %v1284 = vpop.f32.mrb[0].mxu0
            %v1285 = vadd.f32 0.0, %v1284
            %v1286 = vpop.f32.mrb[0].mxu0
            %v1287 = vpop.f32.mrb[0].mxu0
            %v1288 = vadd.f32 0.0, %v1287
            %v1289 = vpop.f32.mrb[0].mxu0
            %1290 = vmatprep.mubr.bf16.mxu0 %v1185
            %1291 = vmatmul.mubr.bf16.gmra.mrb[0].mxu0 %v1184
            %v1292 = vpop.f32.mrb[0].mxu0
            %v1293 = vadd.f32 0.0, %v1292
            %v1294 = vpop.f32.mrb[0].mxu0
            %v1295 = vpop.f32.mrb[0].mxu0
            %v1296 = vadd.f32 0.0, %v1295
            %v1297 = vpop.f32.mrb[0].mxu0
            %1298 = vdwg.mxu0
            %v1299 = vadd.f32 %v1070, %v1237
            %v1300 = vadd.f32 %v1071, %v1240
            %v1301 = vadd.f32 %v1072, %v1245
            %v1302 = vadd.f32 %v1073, %v1248
            %v1303 = vadd.f32 %v1074, %v1253
            %v1304 = vadd.f32 %v1075, %v1256
            %v1305 = vadd.f32 %v1076, %v1261
            %v1306 = vadd.f32 %v1077, %v1264
            %v1307 = vadd.f32 %v1078, %v1269
            %v1308 = vadd.f32 %v1079, %v1272
            %v1309 = vadd.f32 %v1080, %v1277
            %v1310 = vadd.f32 %v1081, %v1280
            %v1311 = vadd.f32 %v1082, %v1285
            %v1312 = vadd.f32 %v1083, %v1288
            %v1313 = vadd.f32 %v1084, %v1293
            %v1314 = vadd.f32 %v1085, %v1296
            %1315 = vst [vmem:[#allocation2] sm:$0xff] %v1299
            %1316 = vst [vmem:[#allocation2 + $0x8] sm:$0xff] %v1300
            %1317 = vst [vmem:[#allocation2 + $0x10] sm:$0xff] %v1301
            %1318 = vst [vmem:[#allocation2 + $0x18] sm:$0xff] %v1302
            %1319 = vst [vmem:[#allocation2 + $0x20] sm:$0xff] %v1303
            %1320 = vst [vmem:[#allocation2 + $0x28] sm:$0xff] %v1304
            %1321 = vst [vmem:[#allocation2 + $0x30] sm:$0xff] %v1305
            %1322 = vst [vmem:[#allocation2 + $0x38] sm:$0xff] %v1306
            %1323 = vst [vmem:[#allocation2 + $0x40] sm:$0xff] %v1307
            %1324 = vst [vmem:[#allocation2 + $0x48] sm:$0xff] %v1308
            %1325 = vst [vmem:[#allocation2 + $0x50] sm:$0xff] %v1309
            %1326 = vst [vmem:[#allocation2 + $0x58] sm:$0xff] %v1310
            %1327 = vst [vmem:[#allocation2 + $0x60] sm:$0xff] %v1311
            %1328 = vst [vmem:[#allocation2 + $0x68] sm:$0xff] %v1312
            %1329 = vst [vmem:[#allocation2 + $0x70] sm:$0xff] %v1313
            %1330 = vst [vmem:[#allocation2 + $0x78] sm:$0xff] %v1314
          $region92: #{tpu_custom_call.1} parent=83 // pred_fallthru
            _
          %p1331 = scmp.ne.s32.totalorder %s46, 0
          %p1332 = scmp.eq.s32.totalorder %s1065, 0
          %p1333 = pnand %p1331, %p1332
          %p1334 = pneg %p1333
          // Predicated region
          $region93: #{tpu_custom_call.1} parent=83 // pred_check
            _
          $region94: #{tpu_custom_call.1} parent=83 // pred_check_branch
            %1336 = sbr.rel (%p1333) target = $region96
          $region95: #{tpu_custom_call.1} parent=83 // pred_region
            %v1337 = vld [vmem:[#allocation2] sm:$0xff]
            %v1338 = vld [vmem:[#allocation2 + $0x8] sm:$0xff]
            %v1339 = vld [vmem:[#allocation2 + $0x10] sm:$0xff]
            %v1340 = vld [vmem:[#allocation2 + $0x18] sm:$0xff]
            %v1341 = vld [vmem:[#allocation2 + $0x20] sm:$0xff]
            %v1342 = vld [vmem:[#allocation2 + $0x28] sm:$0xff]
            %v1343 = vld [vmem:[#allocation2 + $0x30] sm:$0xff]
            %v1344 = vld [vmem:[#allocation2 + $0x38] sm:$0xff]
            %v1345 = vld [vmem:[#allocation2 + $0x40] sm:$0xff]
            %v1346 = vld [vmem:[#allocation2 + $0x48] sm:$0xff]
            %v1347 = vld [vmem:[#allocation2 + $0x50] sm:$0xff]
            %v1348 = vld [vmem:[#allocation2 + $0x58] sm:$0xff]
            %v1349 = vld [vmem:[#allocation2 + $0x60] sm:$0xff]
            %v1350 = vld [vmem:[#allocation2 + $0x68] sm:$0xff]
            %v1351 = vld [vmem:[#allocation2 + $0x70] sm:$0xff]
            %v1352 = vld [vmem:[#allocation2 + $0x78] sm:$0xff]
            %v1353 = vld [vmem:[%s505] sm:$0xff]
            %v1354 = vld [vmem:[%s505 + $0x8] sm:$0xff]
            %v1355 = vld [vmem:[%s505 + $0x10] sm:$0xff]
            %v1356 = vld [vmem:[%s505 + $0x18] sm:$0xff]
            %v1357 = vld [vmem:[%s505 + $0x20] sm:$0xff]
            %v1358 = vld [vmem:[%s505 + $0x28] sm:$0xff]
            %v1359 = vld [vmem:[%s505 + $0x30] sm:$0xff]
            %v1360 = vld [vmem:[%s505 + $0x38] sm:$0xff]
            %v1361 = vld [vmem:[%s505 + $0x40] sm:$0xff]
            %v1362 = vld [vmem:[%s505 + $0x48] sm:$0xff]
            %v1363 = vld [vmem:[%s505 + $0x50] sm:$0xff]
            %v1364 = vld [vmem:[%s505 + $0x58] sm:$0xff]
            %v1365 = vld [vmem:[%s505 + $0x60] sm:$0xff]
            %v1366 = vld [vmem:[%s505 + $0x68] sm:$0xff]
            %v1367 = vld [vmem:[%s505 + $0x70] sm:$0xff]
            %v1368 = vld [vmem:[%s505 + $0x78] sm:$0xff]
            %s1369 = sshra.s32 %s675, 4
            %s1370 = sand.u32 %s675, 15
            %s1371 = smul.addr %s1369, 8
            %s1372 = scalar_lea.vmem [#allocation5], %s1371
            %v1373 = vld [vmem:[%s1372] sm:$0xff]
            %v1374 = vld [vmem:[%s1372 + $0x8] sm:$0xff]
            %v1375 = vld [vmem:[%s1372 + $0x10] sm:$0xff]
            %v1376 = vld [vmem:[%s1372 + $0x18] sm:$0xff]
            %v1377 = vld [vmem:[%s1372 + $0x20] sm:$0xff]
            %v1378 = vld [vmem:[%s1372 + $0x28] sm:$0xff]
            %v1379 = vld [vmem:[%s1372 + $0x30] sm:$0xff]
            %v1380 = vld [vmem:[%s1372 + $0x38] sm:$0xff]
            %v1381 = vld [vmem:[%s1372 + $0x40] sm:$0xff]
            %v1382 = vld [vmem:[%s1372 + $0x48] sm:$0xff]
            %v1383 = vld [vmem:[%s1372 + $0x50] sm:$0xff]
            %v1384 = vld [vmem:[%s1372 + $0x58] sm:$0xff]
            %v1385 = vld [vmem:[%s1372 + $0x60] sm:$0xff]
            %v1386 = vld [vmem:[%s1372 + $0x68] sm:$0xff]
            %v1387 = vld [vmem:[%s1372 + $0x70] sm:$0xff]
            %v1388 = vld [vmem:[%s1372 + $0x78] sm:$0xff]
            %v1405 = vunpack.c.l.b16 %v1353
            %v1406 = vunpack.c.h.b16 %v1353
            %v1407 = vunpack.c.l.b16 %v1354
            %v1408 = vunpack.c.h.b16 %v1354
            %v1409 = vunpack.c.l.b16 %v1355
            %v1410 = vunpack.c.h.b16 %v1355
            %v1411 = vunpack.c.l.b16 %v1356
            %v1412 = vunpack.c.h.b16 %v1356
            %v1413 = vunpack.c.l.b16 %v1357
            %v1414 = vunpack.c.h.b16 %v1357
            %v1415 = vunpack.c.l.b16 %v1358
            %v1416 = vunpack.c.h.b16 %v1358
            %v1417 = vunpack.c.l.b16 %v1359
            %v1418 = vunpack.c.h.b16 %v1359
            %v1419 = vunpack.c.l.b16 %v1360
            %v1420 = vunpack.c.h.b16 %v1360
            %v1421 = vunpack.c.l.b16 %v1361
            %v1422 = vunpack.c.h.b16 %v1361
            %v1423 = vunpack.c.l.b16 %v1362
            %v1424 = vunpack.c.h.b16 %v1362
            %v1425 = vunpack.c.l.b16 %v1363
            %v1426 = vunpack.c.h.b16 %v1363
            %v1427 = vunpack.c.l.b16 %v1364
            %v1428 = vunpack.c.h.b16 %v1364
            %v1429 = vunpack.c.l.b16 %v1365
            %v1430 = vunpack.c.h.b16 %v1365
            %v1431 = vunpack.c.l.b16 %v1366
            %v1432 = vunpack.c.h.b16 %v1366
            %v1433 = vunpack.c.l.b16 %v1367
            %v1434 = vunpack.c.h.b16 %v1367
            %v1435 = vunpack.c.l.b16 %v1368
            %v1436 = vunpack.c.h.b16 %v1368
            %v1437 = vpack.c.b16 %v1407, %v1405
            %v1438 = vpack.c.b16 %v1408, %v1406
            %v1439 = vpack.c.b16 %v1411, %v1409
            %v1440 = vpack.c.b16 %v1412, %v1410
            %v1441 = vpack.c.b16 %v1415, %v1413
            %v1442 = vpack.c.b16 %v1416, %v1414
            %v1443 = vpack.c.b16 %v1419, %v1417
            %v1444 = vpack.c.b16 %v1420, %v1418
            %v1445 = vpack.c.b16 %v1423, %v1421
            %v1446 = vpack.c.b16 %v1424, %v1422
            %v1447 = vpack.c.b16 %v1427, %v1425
            %v1448 = vpack.c.b16 %v1428, %v1426
            %v1449 = vpack.c.b16 %v1431, %v1429
            %v1450 = vpack.c.b16 %v1432, %v1430
            %v1451 = vpack.c.b16 %v1435, %v1433
            %v1452 = vpack.c.b16 %v1436, %v1434
            %1469 = vmatprep.subr.bf16.mxu0 0
            %1470 = vmatpush1.bf16.msra.mxu0 %v1373
            %1471 = vmatprep.subr.bf16.mxu0 0
            %1472 = vmatpush1.bf16.msra.mxu0 %v1374
            %1473 = vmatprep.subr.bf16.mxu0 0
            %1474 = vmatpush1.bf16.msra.mxu0 %v1375
            %1475 = vmatprep.subr.bf16.mxu0 0
            %1476 = vmatpush1.bf16.msra.mxu0 %v1376
            %1477 = vmatprep.subr.bf16.mxu0 0
            %1478 = vmatpush1.bf16.msra.mxu0 %v1377
            %1479 = vmatprep.subr.bf16.mxu0 0
            %1480 = vmatpush1.bf16.msra.mxu0 %v1378
            %1481 = vmatprep.subr.bf16.mxu0 0
            %1482 = vmatpush1.bf16.msra.mxu0 %v1379
            %1483 = vmatprep.subr.bf16.mxu0 0
            %1484 = vmatpush1.bf16.msra.mxu0 %v1380
            %1485 = vmatprep.subr.bf16.mxu0 0
            %1486 = vmatpush1.bf16.msra.mxu0 %v1381
            %1487 = vmatprep.subr.bf16.mxu0 0
            %1488 = vmatpush1.bf16.msra.mxu0 %v1382
            %1489 = vmatprep.subr.bf16.mxu0 0
            %1490 = vmatpush1.bf16.msra.mxu0 %v1383
            %1491 = vmatprep.subr.bf16.mxu0 0
            %1492 = vmatpush1.bf16.msra.mxu0 %v1384
            %1493 = vmatprep.subr.bf16.mxu0 0
            %1494 = vmatpush1.bf16.msra.mxu0 %v1385
            %1495 = vmatprep.subr.bf16.mxu0 0
            %1496 = vmatpush1.bf16.msra.mxu0 %v1386
            %1497 = vmatprep.subr.bf16.mxu0 0
            %1498 = vmatpush1.bf16.msra.mxu0 %v1387
            %1499 = vmatprep.subr.bf16.mxu0 0
            %1500 = vmatpush1.bf16.msra.mxu0 %v1388
            %1501 = vmatprep.mubr.bf16.mxu0 %v1438
            %1502 = vmatmul.mubr.bf16.gmra.mrb[0].mxu0 %v1437
            %v1503 = vpop.f32.mrb[0].mxu0
            %v1504 = vadd.f32 0.0, %v1503
            %v1505 = vpop.f32.mrb[0].mxu0
            %v1506 = vpop.f32.mrb[0].mxu0
            %v1507 = vadd.f32 0.0, %v1506
            %v1508 = vpop.f32.mrb[0].mxu0
            %1509 = vmatprep.mubr.bf16.mxu0 %v1440
            %1510 = vmatmul.mubr.bf16.gmra.mrb[0].mxu0 %v1439
            %v1511 = vpop.f32.mrb[0].mxu0
            %v1512 = vadd.f32 0.0, %v1511
            %v1513 = vpop.f32.mrb[0].mxu0
            %v1514 = vpop.f32.mrb[0].mxu0
            %v1515 = vadd.f32 0.0, %v1514
            %v1516 = vpop.f32.mrb[0].mxu0
            %1517 = vmatprep.mubr.bf16.mxu0 %v1442
            %1518 = vmatmul.mubr.bf16.gmra.mrb[0].mxu0 %v1441
            %v1519 = vpop.f32.mrb[0].mxu0
            %v1520 = vadd.f32 0.0, %v1519
            %v1521 = vpop.f32.mrb[0].mxu0
            %v1522 = vpop.f32.mrb[0].mxu0
            %v1523 = vadd.f32 0.0, %v1522
            %v1524 = vpop.f32.mrb[0].mxu0
            %1525 = vmatprep.mubr.bf16.mxu0 %v1444
            %1526 = vmatmul.mubr.bf16.gmra.mrb[0].mxu0 %v1443
            %v1527 = vpop.f32.mrb[0].mxu0
            %v1528 = vadd.f32 0.0, %v1527
            %v1529 = vpop.f32.mrb[0].mxu0
            %v1530 = vpop.f32.mrb[0].mxu0
            %v1531 = vadd.f32 0.0, %v1530
            %v1532 = vpop.f32.mrb[0].mxu0
            %1533 = vmatprep.mubr.bf16.mxu0 %v1446
            %1534 = vmatmul.mubr.bf16.gmra.mrb[0].mxu0 %v1445
            %v1535 = vpop.f32.mrb[0].mxu0
            %v1536 = vadd.f32 0.0, %v1535
            %v1537 = vpop.f32.mrb[0].mxu0
            %v1538 = vpop.f32.mrb[0].mxu0
            %v1539 = vadd.f32 0.0, %v1538
            %v1540 = vpop.f32.mrb[0].mxu0
            %1541 = vmatprep.mubr.bf16.mxu0 %v1448
            %1542 = vmatmul.mubr.bf16.gmra.mrb[0].mxu0 %v1447
            %v1543 = vpop.f32.mrb[0].mxu0
            %v1544 = vadd.f32 0.0, %v1543
            %v1545 = vpop.f32.mrb[0].mxu0
            %v1546 = vpop.f32.mrb[0].mxu0
            %v1547 = vadd.f32 0.0, %v1546
            %v1548 = vpop.f32.mrb[0].mxu0
            %1549 = vmatprep.mubr.bf16.mxu0 %v1450
            %1550 = vmatmul.mubr.bf16.gmra.mrb[0].mxu0 %v1449
            %v1551 = vpop.f32.mrb[0].mxu0
            %v1552 = vadd.f32 0.0, %v1551
            %v1553 = vpop.f32.mrb[0].mxu0
            %v1554 = vpop.f32.mrb[0].mxu0
            %v1555 = vadd.f32 0.0, %v1554
            %v1556 = vpop.f32.mrb[0].mxu0
            %1557 = vmatprep.mubr.bf16.mxu0 %v1452
            %1558 = vmatmul.mubr.bf16.gmra.mrb[0].mxu0 %v1451
            %v1559 = vpop.f32.mrb[0].mxu0
            %v1560 = vadd.f32 0.0, %v1559
            %v1561 = vpop.f32.mrb[0].mxu0
            %v1562 = vpop.f32.mrb[0].mxu0
            %v1563 = vadd.f32 0.0, %v1562
            %v1564 = vpop.f32.mrb[0].mxu0
            %1565 = vdwg.mxu0
            %v1566 = vadd.f32 %v1337, %v1504
            %v1567 = vadd.f32 %v1338, %v1507
            %v1568 = vadd.f32 %v1339, %v1512
            %v1569 = vadd.f32 %v1340, %v1515
            %v1570 = vadd.f32 %v1341, %v1520
            %v1571 = vadd.f32 %v1342, %v1523
            %v1572 = vadd.f32 %v1343, %v1528
            %v1573 = vadd.f32 %v1344, %v1531
            %v1574 = vadd.f32 %v1345, %v1536
            %v1575 = vadd.f32 %v1346, %v1539
            %v1576 = vadd.f32 %v1347, %v1544
            %v1577 = vadd.f32 %v1348, %v1547
            %v1578 = vadd.f32 %v1349, %v1552
            %v1579 = vadd.f32 %v1350, %v1555
            %v1580 = vadd.f32 %v1351, %v1560
            %v1581 = vadd.f32 %v1352, %v1563
            %1582 = vst [vmem:[#allocation2] sm:$0xff] %v1566
            %1583 = vst [vmem:[#allocation2 + $0x8] sm:$0xff] %v1567
            %1584 = vst [vmem:[#allocation2 + $0x10] sm:$0xff] %v1568
            %1585 = vst [vmem:[#allocation2 + $0x18] sm:$0xff] %v1569
            %1586 = vst [vmem:[#allocation2 + $0x20] sm:$0xff] %v1570
            %1587 = vst [vmem:[#allocation2 + $0x28] sm:$0xff] %v1571
            %1588 = vst [vmem:[#allocation2 + $0x30] sm:$0xff] %v1572
            %1589 = vst [vmem:[#allocation2 + $0x38] sm:$0xff] %v1573
            %1590 = vst [vmem:[#allocation2 + $0x40] sm:$0xff] %v1574
            %1591 = vst [vmem:[#allocation2 + $0x48] sm:$0xff] %v1575
            %1592 = vst [vmem:[#allocation2 + $0x50] sm:$0xff] %v1576
            %1593 = vst [vmem:[#allocation2 + $0x58] sm:$0xff] %v1577
            %1594 = vst [vmem:[#allocation2 + $0x60] sm:$0xff] %v1578
            %1595 = vst [vmem:[#allocation2 + $0x68] sm:$0xff] %v1579
            %1596 = vst [vmem:[#allocation2 + $0x70] sm:$0xff] %v1580
            %1597 = vst [vmem:[#allocation2 + $0x78] sm:$0xff] %v1581
          $region96: #{tpu_custom_call.1} parent=83 // pred_fallthru
            _
        $region84: #{tpu_custom_call.1} parent=47 // pred_fallthru
          _
        %p1598 = scmp.eq.s32.totalorder %s48, 1
        // Predicated region
        $region97: #{tpu_custom_call.1} parent=47 // pred_check
          %p1599 = pneg %p1598
        $region98: #{tpu_custom_call.1} parent=47 // pred_check_branch
          %1601 = sbr.rel (%p1599) target = $region100
        $region99: #{tpu_custom_call.1} parent=47 // pred_region
          %s1602 = smul.u32 %s47, 128
          %v1603 = vld [vmem:[#allocation2] sm:$0xff]
          %v1604 = vld [vmem:[#allocation2 + $0x8] sm:$0xff]
          %v1605 = vld [vmem:[#allocation2 + $0x10] sm:$0xff]
          %v1606 = vld [vmem:[#allocation2 + $0x18] sm:$0xff]
          %v1607 = vld [vmem:[#allocation2 + $0x20] sm:$0xff]
          %v1608 = vld [vmem:[#allocation2 + $0x28] sm:$0xff]
          %v1609 = vld [vmem:[#allocation2 + $0x30] sm:$0xff]
          %v1610 = vld [vmem:[#allocation2 + $0x38] sm:$0xff]
          %v1611 = vld [vmem:[#allocation2 + $0x40] sm:$0xff]
          %v1612 = vld [vmem:[#allocation2 + $0x48] sm:$0xff]
          %v1613 = vld [vmem:[#allocation2 + $0x50] sm:$0xff]
          %v1614 = vld [vmem:[#allocation2 + $0x58] sm:$0xff]
          %v1615 = vld [vmem:[#allocation2 + $0x60] sm:$0xff]
          %v1616 = vld [vmem:[#allocation2 + $0x68] sm:$0xff]
          %v1617 = vld [vmem:[#allocation2 + $0x70] sm:$0xff]
          %v1618 = vld [vmem:[#allocation2 + $0x78] sm:$0xff]
          %v1619 = vld [vmem:[%s532] sm:$0xff]
          %v1620 = vld [vmem:[%s532 + $0x8] sm:$0xff]
          %v1621 = vld [vmem:[%s532 + $0x10] sm:$0xff]
          %v1622 = vld [vmem:[%s532 + $0x18] sm:$0xff]
          %v1623 = vld [vmem:[%s532 + $0x20] sm:$0xff]
          %v1624 = vld [vmem:[%s532 + $0x28] sm:$0xff]
          %v1625 = vld [vmem:[%s532 + $0x30] sm:$0xff]
          %v1626 = vld [vmem:[%s532 + $0x38] sm:$0xff]
          %v1627 = vld [vmem:[%s532 + $0x40] sm:$0xff]
          %v1628 = vld [vmem:[%s532 + $0x48] sm:$0xff]
          %v1629 = vld [vmem:[%s532 + $0x50] sm:$0xff]
          %v1630 = vld [vmem:[%s532 + $0x58] sm:$0xff]
          %v1631 = vld [vmem:[%s532 + $0x60] sm:$0xff]
          %v1632 = vld [vmem:[%s532 + $0x68] sm:$0xff]
          %v1633 = vld [vmem:[%s532 + $0x70] sm:$0xff]
          %v1634 = vld [vmem:[%s532 + $0x78] sm:$0xff]
          %1636 = vset.pattern.permute.xlu0 0
          %1637 = vperm.xlu0 %1636, %v1619
          %v1638 = vpop.permute.xlu0 %1637
          %1641 = vset.pattern.permute.xlu0 0
          %1642 = vperm.xlu0 %1641, %v1620
          %v1643 = vpop.permute.xlu0 %1642
          %1646 = vset.pattern.permute.xlu0 0
          %1647 = vperm.xlu0 %1646, %v1621
          %v1648 = vpop.permute.xlu0 %1647
          %1651 = vset.pattern.permute.xlu0 0
          %1652 = vperm.xlu0 %1651, %v1622
          %v1653 = vpop.permute.xlu0 %1652
          %1656 = vset.pattern.permute.xlu0 0
          %1657 = vperm.xlu0 %1656, %v1623
          %v1658 = vpop.permute.xlu0 %1657
          %1661 = vset.pattern.permute.xlu0 0
          %1662 = vperm.xlu0 %1661, %v1624
          %v1663 = vpop.permute.xlu0 %1662
          %1666 = vset.pattern.permute.xlu0 0
          %1667 = vperm.xlu0 %1666, %v1625
          %v1668 = vpop.permute.xlu0 %1667
          %1671 = vset.pattern.permute.xlu0 0
          %1672 = vperm.xlu0 %1671, %v1626
          %v1673 = vpop.permute.xlu0 %1672
          %1676 = vset.pattern.permute.xlu0 0
          %1677 = vperm.xlu0 %1676, %v1627
          %v1678 = vpop.permute.xlu0 %1677
          %1681 = vset.pattern.permute.xlu0 0
          %1682 = vperm.xlu0 %1681, %v1628
          %v1683 = vpop.permute.xlu0 %1682
          %1686 = vset.pattern.permute.xlu0 0
          %1687 = vperm.xlu0 %1686, %v1629
          %v1688 = vpop.permute.xlu0 %1687
          %1691 = vset.pattern.permute.xlu0 0
          %1692 = vperm.xlu0 %1691, %v1630
          %v1693 = vpop.permute.xlu0 %1692
          %1696 = vset.pattern.permute.xlu0 0
          %1697 = vperm.xlu0 %1696, %v1631
          %v1698 = vpop.permute.xlu0 %1697
          %1701 = vset.pattern.permute.xlu0 0
          %1702 = vperm.xlu0 %1701, %v1632
          %v1703 = vpop.permute.xlu0 %1702
          %1706 = vset.pattern.permute.xlu0 0
          %1707 = vperm.xlu0 %1706, %v1633
          %v1708 = vpop.permute.xlu0 %1707
          %1711 = vset.pattern.permute.xlu0 0
          %1712 = vperm.xlu0 %1711, %v1634
          %v1713 = vpop.permute.xlu0 %1712
          %v1715 = vmul.f32 %v1603, %v1638
          %v1716 = vmul.f32 %v1604, %v1643
          %v1717 = vmul.f32 %v1605, %v1648
          %v1718 = vmul.f32 %v1606, %v1653
          %v1719 = vmul.f32 %v1607, %v1658
          %v1720 = vmul.f32 %v1608, %v1663
          %v1721 = vmul.f32 %v1609, %v1668
          %v1722 = vmul.f32 %v1610, %v1673
          %v1723 = vmul.f32 %v1611, %v1678
          %v1724 = vmul.f32 %v1612, %v1683
          %v1725 = vmul.f32 %v1613, %v1688
          %v1726 = vmul.f32 %v1614, %v1693
          %v1727 = vmul.f32 %v1615, %v1698
          %v1728 = vmul.f32 %v1616, %v1703
          %v1729 = vmul.f32 %v1617, %v1708
          %v1730 = vmul.f32 %v1618, %v1713
          %v1731 = vpack.c.bf16 %v1716, %v1715
          %v1732 = vpack.c.bf16 %v1718, %v1717
          %v1733 = vpack.c.bf16 %v1720, %v1719
          %v1734 = vpack.c.bf16 %v1722, %v1721
          %v1735 = vpack.c.bf16 %v1724, %v1723
          %v1736 = vpack.c.bf16 %v1726, %v1725
          %v1737 = vpack.c.bf16 %v1728, %v1727
          %v1738 = vpack.c.bf16 %v1730, %v1729
          %1739 = vst [vmem:[#allocation3] sm:$0xff] %v1731
          %1740 = vst [vmem:[#allocation3 + $0x10] sm:$0xff] %v1732
          %1741 = vst [vmem:[#allocation3 + $0x20] sm:$0xff] %v1733
          %1742 = vst [vmem:[#allocation3 + $0x30] sm:$0xff] %v1734
          %1743 = vst [vmem:[#allocation3 + $0x40] sm:$0xff] %v1735
          %1744 = vst [vmem:[#allocation3 + $0x50] sm:$0xff] %v1736
          %1745 = vst [vmem:[#allocation3 + $0x60] sm:$0xff] %v1737
          %1746 = vst [vmem:[#allocation3 + $0x70] sm:$0xff] %v1738
          %p1747 = scmp.eq.s32.totalorder %s46, 0
          // Predicated region
          $region101: #{tpu_custom_call.1} parent=99 // pred_check
            %p1748 = pneg %p1747
          $region102: #{tpu_custom_call.1} parent=99 // pred_check_branch
            %1750 = sbr.rel (%p1748) target = $region104
          $region103: #{tpu_custom_call.1} parent=99 // pred_region
            %v1751 = vld [vmem:[%s523] sm:$0xf]
            %v1752 = vld [vmem:[%s523 + $0x4] sm:$0xf]
            %v1753 = vld [vmem:[%s523 + $0x8] sm:$0xf]
            %v1754 = vld [vmem:[%s523 + $0xc] sm:$0xf]
            %v1755 = vld [vmem:[%s523 + $0x10] sm:$0xf]
            %v1756 = vld [vmem:[%s523 + $0x14] sm:$0xf]
            %v1757 = vld [vmem:[%s523 + $0x18] sm:$0xf]
            %v1758 = vld [vmem:[%s523 + $0x1c] sm:$0xf]
            %v1759 = vld [vmem:[%s523 + $0x20] sm:$0xf]
            %v1760 = vld [vmem:[%s523 + $0x24] sm:$0xf]
            %v1761 = vld [vmem:[%s523 + $0x28] sm:$0xf]
            %v1762 = vld [vmem:[%s523 + $0x2c] sm:$0xf]
            %v1763 = vld [vmem:[%s523 + $0x30] sm:$0xf]
            %v1764 = vld [vmem:[%s523 + $0x34] sm:$0xf]
            %v1765 = vld [vmem:[%s523 + $0x38] sm:$0xf]
            %v1766 = vld [vmem:[%s523 + $0x3c] sm:$0xf]
            %v1783 = vunpack.c.l.b16 %v1751
            %v1784 = vunpack.c.l.b16 %v1752
            %v1785 = vunpack.c.l.b16 %v1753
            %v1786 = vunpack.c.l.b16 %v1754
            %v1787 = vunpack.c.l.b16 %v1755
            %v1788 = vunpack.c.l.b16 %v1756
            %v1789 = vunpack.c.l.b16 %v1757
            %v1790 = vunpack.c.l.b16 %v1758
            %v1791 = vunpack.c.l.b16 %v1759
            %v1792 = vunpack.c.l.b16 %v1760
            %v1793 = vunpack.c.l.b16 %v1761
            %v1794 = vunpack.c.l.b16 %v1762
            %v1795 = vunpack.c.l.b16 %v1763
            %v1796 = vunpack.c.l.b16 %v1764
            %v1797 = vunpack.c.l.b16 %v1765
            %v1798 = vunpack.c.l.b16 %v1766
            %v1799 = vpack.c.b16 %v1784, %v1783
            %v1800 = vpack.c.b16 %v1786, %v1785
            %v1801 = vpack.c.b16 %v1788, %v1787
            %v1802 = vpack.c.b16 %v1790, %v1789
            %v1803 = vpack.c.b16 %v1792, %v1791
            %v1804 = vpack.c.b16 %v1794, %v1793
            %v1805 = vpack.c.b16 %v1796, %v1795
            %v1806 = vpack.c.b16 %v1798, %v1797
            %1815 = vst [vmem:[#allocation3 + $0x8] sm:$0xff] %v1799
            %1816 = vst [vmem:[#allocation3 + $0x18] sm:$0xff] %v1800
            %1817 = vst [vmem:[#allocation3 + $0x28] sm:$0xff] %v1801
            %1818 = vst [vmem:[#allocation3 + $0x38] sm:$0xff] %v1802
            %1819 = vst [vmem:[#allocation3 + $0x48] sm:$0xff] %v1803
            %1820 = vst [vmem:[#allocation3 + $0x58] sm:$0xff] %v1804
            %1821 = vst [vmem:[#allocation3 + $0x68] sm:$0xff] %v1805
            %1822 = vst [vmem:[#allocation3 + $0x78] sm:$0xff] %v1806
          $region104: #{tpu_custom_call.1} parent=99 // pred_fallthru
            _
          %p1823 = scmp.lt.s32.totalorder %s46, 0
          %s1824 = ssub.s32 0, %s46
          %s1825 = scalar_select %p1823, %s1824, %s46
          %s1826 = sand.u32 %s1825, 1
          %s1827 = ssub.s32 0, %s1826
          %s1828 = scalar_select %p1823, %s1827, %s1826
          %p1829 = scmp.ne.s32.totalorder %s1828, 0
          %p1830 = scmp.lt.s32.totalorder %s1828, 0
          %p1831 = pnand %p1830, %p1829
          %p1832 = pneg %p1831
          %s1833 = sadd.s32 %s1828, 2
          %s1834 = scalar_select %p1832, %s1833, %s1828
          %p1835 = scmp.eq.s32.totalorder %s1834, 1
          // Predicated region
          $region105: #{tpu_custom_call.1} parent=99 // pred_check
            %p1836 = pneg %p1835
          $region106: #{tpu_custom_call.1} parent=99 // pred_check_branch
            %1838 = sbr.rel (%p1836) target = $region108
          $region107: #{tpu_custom_call.1} parent=99 // pred_region
            %s1839 = sshra.s32 %s1602, 4
            %s1840 = sand.u32 %s1602, 15
            %s1841 = smul.addr %s1839, 8
            %s1842 = scalar_lea.vmem [#allocation4], %s1841
            %v1843 = vld [vmem:[%s1842] sm:$0xff]
            %v1844 = vld [vmem:[%s1842 + $0x8] sm:$0xff]
            %v1845 = vld [vmem:[%s1842 + $0x10] sm:$0xff]
            %v1846 = vld [vmem:[%s1842 + $0x18] sm:$0xff]
            %v1847 = vld [vmem:[%s1842 + $0x20] sm:$0xff]
            %v1848 = vld [vmem:[%s1842 + $0x28] sm:$0xff]
            %v1849 = vld [vmem:[%s1842 + $0x30] sm:$0xff]
            %v1850 = vld [vmem:[%s1842 + $0x38] sm:$0xff]
            %1851 = vst [vmem:[#allocation3 + $0x8] sm:$0xff] %v1843
            %1852 = vst [vmem:[#allocation3 + $0x18] sm:$0xff] %v1844
            %1853 = vst [vmem:[#allocation3 + $0x28] sm:$0xff] %v1845
            %1854 = vst [vmem:[#allocation3 + $0x38] sm:$0xff] %v1846
            %1855 = vst [vmem:[#allocation3 + $0x48] sm:$0xff] %v1847
            %1856 = vst [vmem:[#allocation3 + $0x58] sm:$0xff] %v1848
            %1857 = vst [vmem:[#allocation3 + $0x68] sm:$0xff] %v1849
            %1858 = vst [vmem:[#allocation3 + $0x78] sm:$0xff] %v1850
          $region108: #{tpu_custom_call.1} parent=99 // pred_fallthru
            _
          %p1859 = scmp.ne.s32.totalorder %s46, 0
          %p1860 = scmp.eq.s32.totalorder %s1834, 0
          %p1861 = pnand %p1859, %p1860
          %p1862 = pneg %p1861
          // Predicated region
          $region109: #{tpu_custom_call.1} parent=99 // pred_check
            _
          $region110: #{tpu_custom_call.1} parent=99 // pred_check_branch
            %1864 = sbr.rel (%p1861) target = $region112
          $region111: #{tpu_custom_call.1} parent=99 // pred_region
            %s1865 = sshra.s32 %s1602, 4
            %s1866 = sand.u32 %s1602, 15
            %s1867 = smul.addr %s1865, 8
            %s1868 = scalar_lea.vmem [#allocation5], %s1867
            %v1869 = vld [vmem:[%s1868] sm:$0xff]
            %v1870 = vld [vmem:[%s1868 + $0x8] sm:$0xff]
            %v1871 = vld [vmem:[%s1868 + $0x10] sm:$0xff]
            %v1872 = vld [vmem:[%s1868 + $0x18] sm:$0xff]
            %v1873 = vld [vmem:[%s1868 + $0x20] sm:$0xff]
            %v1874 = vld [vmem:[%s1868 + $0x28] sm:$0xff]
            %v1875 = vld [vmem:[%s1868 + $0x30] sm:$0xff]
            %v1876 = vld [vmem:[%s1868 + $0x38] sm:$0xff]
            %1877 = vst [vmem:[#allocation3 + $0x8] sm:$0xff] %v1869
            %1878 = vst [vmem:[#allocation3 + $0x18] sm:$0xff] %v1870
            %1879 = vst [vmem:[#allocation3 + $0x28] sm:$0xff] %v1871
            %1880 = vst [vmem:[#allocation3 + $0x38] sm:$0xff] %v1872
            %1881 = vst [vmem:[#allocation3 + $0x48] sm:$0xff] %v1873
            %1882 = vst [vmem:[#allocation3 + $0x58] sm:$0xff] %v1874
            %1883 = vst [vmem:[#allocation3 + $0x68] sm:$0xff] %v1875
            %1884 = vst [vmem:[#allocation3 + $0x78] sm:$0xff] %v1876
          $region112: #{tpu_custom_call.1} parent=99 // pred_fallthru
            _
          %v1885 = vld [vmem:[#allocation3] sm:$0xff]
          %v1886 = vld [vmem:[#allocation3 + $0x8] sm:$0xff]
          %v1887 = vld [vmem:[#allocation3 + $0x10] sm:$0xff]
          %v1888 = vld [vmem:[#allocation3 + $0x18] sm:$0xff]
          %v1889 = vld [vmem:[#allocation3 + $0x20] sm:$0xff]
          %v1890 = vld [vmem:[#allocation3 + $0x28] sm:$0xff]
          %v1891 = vld [vmem:[#allocation3 + $0x30] sm:$0xff]
          %v1892 = vld [vmem:[#allocation3 + $0x38] sm:$0xff]
          %v1893 = vld [vmem:[#allocation3 + $0x40] sm:$0xff]
          %v1894 = vld [vmem:[#allocation3 + $0x48] sm:$0xff]
          %v1895 = vld [vmem:[#allocation3 + $0x50] sm:$0xff]
          %v1896 = vld [vmem:[#allocation3 + $0x58] sm:$0xff]
          %v1897 = vld [vmem:[#allocation3 + $0x60] sm:$0xff]
          %v1898 = vld [vmem:[#allocation3 + $0x68] sm:$0xff]
          %v1899 = vld [vmem:[#allocation3 + $0x70] sm:$0xff]
          %v1900 = vld [vmem:[#allocation3 + $0x78] sm:$0xff]
          %v1901 = vld [vmem:[%s541] sm:$0xf]
          %v1902 = vld [vmem:[%s541 + $0x4] sm:$0xf]
          %v1903 = vld [vmem:[%s541 + $0x8] sm:$0xf]
          %v1904 = vld [vmem:[%s541 + $0xc] sm:$0xf]
          %v1905 = vld [vmem:[%s541 + $0x10] sm:$0xf]
          %v1906 = vld [vmem:[%s541 + $0x14] sm:$0xf]
          %v1907 = vld [vmem:[%s541 + $0x18] sm:$0xf]
          %v1908 = vld [vmem:[%s541 + $0x1c] sm:$0xf]
          %v1909 = vld [vmem:[%s541 + $0x20] sm:$0xf]
          %v1910 = vld [vmem:[%s541 + $0x24] sm:$0xf]
          %v1911 = vld [vmem:[%s541 + $0x28] sm:$0xf]
          %v1912 = vld [vmem:[%s541 + $0x2c] sm:$0xf]
          %v1913 = vld [vmem:[%s541 + $0x30] sm:$0xf]
          %v1914 = vld [vmem:[%s541 + $0x34] sm:$0xf]
          %v1915 = vld [vmem:[%s541 + $0x38] sm:$0xf]
          %v1916 = vld [vmem:[%s541 + $0x3c] sm:$0xf]
          %v1917 = vld [vmem:[%s541 + $0x40] sm:$0xf]
          %v1918 = vld [vmem:[%s541 + $0x44] sm:$0xf]
          %v1919 = vld [vmem:[%s541 + $0x48] sm:$0xf]
          %v1920 = vld [vmem:[%s541 + $0x4c] sm:$0xf]
          %v1921 = vld [vmem:[%s541 + $0x50] sm:$0xf]
          %v1922 = vld [vmem:[%s541 + $0x54] sm:$0xf]
          %v1923 = vld [vmem:[%s541 + $0x58] sm:$0xf]
          %v1924 = vld [vmem:[%s541 + $0x5c] sm:$0xf]
          %v1925 = vld [vmem:[%s541 + $0x60] sm:$0xf]
          %v1926 = vld [vmem:[%s541 + $0x64] sm:$0xf]
          %v1927 = vld [vmem:[%s541 + $0x68] sm:$0xf]
          %v1928 = vld [vmem:[%s541 + $0x6c] sm:$0xf]
          %v1929 = vld [vmem:[%s541 + $0x70] sm:$0xf]
          %v1930 = vld [vmem:[%s541 + $0x74] sm:$0xf]
          %v1931 = vld [vmem:[%s541 + $0x78] sm:$0xf]
          %v1932 = vld [vmem:[%s541 + $0x7c] sm:$0xf]
          %v1933 = vld [vmem:[%s549] sm:$0x1]
          %v1935 = vlaneseq
          %v1936 = vshrl.u32 %v1935, 7
          %v1937 = vsub.s32 0, %v1936
          %v1938 = vrot.slane %v1933, %v1937
          %v1972 = vunpack.c.l.b16 %v1901
          %v1973 = vunpack.c.l.b16 %v1902
          %v1974 = vunpack.c.l.b16 %v1903
          %v1975 = vunpack.c.l.b16 %v1904
          %v1976 = vunpack.c.l.b16 %v1905
          %v1977 = vunpack.c.l.b16 %v1906
          %v1978 = vunpack.c.l.b16 %v1907
          %v1979 = vunpack.c.l.b16 %v1908
          %v1980 = vunpack.c.l.b16 %v1909
          %v1981 = vunpack.c.l.b16 %v1910
          %v1982 = vunpack.c.l.b16 %v1911
          %v1983 = vunpack.c.l.b16 %v1912
          %v1984 = vunpack.c.l.b16 %v1913
          %v1985 = vunpack.c.l.b16 %v1914
          %v1986 = vunpack.c.l.b16 %v1915
          %v1987 = vunpack.c.l.b16 %v1916
          %v1988 = vunpack.c.l.b16 %v1917
          %v1989 = vunpack.c.l.b16 %v1918
          %v1990 = vunpack.c.l.b16 %v1919
          %v1991 = vunpack.c.l.b16 %v1920
          %v1992 = vunpack.c.l.b16 %v1921
          %v1993 = vunpack.c.l.b16 %v1922
          %v1994 = vunpack.c.l.b16 %v1923
          %v1995 = vunpack.c.l.b16 %v1924
          %v1996 = vunpack.c.l.b16 %v1925
          %v1997 = vunpack.c.l.b16 %v1926
          %v1998 = vunpack.c.l.b16 %v1927
          %v1999 = vunpack.c.l.b16 %v1928
          %v2000 = vunpack.c.l.b16 %v1929
          %v2001 = vunpack.c.l.b16 %v1930
          %v2002 = vunpack.c.l.b16 %v1931
          %v2003 = vunpack.c.l.b16 %v1932
          %v2004 = vpack.c.b16 %v1973, %v1972
          %v2005 = vpack.c.b16 %v1975, %v1974
          %v2006 = vpack.c.b16 %v1977, %v1976
          %v2007 = vpack.c.b16 %v1979, %v1978
          %v2008 = vpack.c.b16 %v1981, %v1980
          %v2009 = vpack.c.b16 %v1983, %v1982
          %v2010 = vpack.c.b16 %v1985, %v1984
          %v2011 = vpack.c.b16 %v1987, %v1986
          %v2012 = vpack.c.b16 %v1989, %v1988
          %v2013 = vpack.c.b16 %v1991, %v1990
          %v2014 = vpack.c.b16 %v1993, %v1992
          %v2015 = vpack.c.b16 %v1995, %v1994
          %v2016 = vpack.c.b16 %v1997, %v1996
          %v2017 = vpack.c.b16 %v1999, %v1998
          %v2018 = vpack.c.b16 %v2001, %v2000
          %v2019 = vpack.c.b16 %v2003, %v2002
          %2036 = vmatprep.subr.bf16.mxu0 0
          %2037 = vmatpush1.bf16.msra.mxu0 %v2004
          %2038 = vmatprep.subr.bf16.mxu0 0
          %2039 = vmatpush1.bf16.msra.mxu0 %v2005
          %2040 = vmatprep.subr.bf16.mxu0 0
          %2041 = vmatpush1.bf16.msra.mxu0 %v2006
          %2042 = vmatprep.subr.bf16.mxu0 0
          %2043 = vmatpush1.bf16.msra.mxu0 %v2007
          %2044 = vmatprep.subr.bf16.mxu0 0
          %2045 = vmatpush1.bf16.msra.mxu0 %v2008
          %2046 = vmatprep.subr.bf16.mxu0 0
          %2047 = vmatpush1.bf16.msra.mxu0 %v2009
          %2048 = vmatprep.subr.bf16.mxu0 0
          %2049 = vmatpush1.bf16.msra.mxu0 %v2010
          %2050 = vmatprep.subr.bf16.mxu0 0
          %2051 = vmatpush1.bf16.msra.mxu0 %v2011
          %2052 = vmatprep.subr.bf16.mxu0 0
          %2053 = vmatpush1.bf16.msra.mxu0 %v2012
          %2054 = vmatprep.subr.bf16.mxu0 0
          %2055 = vmatpush1.bf16.msra.mxu0 %v2013
          %2056 = vmatprep.subr.bf16.mxu0 0
          %2057 = vmatpush1.bf16.msra.mxu0 %v2014
          %2058 = vmatprep.subr.bf16.mxu0 0
          %2059 = vmatpush1.bf16.msra.mxu0 %v2015
          %2060 = vmatprep.subr.bf16.mxu0 0
          %2061 = vmatpush1.bf16.msra.mxu0 %v2016
          %2062 = vmatprep.subr.bf16.mxu0 0
          %2063 = vmatpush1.bf16.msra.mxu0 %v2017
          %2064 = vmatprep.subr.bf16.mxu0 0
          %2065 = vmatpush1.bf16.msra.mxu0 %v2018
          %2066 = vmatprep.subr.bf16.mxu0 0
          %2067 = vmatpush1.bf16.msra.mxu0 %v2019
          %2068 = vmatprep.mubr.bf16.mxu0 %v1886
          %2069 = vmatmul.mubr.bf16.gmra.mrb[0].mxu0 %v1885
          %v2070 = vpop.f32.mrb[0].mxu0
          %v2071 = vadd.f32 %v1938, %v2070
          %v2072 = vpop.f32.mrb[0].mxu0
          %v2073 = vpop.f32.mrb[0].mxu0
          %v2074 = vadd.f32 %v1938, %v2073
          %v2075 = vpop.f32.mrb[0].mxu0
          %2076 = vmatprep.mubr.bf16.mxu0 %v1888
          %2077 = vmatmul.mubr.bf16.gmra.mrb[0].mxu0 %v1887
          %v2078 = vpop.f32.mrb[0].mxu0
          %v2079 = vadd.f32 %v1938, %v2078
          %v2080 = vpop.f32.mrb[0].mxu0
          %v2081 = vpop.f32.mrb[0].mxu0
          %v2082 = vadd.f32 %v1938, %v2081
          %v2083 = vpop.f32.mrb[0].mxu0
          %2084 = vmatprep.mubr.bf16.mxu0 %v1890
          %2085 = vmatmul.mubr.bf16.gmra.mrb[0].mxu0 %v1889
          %v2086 = vpop.f32.mrb[0].mxu0
          %v2087 = vadd.f32 %v1938, %v2086
          %v2088 = vpop.f32.mrb[0].mxu0
          %v2089 = vpop.f32.mrb[0].mxu0
          %v2090 = vadd.f32 %v1938, %v2089
          %v2091 = vpop.f32.mrb[0].mxu0
          %2092 = vmatprep.mubr.bf16.mxu0 %v1892
          %2093 = vmatmul.mubr.bf16.gmra.mrb[0].mxu0 %v1891
          %v2094 = vpop.f32.mrb[0].mxu0
          %v2095 = vadd.f32 %v1938, %v2094
          %v2096 = vpop.f32.mrb[0].mxu0
          %v2097 = vpop.f32.mrb[0].mxu0
          %v2098 = vadd.f32 %v1938, %v2097
          %v2099 = vpop.f32.mrb[0].mxu0
          %2100 = vmatprep.mubr.bf16.mxu0 %v1894
          %2101 = vmatmul.mubr.bf16.gmra.mrb[0].mxu0 %v1893
          %v2102 = vpop.f32.mrb[0].mxu0
          %v2103 = vadd.f32 %v1938, %v2102
          %v2104 = vpop.f32.mrb[0].mxu0
          %v2105 = vpop.f32.mrb[0].mxu0
          %v2106 = vadd.f32 %v1938, %v2105
          %v2107 = vpop.f32.mrb[0].mxu0
          %2108 = vmatprep.mubr.bf16.mxu0 %v1896
          %2109 = vmatmul.mubr.bf16.gmra.mrb[0].mxu0 %v1895
          %v2110 = vpop.f32.mrb[0].mxu0
          %v2111 = vadd.f32 %v1938, %v2110
          %v2112 = vpop.f32.mrb[0].mxu0
          %v2113 = vpop.f32.mrb[0].mxu0
          %v2114 = vadd.f32 %v1938, %v2113
          %v2115 = vpop.f32.mrb[0].mxu0
          %2116 = vmatprep.mubr.bf16.mxu0 %v1898
          %2117 = vmatmul.mubr.bf16.gmra.mrb[0].mxu0 %v1897
          %v2118 = vpop.f32.mrb[0].mxu0
          %v2119 = vadd.f32 %v1938, %v2118
          %v2120 = vpop.f32.mrb[0].mxu0
          %v2121 = vpop.f32.mrb[0].mxu0
          %v2122 = vadd.f32 %v1938, %v2121
          %v2123 = vpop.f32.mrb[0].mxu0
          %2124 = vmatprep.mubr.bf16.mxu0 %v1900
          %2125 = vmatmul.mubr.bf16.gmra.mrb[0].mxu0 %v1899
          %v2126 = vpop.f32.mrb[0].mxu0
          %v2127 = vadd.f32 %v1938, %v2126
          %v2128 = vpop.f32.mrb[0].mxu0
          %v2129 = vpop.f32.mrb[0].mxu0
          %v2130 = vadd.f32 %v1938, %v2129
          %v2131 = vpop.f32.mrb[0].mxu0
          %2132 = vdwg.mxu0
          %v2133 = vmax.f32 %v2071, 0.0
          %v2134 = vmax.f32 %v2074, 0.0
          %v2135 = vmax.f32 %v2079, 0.0
          %v2136 = vmax.f32 %v2082, 0.0
          %v2137 = vmax.f32 %v2087, 0.0
          %v2138 = vmax.f32 %v2090, 0.0
          %v2139 = vmax.f32 %v2095, 0.0
          %v2140 = vmax.f32 %v2098, 0.0
          %v2141 = vmax.f32 %v2103, 0.0
          %v2142 = vmax.f32 %v2106, 0.0
          %v2143 = vmax.f32 %v2111, 0.0
          %v2144 = vmax.f32 %v2114, 0.0
          %v2145 = vmax.f32 %v2119, 0.0
          %v2146 = vmax.f32 %v2122, 0.0
          %v2147 = vmax.f32 %v2127, 0.0
          %v2148 = vmax.f32 %v2130, 0.0
          %v2149 = vpack.c.bf16 %v2134, %v2133
          %v2150 = vpack.c.bf16 %v2136, %v2135
          %v2151 = vpack.c.bf16 %v2138, %v2137
          %v2152 = vpack.c.bf16 %v2140, %v2139
          %v2153 = vpack.c.bf16 %v2142, %v2141
          %v2154 = vpack.c.bf16 %v2144, %v2143
          %v2155 = vpack.c.bf16 %v2146, %v2145
          %v2156 = vpack.c.bf16 %v2148, %v2147
          %p2157 = scmp.ne.s32.totalorder %s46, 2
          %p2158 = pnand %p1860, %p2157
          %p2159 = pneg %p2158
          // Predicated region
          $region113: #{tpu_custom_call.1} parent=99 // pred_check
            _
          $region114: #{tpu_custom_call.1} parent=99 // pred_check_branch
            %2161 = sbr.rel (%p2158) target = $region116
          $region115: #{tpu_custom_call.1} parent=99 // pred_region
            %s2162 = sshra.s32 %s1602, 4
            %s2163 = sand.u32 %s1602, 15
            %s2164 = smul.addr %s2162, 8
            %s2165 = scalar_lea.vmem [#allocation4], %s2164
            %2166 = vst [vmem:[%s2165] sm:$0xff] %v2149
            %2167 = vst [vmem:[%s2165 + $0x8] sm:$0xff] %v2150
            %2168 = vst [vmem:[%s2165 + $0x10] sm:$0xff] %v2151
            %2169 = vst [vmem:[%s2165 + $0x18] sm:$0xff] %v2152
            %2170 = vst [vmem:[%s2165 + $0x20] sm:$0xff] %v2153
            %2171 = vst [vmem:[%s2165 + $0x28] sm:$0xff] %v2154
            %2172 = vst [vmem:[%s2165 + $0x30] sm:$0xff] %v2155
            %2173 = vst [vmem:[%s2165 + $0x38] sm:$0xff] %v2156
          $region116: #{tpu_custom_call.1} parent=99 // pred_fallthru
            _
          %p2174 = pnand %p1835, %p2157
          %p2175 = pneg %p2174
          // Predicated region
          $region117: #{tpu_custom_call.1} parent=99 // pred_check
            _
          $region118: #{tpu_custom_call.1} parent=99 // pred_check_branch
            %2177 = sbr.rel (%p2174) target = $region120
          $region119: #{tpu_custom_call.1} parent=99 // pred_region
            %s2178 = sshra.s32 %s1602, 4
            %s2179 = sand.u32 %s1602, 15
            %s2180 = smul.addr %s2178, 8
            %s2181 = scalar_lea.vmem [#allocation5], %s2180
            %2182 = vst [vmem:[%s2181] sm:$0xff] %v2149
            %2183 = vst [vmem:[%s2181 + $0x8] sm:$0xff] %v2150
            %2184 = vst [vmem:[%s2181 + $0x10] sm:$0xff] %v2151
            %2185 = vst [vmem:[%s2181 + $0x18] sm:$0xff] %v2152
            %2186 = vst [vmem:[%s2181 + $0x20] sm:$0xff] %v2153
            %2187 = vst [vmem:[%s2181 + $0x28] sm:$0xff] %v2154
            %2188 = vst [vmem:[%s2181 + $0x30] sm:$0xff] %v2155
            %2189 = vst [vmem:[%s2181 + $0x38] sm:$0xff] %v2156
          $region120: #{tpu_custom_call.1} parent=99 // pred_fallthru
            _
          %v2190 = vld [vmem:[%s558] sm:$0xff]
          %v2191 = vld [vmem:[%s558 + $0x8] sm:$0xff]
          %v2192 = vld [vmem:[%s558 + $0x10] sm:$0xff]
          %v2193 = vld [vmem:[%s558 + $0x18] sm:$0xff]
          %v2194 = vld [vmem:[%s558 + $0x20] sm:$0xff]
          %v2195 = vld [vmem:[%s558 + $0x28] sm:$0xff]
          %v2196 = vld [vmem:[%s558 + $0x30] sm:$0xff]
          %v2197 = vld [vmem:[%s558 + $0x38] sm:$0xff]
          %v2198 = vld [vmem:[%s558 + $0x40] sm:$0xff]
          %v2199 = vld [vmem:[%s558 + $0x48] sm:$0xff]
          %v2200 = vld [vmem:[%s558 + $0x50] sm:$0xff]
          %v2201 = vld [vmem:[%s558 + $0x58] sm:$0xff]
          %v2202 = vld [vmem:[%s558 + $0x60] sm:$0xff]
          %v2203 = vld [vmem:[%s558 + $0x68] sm:$0xff]
          %v2204 = vld [vmem:[%s558 + $0x70] sm:$0xff]
          %v2205 = vld [vmem:[%s558 + $0x78] sm:$0xff]
          %v2222 = vunpack.c.l.b16 %v2190
          %v2223 = vunpack.c.h.b16 %v2190
          %v2224 = vunpack.c.l.b16 %v2191
          %v2225 = vunpack.c.h.b16 %v2191
          %v2226 = vunpack.c.l.b16 %v2192
          %v2227 = vunpack.c.h.b16 %v2192
          %v2228 = vunpack.c.l.b16 %v2193
          %v2229 = vunpack.c.h.b16 %v2193
          %v2230 = vunpack.c.l.b16 %v2194
          %v2231 = vunpack.c.h.b16 %v2194
          %v2232 = vunpack.c.l.b16 %v2195
          %v2233 = vunpack.c.h.b16 %v2195
          %v2234 = vunpack.c.l.b16 %v2196
          %v2235 = vunpack.c.h.b16 %v2196
          %v2236 = vunpack.c.l.b16 %v2197
          %v2237 = vunpack.c.h.b16 %v2197
          %v2238 = vunpack.c.l.b16 %v2198
          %v2239 = vunpack.c.h.b16 %v2198
          %v2240 = vunpack.c.l.b16 %v2199
          %v2241 = vunpack.c.h.b16 %v2199
          %v2242 = vunpack.c.l.b16 %v2200
          %v2243 = vunpack.c.h.b16 %v2200
          %v2244 = vunpack.c.l.b16 %v2201
          %v2245 = vunpack.c.h.b16 %v2201
          %v2246 = vunpack.c.l.b16 %v2202
          %v2247 = vunpack.c.h.b16 %v2202
          %v2248 = vunpack.c.l.b16 %v2203
          %v2249 = vunpack.c.h.b16 %v2203
          %v2250 = vunpack.c.l.b16 %v2204
          %v2251 = vunpack.c.h.b16 %v2204
          %v2252 = vunpack.c.l.b16 %v2205
          %v2253 = vunpack.c.h.b16 %v2205
          %v2254 = vpack.c.b16 %v2224, %v2222
          %v2255 = vpack.c.b16 %v2225, %v2223
          %v2256 = vpack.c.b16 %v2228, %v2226
          %v2257 = vpack.c.b16 %v2229, %v2227
          %v2258 = vpack.c.b16 %v2232, %v2230
          %v2259 = vpack.c.b16 %v2233, %v2231
          %v2260 = vpack.c.b16 %v2236, %v2234
          %v2261 = vpack.c.b16 %v2237, %v2235
          %v2262 = vpack.c.b16 %v2240, %v2238
          %v2263 = vpack.c.b16 %v2241, %v2239
          %v2264 = vpack.c.b16 %v2244, %v2242
          %v2265 = vpack.c.b16 %v2245, %v2243
          %v2266 = vpack.c.b16 %v2248, %v2246
          %v2267 = vpack.c.b16 %v2249, %v2247
          %v2268 = vpack.c.b16 %v2252, %v2250
          %v2269 = vpack.c.b16 %v2253, %v2251
          %2286 = vmatprep.subr.bf16.mxu0 %v2255
          %2287 = vmatpush1.bf16.msra.mxu0 %v2254
          %2288 = vmatprep.subr.bf16.mxu0 %v2257
          %2289 = vmatpush1.bf16.msra.mxu0 %v2256
          %2290 = vmatprep.subr.bf16.mxu0 %v2259
          %2291 = vmatpush1.bf16.msra.mxu0 %v2258
          %2292 = vmatprep.subr.bf16.mxu0 %v2261
          %2293 = vmatpush1.bf16.msra.mxu0 %v2260
          %2294 = vmatprep.subr.bf16.mxu0 %v2263
          %2295 = vmatpush1.bf16.msra.mxu0 %v2262
          %2296 = vmatprep.subr.bf16.mxu0 %v2265
          %2297 = vmatpush1.bf16.msra.mxu0 %v2264
          %2298 = vmatprep.subr.bf16.mxu0 %v2267
          %2299 = vmatpush1.bf16.msra.mxu0 %v2266
          %2300 = vmatprep.subr.bf16.mxu0 %v2269
          %2301 = vmatpush1.bf16.msra.mxu0 %v2268
          %2302 = vmatprep.subr.bf16.mxu0 0
          %2303 = vmatpush1.bf16.msra.mxu0 0
          %2304 = vmatprep.subr.bf16.mxu0 0
          %2305 = vmatpush1.bf16.msra.mxu0 0
          %2306 = vmatprep.subr.bf16.mxu0 0
          %2307 = vmatpush1.bf16.msra.mxu0 0
          %2308 = vmatprep.subr.bf16.mxu0 0
          %2309 = vmatpush1.bf16.msra.mxu0 0
          %2310 = vmatprep.subr.bf16.mxu0 0
          %2311 = vmatpush1.bf16.msra.mxu0 0
          %2312 = vmatprep.subr.bf16.mxu0 0
          %2313 = vmatpush1.bf16.msra.mxu0 0
          %2314 = vmatprep.subr.bf16.mxu0 0
          %2315 = vmatpush1.bf16.msra.mxu0 0
          %2316 = vmatprep.subr.bf16.mxu0 0
          %2317 = vmatpush1.bf16.msra.mxu0 0
          %2318 = vmatprep.mubr.bf16.mxu0 0
          %2319 = vmatmul.mubr.bf16.gmra.mrb[0].mxu0 %v2149
          %v2320 = vpop.f32.mrb[0].mxu0
          %v2321 = vadd.f32 0.0, %v2320
          %v2322 = vpop.f32.mrb[0].mxu0
          %v2323 = vadd.f32 0.0, %v2322
          %v2324 = vpop.f32.mrb[0].mxu0
          %v2325 = vadd.f32 0.0, %v2324
          %v2326 = vpop.f32.mrb[0].mxu0
          %v2327 = vadd.f32 0.0, %v2326
          %2328 = vmatprep.mubr.bf16.mxu0 0
          %2329 = vmatmul.mubr.bf16.gmra.mrb[0].mxu0 %v2150
          %v2330 = vpop.f32.mrb[0].mxu0
          %v2331 = vadd.f32 0.0, %v2330
          %v2332 = vpop.f32.mrb[0].mxu0
          %v2333 = vadd.f32 0.0, %v2332
          %v2334 = vpop.f32.mrb[0].mxu0
          %v2335 = vadd.f32 0.0, %v2334
          %v2336 = vpop.f32.mrb[0].mxu0
          %v2337 = vadd.f32 0.0, %v2336
          %2338 = vmatprep.mubr.bf16.mxu0 0
          %2339 = vmatmul.mubr.bf16.gmra.mrb[0].mxu0 %v2151
          %v2340 = vpop.f32.mrb[0].mxu0
          %v2341 = vadd.f32 0.0, %v2340
          %v2342 = vpop.f32.mrb[0].mxu0
          %v2343 = vadd.f32 0.0, %v2342
          %v2344 = vpop.f32.mrb[0].mxu0
          %v2345 = vadd.f32 0.0, %v2344
          %v2346 = vpop.f32.mrb[0].mxu0
          %v2347 = vadd.f32 0.0, %v2346
          %2348 = vmatprep.mubr.bf16.mxu0 0
          %2349 = vmatmul.mubr.bf16.gmra.mrb[0].mxu0 %v2152
          %v2350 = vpop.f32.mrb[0].mxu0
          %v2351 = vadd.f32 0.0, %v2350
          %v2352 = vpop.f32.mrb[0].mxu0
          %v2353 = vadd.f32 0.0, %v2352
          %v2354 = vpop.f32.mrb[0].mxu0
          %v2355 = vadd.f32 0.0, %v2354
          %v2356 = vpop.f32.mrb[0].mxu0
          %v2357 = vadd.f32 0.0, %v2356
          %2358 = vmatprep.mubr.bf16.mxu0 0
          %2359 = vmatmul.mubr.bf16.gmra.mrb[0].mxu0 %v2153
          %v2360 = vpop.f32.mrb[0].mxu0
          %v2361 = vadd.f32 0.0, %v2360
          %v2362 = vpop.f32.mrb[0].mxu0
          %v2363 = vadd.f32 0.0, %v2362
          %v2364 = vpop.f32.mrb[0].mxu0
          %v2365 = vadd.f32 0.0, %v2364
          %v2366 = vpop.f32.mrb[0].mxu0
          %v2367 = vadd.f32 0.0, %v2366
          %2368 = vmatprep.mubr.bf16.mxu0 0
          %2369 = vmatmul.mubr.bf16.gmra.mrb[0].mxu0 %v2154
          %v2370 = vpop.f32.mrb[0].mxu0
          %v2371 = vadd.f32 0.0, %v2370
          %v2372 = vpop.f32.mrb[0].mxu0
          %v2373 = vadd.f32 0.0, %v2372
          %v2374 = vpop.f32.mrb[0].mxu0
          %v2375 = vadd.f32 0.0, %v2374
          %v2376 = vpop.f32.mrb[0].mxu0
          %v2377 = vadd.f32 0.0, %v2376
          %2378 = vmatprep.mubr.bf16.mxu0 0
          %2379 = vmatmul.mubr.bf16.gmra.mrb[0].mxu0 %v2155
          %v2380 = vpop.f32.mrb[0].mxu0
          %v2381 = vadd.f32 0.0, %v2380
          %v2382 = vpop.f32.mrb[0].mxu0
          %v2383 = vadd.f32 0.0, %v2382
          %v2384 = vpop.f32.mrb[0].mxu0
          %v2385 = vadd.f32 0.0, %v2384
          %v2386 = vpop.f32.mrb[0].mxu0
          %v2387 = vadd.f32 0.0, %v2386
          %2388 = vmatprep.mubr.bf16.mxu0 0
          %2389 = vmatmul.mubr.bf16.gmra.mrb[0].mxu0 %v2156
          %v2390 = vpop.f32.mrb[0].mxu0
          %v2391 = vadd.f32 0.0, %v2390
          %v2392 = vpop.f32.mrb[0].mxu0
          %v2393 = vadd.f32 0.0, %v2392
          %v2394 = vpop.f32.mrb[0].mxu0
          %v2395 = vadd.f32 0.0, %v2394
          %v2396 = vpop.f32.mrb[0].mxu0
          %v2397 = vadd.f32 0.0, %v2396
          %2398 = vdwg.mxu0
          // Predicated region
          $region121: #{tpu_custom_call.1} parent=99 // pred_check
            %p2399 = pneg %p1747
          $region122: #{tpu_custom_call.1} parent=99 // pred_check_branch
            %2401 = sbr.rel (%p2399) target = $region124
          $region123: #{tpu_custom_call.1} parent=99 // pred_region
            %s2402 = sshra.s32 %s1602, 3
            %s2403 = sand.u32 %s1602, 7
            %s2404 = smul.u32 %s2402, 2
            %s2405 = smul.addr %s2404, 8
            %s2406 = scalar_lea.vmem [#allocation6], %s2405
            %2407 = vst [vmem:[%s2406] sm:$0xff] %v2321
            %2408 = vst [vmem:[%s2406 + $0x8] sm:$0xff] %v2323
            %2409 = vst [vmem:[%s2406 + $0x10] sm:$0xff] %v2325
            %2410 = vst [vmem:[%s2406 + $0x18] sm:$0xff] %v2327
            %2411 = vst [vmem:[%s2406 + $0x20] sm:$0xff] %v2331
            %2412 = vst [vmem:[%s2406 + $0x28] sm:$0xff] %v2333
            %2413 = vst [vmem:[%s2406 + $0x30] sm:$0xff] %v2335
            %2414 = vst [vmem:[%s2406 + $0x38] sm:$0xff] %v2337
            %2415 = vst [vmem:[%s2406 + $0x40] sm:$0xff] %v2341
            %2416 = vst [vmem:[%s2406 + $0x48] sm:$0xff] %v2343
            %2417 = vst [vmem:[%s2406 + $0x50] sm:$0xff] %v2345
            %2418 = vst [vmem:[%s2406 + $0x58] sm:$0xff] %v2347
            %2419 = vst [vmem:[%s2406 + $0x60] sm:$0xff] %v2351
            %2420 = vst [vmem:[%s2406 + $0x68] sm:$0xff] %v2353
            %2421 = vst [vmem:[%s2406 + $0x70] sm:$0xff] %v2355
            %2422 = vst [vmem:[%s2406 + $0x78] sm:$0xff] %v2357
            %2423 = vst [vmem:[%s2406 + $0x80] sm:$0xff] %v2361
            %2424 = vst [vmem:[%s2406 + $0x88] sm:$0xff] %v2363
            %2425 = vst [vmem:[%s2406 + $0x90] sm:$0xff] %v2365
            %2426 = vst [vmem:[%s2406 + $0x98] sm:$0xff] %v2367
            %2427 = vst [vmem:[%s2406 + $0xa0] sm:$0xff] %v2371
            %2428 = vst [vmem:[%s2406 + $0xa8] sm:$0xff] %v2373
            %2429 = vst [vmem:[%s2406 + $0xb0] sm:$0xff] %v2375
            %2430 = vst [vmem:[%s2406 + $0xb8] sm:$0xff] %v2377
            %2431 = vst [vmem:[%s2406 + $0xc0] sm:$0xff] %v2381
            %2432 = vst [vmem:[%s2406 + $0xc8] sm:$0xff] %v2383
            %2433 = vst [vmem:[%s2406 + $0xd0] sm:$0xff] %v2385
            %2434 = vst [vmem:[%s2406 + $0xd8] sm:$0xff] %v2387
            %2435 = vst [vmem:[%s2406 + $0xe0] sm:$0xff] %v2391
            %2436 = vst [vmem:[%s2406 + $0xe8] sm:$0xff] %v2393
            %2437 = vst [vmem:[%s2406 + $0xf0] sm:$0xff] %v2395
            %2438 = vst [vmem:[%s2406 + $0xf8] sm:$0xff] %v2397
          $region124: #{tpu_custom_call.1} parent=99 // pred_fallthru
            _
          // Predicated region
          $region125: #{tpu_custom_call.1} parent=99 // pred_check
            %p2439 = pneg %p1859
          $region126: #{tpu_custom_call.1} parent=99 // pred_check_branch
            %2441 = sbr.rel (%p2439) target = $region128
          $region127: #{tpu_custom_call.1} parent=99 // pred_region
            %s2442 = sshra.s32 %s1602, 3
            %s2443 = sand.u32 %s1602, 7
            %s2444 = smul.u32 %s2442, 2
            %s2445 = smul.addr %s2444, 8
            %s2446 = scalar_lea.vmem [#allocation6], %s2445
            %v2447 = vld [vmem:[%s2446] sm:$0xff]
            %v2448 = vld [vmem:[%s2446 + $0x8] sm:$0xff]
            %v2449 = vld [vmem:[%s2446 + $0x10] sm:$0xff]
            %v2450 = vld [vmem:[%s2446 + $0x18] sm:$0xff]
            %v2451 = vld [vmem:[%s2446 + $0x20] sm:$0xff]
            %v2452 = vld [vmem:[%s2446 + $0x28] sm:$0xff]
            %v2453 = vld [vmem:[%s2446 + $0x30] sm:$0xff]
            %v2454 = vld [vmem:[%s2446 + $0x38] sm:$0xff]
            %v2455 = vld [vmem:[%s2446 + $0x40] sm:$0xff]
            %v2456 = vld [vmem:[%s2446 + $0x48] sm:$0xff]
            %v2457 = vld [vmem:[%s2446 + $0x50] sm:$0xff]
            %v2458 = vld [vmem:[%s2446 + $0x58] sm:$0xff]
            %v2459 = vld [vmem:[%s2446 + $0x60] sm:$0xff]
            %v2460 = vld [vmem:[%s2446 + $0x68] sm:$0xff]
            %v2461 = vld [vmem:[%s2446 + $0x70] sm:$0xff]
            %v2462 = vld [vmem:[%s2446 + $0x78] sm:$0xff]
            %v2463 = vld [vmem:[%s2446 + $0x80] sm:$0xff]
            %v2464 = vld [vmem:[%s2446 + $0x88] sm:$0xff]
            %v2465 = vld [vmem:[%s2446 + $0x90] sm:$0xff]
            %v2466 = vld [vmem:[%s2446 + $0x98] sm:$0xff]
            %v2467 = vld [vmem:[%s2446 + $0xa0] sm:$0xff]
            %v2468 = vld [vmem:[%s2446 + $0xa8] sm:$0xff]
            %v2469 = vld [vmem:[%s2446 + $0xb0] sm:$0xff]
            %v2470 = vld [vmem:[%s2446 + $0xb8] sm:$0xff]
            %v2471 = vld [vmem:[%s2446 + $0xc0] sm:$0xff]
            %v2472 = vld [vmem:[%s2446 + $0xc8] sm:$0xff]
            %v2473 = vld [vmem:[%s2446 + $0xd0] sm:$0xff]
            %v2474 = vld [vmem:[%s2446 + $0xd8] sm:$0xff]
            %v2475 = vld [vmem:[%s2446 + $0xe0] sm:$0xff]
            %v2476 = vld [vmem:[%s2446 + $0xe8] sm:$0xff]
            %v2477 = vld [vmem:[%s2446 + $0xf0] sm:$0xff]
            %v2478 = vld [vmem:[%s2446 + $0xf8] sm:$0xff]
            %v2479 = vadd.f32 %v2447, %v2321
            %v2480 = vadd.f32 %v2448, %v2323
            %v2481 = vadd.f32 %v2449, %v2325
            %v2482 = vadd.f32 %v2450, %v2327
            %v2483 = vadd.f32 %v2451, %v2331
            %v2484 = vadd.f32 %v2452, %v2333
            %v2485 = vadd.f32 %v2453, %v2335
            %v2486 = vadd.f32 %v2454, %v2337
            %v2487 = vadd.f32 %v2455, %v2341
            %v2488 = vadd.f32 %v2456, %v2343
            %v2489 = vadd.f32 %v2457, %v2345
            %v2490 = vadd.f32 %v2458, %v2347
            %v2491 = vadd.f32 %v2459, %v2351
            %v2492 = vadd.f32 %v2460, %v2353
            %v2493 = vadd.f32 %v2461, %v2355
            %v2494 = vadd.f32 %v2462, %v2357
            %v2495 = vadd.f32 %v2463, %v2361
            %v2496 = vadd.f32 %v2464, %v2363
            %v2497 = vadd.f32 %v2465, %v2365
            %v2498 = vadd.f32 %v2466, %v2367
            %v2499 = vadd.f32 %v2467, %v2371
            %v2500 = vadd.f32 %v2468, %v2373
            %v2501 = vadd.f32 %v2469, %v2375
            %v2502 = vadd.f32 %v2470, %v2377
            %v2503 = vadd.f32 %v2471, %v2381
            %v2504 = vadd.f32 %v2472, %v2383
            %v2505 = vadd.f32 %v2473, %v2385
            %v2506 = vadd.f32 %v2474, %v2387
            %v2507 = vadd.f32 %v2475, %v2391
            %v2508 = vadd.f32 %v2476, %v2393
            %v2509 = vadd.f32 %v2477, %v2395
            %v2510 = vadd.f32 %v2478, %v2397
            %2511 = vst [vmem:[%s2446] sm:$0xff] %v2479
            %2512 = vst [vmem:[%s2446 + $0x8] sm:$0xff] %v2480
            %2513 = vst [vmem:[%s2446 + $0x10] sm:$0xff] %v2481
            %2514 = vst [vmem:[%s2446 + $0x18] sm:$0xff] %v2482
            %2515 = vst [vmem:[%s2446 + $0x20] sm:$0xff] %v2483
            %2516 = vst [vmem:[%s2446 + $0x28] sm:$0xff] %v2484
            %2517 = vst [vmem:[%s2446 + $0x30] sm:$0xff] %v2485
            %2518 = vst [vmem:[%s2446 + $0x38] sm:$0xff] %v2486
            %2519 = vst [vmem:[%s2446 + $0x40] sm:$0xff] %v2487
            %2520 = vst [vmem:[%s2446 + $0x48] sm:$0xff] %v2488
            %2521 = vst [vmem:[%s2446 + $0x50] sm:$0xff] %v2489
            %2522 = vst [vmem:[%s2446 + $0x58] sm:$0xff] %v2490
            %2523 = vst [vmem:[%s2446 + $0x60] sm:$0xff] %v2491
            %2524 = vst [vmem:[%s2446 + $0x68] sm:$0xff] %v2492
            %2525 = vst [vmem:[%s2446 + $0x70] sm:$0xff] %v2493
            %2526 = vst [vmem:[%s2446 + $0x78] sm:$0xff] %v2494
            %2527 = vst [vmem:[%s2446 + $0x80] sm:$0xff] %v2495
            %2528 = vst [vmem:[%s2446 + $0x88] sm:$0xff] %v2496
            %2529 = vst [vmem:[%s2446 + $0x90] sm:$0xff] %v2497
            %2530 = vst [vmem:[%s2446 + $0x98] sm:$0xff] %v2498
            %2531 = vst [vmem:[%s2446 + $0xa0] sm:$0xff] %v2499
            %2532 = vst [vmem:[%s2446 + $0xa8] sm:$0xff] %v2500
            %2533 = vst [vmem:[%s2446 + $0xb0] sm:$0xff] %v2501
            %2534 = vst [vmem:[%s2446 + $0xb8] sm:$0xff] %v2502
            %2535 = vst [vmem:[%s2446 + $0xc0] sm:$0xff] %v2503
            %2536 = vst [vmem:[%s2446 + $0xc8] sm:$0xff] %v2504
            %2537 = vst [vmem:[%s2446 + $0xd0] sm:$0xff] %v2505
            %2538 = vst [vmem:[%s2446 + $0xd8] sm:$0xff] %v2506
            %2539 = vst [vmem:[%s2446 + $0xe0] sm:$0xff] %v2507
            %2540 = vst [vmem:[%s2446 + $0xe8] sm:$0xff] %v2508
            %2541 = vst [vmem:[%s2446 + $0xf0] sm:$0xff] %v2509
            %2542 = vst [vmem:[%s2446 + $0xf8] sm:$0xff] %v2510
          $region128: #{tpu_custom_call.1} parent=99 // pred_fallthru
            _
          %p2543 = scmp.eq.s32.totalorder %s46, 2
          // Predicated region
          $region129: #{tpu_custom_call.1} parent=99 // pred_check
            %p2544 = pneg %p2543
          $region130: #{tpu_custom_call.1} parent=99 // pred_check_branch
            %2546 = sbr.rel (%p2544) target = $region132
          $region131: #{tpu_custom_call.1} parent=99 // pred_region
            %s2547 = sshra.s32 %s1602, 3
            %s2548 = sand.u32 %s1602, 7
            %s2549 = smul.u32 %s2547, 2
            %s2550 = smul.addr %s2549, 8
            %s2551 = scalar_lea.vmem [#allocation6], %s2550
            %v2552 = vld [vmem:[%s2551] sm:$0xff]
            %v2553 = vld [vmem:[%s2551 + $0x8] sm:$0xff]
            %v2554 = vld [vmem:[%s2551 + $0x10] sm:$0xff]
            %v2555 = vld [vmem:[%s2551 + $0x18] sm:$0xff]
            %v2556 = vld [vmem:[%s2551 + $0x20] sm:$0xff]
            %v2557 = vld [vmem:[%s2551 + $0x28] sm:$0xff]
            %v2558 = vld [vmem:[%s2551 + $0x30] sm:$0xff]
            %v2559 = vld [vmem:[%s2551 + $0x38] sm:$0xff]
            %v2560 = vld [vmem:[%s2551 + $0x40] sm:$0xff]
            %v2561 = vld [vmem:[%s2551 + $0x48] sm:$0xff]
            %v2562 = vld [vmem:[%s2551 + $0x50] sm:$0xff]
            %v2563 = vld [vmem:[%s2551 + $0x58] sm:$0xff]
            %v2564 = vld [vmem:[%s2551 + $0x60] sm:$0xff]
            %v2565 = vld [vmem:[%s2551 + $0x68] sm:$0xff]
            %v2566 = vld [vmem:[%s2551 + $0x70] sm:$0xff]
            %v2567 = vld [vmem:[%s2551 + $0x78] sm:$0xff]
            %v2568 = vld [vmem:[%s2551 + $0x80] sm:$0xff]
            %v2569 = vld [vmem:[%s2551 + $0x88] sm:$0xff]
            %v2570 = vld [vmem:[%s2551 + $0x90] sm:$0xff]
            %v2571 = vld [vmem:[%s2551 + $0x98] sm:$0xff]
            %v2572 = vld [vmem:[%s2551 + $0xa0] sm:$0xff]
            %v2573 = vld [vmem:[%s2551 + $0xa8] sm:$0xff]
            %v2574 = vld [vmem:[%s2551 + $0xb0] sm:$0xff]
            %v2575 = vld [vmem:[%s2551 + $0xb8] sm:$0xff]
            %v2576 = vld [vmem:[%s2551 + $0xc0] sm:$0xff]
            %v2577 = vld [vmem:[%s2551 + $0xc8] sm:$0xff]
            %v2578 = vld [vmem:[%s2551 + $0xd0] sm:$0xff]
            %v2579 = vld [vmem:[%s2551 + $0xd8] sm:$0xff]
            %v2580 = vld [vmem:[%s2551 + $0xe0] sm:$0xff]
            %v2581 = vld [vmem:[%s2551 + $0xe8] sm:$0xff]
            %v2582 = vld [vmem:[%s2551 + $0xf0] sm:$0xff]
            %v2583 = vld [vmem:[%s2551 + $0xf8] sm:$0xff]
            %2584 = vst [vmem:[%s617] sm:$0xff] %v2552
            %2585 = vst [vmem:[%s617 + $0x8] sm:$0xff] %v2553
            %2586 = vst [vmem:[%s617 + $0x10] sm:$0xff] %v2554
            %2587 = vst [vmem:[%s617 + $0x18] sm:$0xff] %v2555
            %2588 = vst [vmem:[%s617 + $0x20] sm:$0xff] %v2556
            %2589 = vst [vmem:[%s617 + $0x28] sm:$0xff] %v2557
            %2590 = vst [vmem:[%s617 + $0x30] sm:$0xff] %v2558
            %2591 = vst [vmem:[%s617 + $0x38] sm:$0xff] %v2559
            %2592 = vst [vmem:[%s617 + $0x40] sm:$0xff] %v2560
            %2593 = vst [vmem:[%s617 + $0x48] sm:$0xff] %v2561
            %2594 = vst [vmem:[%s617 + $0x50] sm:$0xff] %v2562
            %2595 = vst [vmem:[%s617 + $0x58] sm:$0xff] %v2563
            %2596 = vst [vmem:[%s617 + $0x60] sm:$0xff] %v2564
            %2597 = vst [vmem:[%s617 + $0x68] sm:$0xff] %v2565
            %2598 = vst [vmem:[%s617 + $0x70] sm:$0xff] %v2566
            %2599 = vst [vmem:[%s617 + $0x78] sm:$0xff] %v2567
            %2600 = vst [vmem:[%s617 + $0x80] sm:$0xff] %v2568
            %2601 = vst [vmem:[%s617 + $0x88] sm:$0xff] %v2569
            %2602 = vst [vmem:[%s617 + $0x90] sm:$0xff] %v2570
            %2603 = vst [vmem:[%s617 + $0x98] sm:$0xff] %v2571
            %2604 = vst [vmem:[%s617 + $0xa0] sm:$0xff] %v2572
            %2605 = vst [vmem:[%s617 + $0xa8] sm:$0xff] %v2573
            %2606 = vst [vmem:[%s617 + $0xb0] sm:$0xff] %v2574
            %2607 = vst [vmem:[%s617 + $0xb8] sm:$0xff] %v2575
            %2608 = vst [vmem:[%s617 + $0xc0] sm:$0xff] %v2576
            %2609 = vst [vmem:[%s617 + $0xc8] sm:$0xff] %v2577
            %2610 = vst [vmem:[%s617 + $0xd0] sm:$0xff] %v2578
            %2611 = vst [vmem:[%s617 + $0xd8] sm:$0xff] %v2579
            %2612 = vst [vmem:[%s617 + $0xe0] sm:$0xff] %v2580
            %2613 = vst [vmem:[%s617 + $0xe8] sm:$0xff] %v2581
            %2614 = vst [vmem:[%s617 + $0xf0] sm:$0xff] %v2582
            %2615 = vst [vmem:[%s617 + $0xf8] sm:$0xff] %v2583
          $region132: #{tpu_custom_call.1} parent=99 // pred_fallthru
            _
        $region100: #{tpu_custom_call.1} parent=47 // pred_fallthru
          _
        %s2616 = sand.u32 %s296, 1
        %s2617 = scalar_lea.sflag [#allocation12], %s2616
        %s2618 = sand.u32 %s296, 1
        %s2619 = smul.addr %s2618, 256
        %s2620 = scalar_lea.vmem [#allocation22], %s2619
        // Predicated region
        $region133: #{tpu_custom_call.1} parent=47 // pred_check
          %p2621 = pneg %p306
        $region134: #{tpu_custom_call.1} parent=47 // pred_check_branch
          %2623 = sbr.rel (%p2621) target = $region136
        $region135: #{tpu_custom_call.1} parent=47 // pred_region
          %p2624 = scmp.eq.s32.totalorder %s46, 2
          %s2625 = scalar_select %p2624, %s47, 0
          %s2626 = smul.u32 16, %s2625
          %s2628 = ssub.s32 4096, 4096
          %2629 = vsyncadd %s2617, %s2628
          %s2630 = smul.addr %s2626, 2
          %s2631 = smul.addr %s2630, 128
          %s2632 = scalar_lea.hbm %s9, %s2631
          %s2633 = sshll.u32 %s2620, 4
          %s2634 = int_to_ptr.vmem [resolvable:$true] %s2633
          %2639 = dma.vmem_to_hbm [thread:$0]  %s2634, 4096, %s2632, %s2617, 256, 256, 16
        $region136: #{tpu_custom_call.1} parent=47 // pred_fallthru
          _
      $region48: #{tpu_custom_call.1} parent=5 // pred_fallthru
        _
      %p2640 = scmp.le.s32.totalorder 2, %s36
      // Predicated region
      $region137: #{tpu_custom_call.1} parent=5 // pred_check
        %p2641 = pneg %p2640
      $region138: #{tpu_custom_call.1} parent=5 // pred_check_branch
        %2643 = sbr.rel (%p2641) target = $region140
      $region139: #{tpu_custom_call.1} parent=5 // pred_region
        %s2644 = ssub.s32 %s36, 2
        // Predicated region
        $region141: #{tpu_custom_call.1} parent=139 // pred_check
          %p2645 = pneg %p312
        $region142: #{tpu_custom_call.1} parent=139 // pred_check_branch
          %2647 = sbr.rel (%p2645) target = $region144
        $region143: #{tpu_custom_call.1} parent=139 // pred_region
          %s2648 = sand.u32 %s297, 1
          %s2649 = scalar_lea.sflag [#allocation12], %s2648
          %s2650 = sand.u32 %s297, 1
          %s2651 = smul.addr %s2650, 256
          %s2652 = scalar_lea.vmem [#allocation22], %s2651
          %2653 = dma.done %s2649, 4096
        $region144: #{tpu_custom_call.1} parent=139 // pred_fallthru
          _
      $region140: #{tpu_custom_call.1} parent=5 // pred_fallthru
        _
    $region6: #{tpu_custom_call.1} parent=1 // loop_footer
      %s40 = sadd.s32 1, %s36
    $region7: #{tpu_custom_call.1} parent=1 // loop_footer_branch
      %35 = sbr.rel target = $region3
    $region8: #{tpu_custom_call.1} parent=1 // loop_exit
      _
    %2654 = vsyncpa [#allocation11], 1
    %s2655 = scalar_lea.sflag [#allocation11], 1
    %2656 = vsyncpa %s2655, 1
    %2657 = vsyncpa [#allocation14], 1
    %s2658 = scalar_lea.sflag [#allocation14], 1
    %2659 = vsyncpa %s2658, 1
    %2660 = vsyncpa [#allocation17], 1
    %s2661 = scalar_lea.sflag [#allocation17], 1
    %2662 = vsyncpa %s2661, 1
    %2663 = vsyncpa [#allocation20], 1
    %s2664 = scalar_lea.sflag [#allocation20], 1
    %2665 = vsyncpa %s2664, 1
    %2666 = vsyncpa [#allocation12], 1
    %s2667 = scalar_lea.sflag [#allocation12], 1
    %2668 = vsyncpa %s2667, 1

</llo_original>
